<compile_context>
chip_gen: v6e
topology: v6e:2x2x1
jax: 0.10.0
libtpu: 0.0.40
codegen_flags: <defaults>
</compile_context>

<pallas_src>
import math
import functools

import jax
import jax.numpy as jnp
from jax import lax
from jax.experimental import pallas as pl
from jax.experimental.pallas import tpu as pltpu
import numpy as np


# ------------------------------ small helpers --------------------------------

def round_up(x, m):
    return ((x + m - 1) // m) * m


def pad_gate_cols(w, H, H_pad):
    """Pad the last dim of a (..., 3H) r|z|n gate-stacked tensor to (..., 3*H_pad),
    zero-padding each gate block independently so gate slices stay lane-aligned."""
    if H_pad == H:
        return w
    parts = []
    for g in range(3):
        blk = w[..., g * H:(g + 1) * H]
        pad_width = [(0, 0)] * (w.ndim - 1) + [(0, H_pad - H)]
        parts.append(jnp.pad(blk, pad_width))
    return jnp.concatenate(parts, axis=-1)


def pad_row_blocks(w, n_blocks, blk, blk_pad):
    """Pad rows of a (n_blocks*blk, N) matrix block-wise to (n_blocks*blk_pad, N)."""
    if blk_pad == blk:
        return w
    parts = []
    for i in range(n_blocks):
        parts.append(jnp.pad(w[i * blk:(i + 1) * blk], ((0, blk_pad - blk), (0, 0))))
    return jnp.concatenate(parts, axis=0)


# --------------------------- recurrent GRU kernel -----------------------------

def make_recurrent_kernel(H_pad, TB, bidirectional):
    HP = H_pad

    def sigmoid(x):
        # single EUP op (tanh) instead of exp + full-precision divide
        return 0.5 * (jnp.tanh(0.5 * x) + 1.0)

    def gru_step(gi_b16, h_prev, whh_b16, bhh_n, mask):
        # serial part only: h @ W_hh^T on the MXU in bf16, f32 accumulate
        gh = jnp.dot(h_prev.astype(jnp.bfloat16), whh_b16,
                     preferred_element_type=jnp.float32)
        gi = gi_b16.astype(jnp.float32)          # b_ih and b_hh(r,z) already folded in
        r = sigmoid(gi[:, 0:HP] + gh[:, 0:HP])
        z = sigmoid(gi[:, HP:2 * HP] + gh[:, HP:2 * HP])
        n = jnp.tanh(gi[:, 2 * HP:3 * HP] + r * (gh[:, 2 * HP:3 * HP] + bhh_n))
        h_new = n + z * (h_prev - n)             # == (1-z)*n + z*h_prev
        # pack/pad_packed semantics: zero h for t >= len (also resets bwd chain)
        return jnp.where(mask, h_new, 0.0)

    if bidirectional:
        def kernel(lens_ref, gi_f_ref, gi_b_ref,
                   whh_f_ref, bhhn_f_ref, whh_b_ref, bhhn_b_ref,
                   out_f_ref, out_b_ref, h_f, h_b):
            blk = pl.program_id(0)
            nblk = pl.num_programs(0)

            @pl.when(blk == 0)
            def _():
                h_f[...] = jnp.zeros_like(h_f)
                h_b[...] = jnp.zeros_like(h_b)

            lens = lens_ref[...]                 # (B_pad, 1) int32, resident
            whh_f = whh_f_ref[...]
            whh_b = whh_b_ref[...]
            bhhn_f = bhhn_f_ref[...]
            bhhn_b = bhhn_b_ref[...]
            t0_f = blk * TB                      # global time of fwd local step 0
            t0_b = (nblk - 1 - blk) * TB         # base time of the bwd block

            hf = h_f[...]
            hb = h_b[...]
            # fully-unrolled timestep block (two independent dependency chains
            # interleave; static indices -> static VMEM offsets)
            for s in range(TB):
                hf = gru_step(gi_f_ref[s], hf, whh_f, bhhn_f, lens > (t0_f + s))
                out_f_ref[s] = hf
                sb = TB - 1 - s                  # bwd walks its block in reverse
                hb = gru_step(gi_b_ref[sb], hb, whh_b, bhhn_b, lens > (t0_b + sb))
                out_b_ref[sb] = hb
            h_f[...] = hf
            h_b[...] = hb
        return kernel

    def kernel(lens_ref, gi_ref, whh_ref, bhhn_ref, out_ref, h_s):
        blk = pl.program_id(0)

        @pl.when(blk == 0)
        def _():
            h_s[...] = jnp.zeros_like(h_s)

        lens = lens_ref[...]
        whh = whh_ref[...]
        bhhn = bhhn_ref[...]
        t0 = blk * TB
        h = h_s[...]
        for s in range(TB):
            h = gru_step(gi_ref[s], h, whh, bhhn, lens > (t0 + s))
            out_ref[s] = h
        h_s[...] = h
    return kernel


def run_recurrence(lens_i32, gi_list, whh_list, bhhn_list, H_pad, TB, bidirectional):
    """gi_list[d]: (T_pad, B_pad, 3*H_pad) bf16 precomputed input projections.
    Returns time-major (T_pad, B_pad, H_pad) f32 outputs for fwd (and bwd)."""
    T_pad, B_pad, G3 = gi_list[0].shape
    nblk = T_pad // TB

    fwd_map = lambda b: (b, 0, 0)
    bwd_map = lambda b: (nblk - 1 - b, 0, 0)
    res2 = lambda b: (0, 0)

    lens_spec = pl.BlockSpec((B_pad, 1), res2)              # resident lengths
    gi_spec_f = pl.BlockSpec((TB, B_pad, G3), fwd_map)      # bf16 stream, TB steps/block
    gi_spec_b = pl.BlockSpec((TB, B_pad, G3), bwd_map)
    whh_spec = pl.BlockSpec((H_pad, G3), res2)              # resident bf16 weights
    bhhn_spec = pl.BlockSpec((1, H_pad), res2)
    out_spec_f = pl.BlockSpec((TB, B_pad, H_pad), fwd_map)  # lane-dense outputs
    out_spec_b = pl.BlockSpec((TB, B_pad, H_pad), bwd_map)

    if bidirectional:
        in_specs = [lens_spec, gi_spec_f, gi_spec_b,
                    whh_spec, bhhn_spec, whh_spec, bhhn_spec]
        inputs = (lens_i32, gi_list[0], gi_list[1],
                  whh_list[0], bhhn_list[0], whh_list[1], bhhn_list[1])
        out_shape = (jax.ShapeDtypeStruct((T_pad, B_pad, H_pad), jnp.float32),
                     jax.ShapeDtypeStruct((T_pad, B_pad, H_pad), jnp.float32))
        out_specs = (out_spec_f, out_spec_b)
        scratch = [pltpu.VMEM((B_pad, H_pad), jnp.float32),
                   pltpu.VMEM((B_pad, H_pad), jnp.float32)]
    else:
        in_specs = [lens_spec, gi_spec_f, whh_spec, bhhn_spec]
        inputs = (lens_i32, gi_list[0], whh_list[0], bhhn_list[0])
        out_shape = jax.ShapeDtypeStruct((T_pad, B_pad, H_pad), jnp.float32)
        out_specs = out_spec_f
        scratch = [pltpu.VMEM((B_pad, H_pad), jnp.float32)]

    kernel = make_recurrent_kernel(H_pad, TB, bidirectional)
    outs = pl.pallas_call(
        kernel,
        out_shape=out_shape,
        grid_spec=pltpu.PrefetchScalarGridSpec(
            num_scalar_prefetch=0,
            grid=(nblk,),
            in_specs=in_specs,
            out_specs=out_specs,
            scratch_shapes=scratch),
        compiler_params=pltpu.CompilerParams(
            dimension_semantics=("arbitrary",),           # sequential recurrence
            vmem_limit_bytes=48 * 1024 * 1024),
    )(*inputs)

    if bidirectional:
        return outs[0], outs[1]
    return outs, None


# ---------------------- post kernel (avg of dirs + l2norm) --------------------

def make_post_kernel(use_bi, no_txtnorm):
    def finish(emb):
        if no_txtnorm:
            return emb
        norm = jnp.sqrt(jnp.sum(emb * emb, axis=-1, keepdims=True)) + 1e-8
        return emb * pl.reciprocal(norm, approx=True)

    if use_bi:
        def kernel(f_ref, b_ref, o_ref):
            o_ref[...] = finish((f_ref[...] + b_ref[...]) * 0.5)
    else:
        def kernel(f_ref, o_ref):
            o_ref[...] = finish(f_ref[...])
    return kernel


def post_process(out_f, out_b, use_bi, no_txtnorm):
    T_pad, B_pad, H_pad = out_f.shape
    rows = T_pad * B_pad                    # multiple of 64 (T_pad%8==0, B_pad%8==0)
    R = min(512, rows)                      # large lane/sublane-dense row blocks
    grid = pl.cdiv(rows, R)                 # ragged tail handled by Pallas masking

    spec = pl.BlockSpec((R, H_pad), lambda i: (i, 0))
    args = [out_f.reshape(rows, H_pad)]
    in_specs = [spec]
    if use_bi:
        args.append(out_b.reshape(rows, H_pad))
        in_specs.append(pl.BlockSpec((R, H_pad), lambda i: (i, 0)))

    out = pl.pallas_call(
        make_post_kernel(use_bi, no_txtnorm),
        out_shape=jax.ShapeDtypeStruct((rows, H_pad), jnp.float32),
        grid_spec=pltpu.PrefetchScalarGridSpec(
            num_scalar_prefetch=0,
            grid=(grid,),
            in_specs=in_specs,
            out_specs=pl.BlockSpec((R, H_pad), lambda i: (i, 0))),
        compiler_params=pltpu.CompilerParams(
            dimension_semantics=("parallel",)),
    )(*args)
    return out.reshape(T_pad, B_pad, H_pad)


# ----------------------------- EncoderText forward ----------------------------

def init_encoder_text_params(key, vocab_size, word_dim, embed_size,
                             num_layers, use_bi_gru):
    params = {}
    key, k_embed = jax.random.split(key)
    params["embed"] = jax.random.uniform(
        k_embed, (vocab_size, word_dim), jnp.float32, -0.1, 0.1)

    stdv = 1.0 / math.sqrt(embed_size)
    num_dirs = 2 if use_bi_gru else 1
    layers = []
    for layer in range(num_layers):
        in_dim = word_dim if layer == 0 else embed_size * num_dirs
        dirs = []
        for _ in range(num_dirs):
            key, k1, k2, k3, k4 = jax.random.split(key, 5)
            w_ih_t = jax.random.uniform(k1, (in_dim, 3 * embed_size), jnp.float32, -stdv, stdv)
            w_hh_t = jax.random.uniform(k2, (embed_size, 3 * embed_size), jnp.float32, -stdv, stdv)
            b_ih = jax.random.uniform(k3, (3 * embed_size,), jnp.float32, -stdv, stdv)
            b_hh = jax.random.uniform(k4, (3 * embed_size,), jnp.float32, -stdv, stdv)
            dirs.append((w_ih_t, w_hh_t, b_ih, b_hh))
        layers.append(dirs)
    params["gru"] = layers
    return params


def encoder_text_forward(params, x_ids, lengths, use_bi_gru=True, no_txtnorm=False):
    embed = params["embed"]
    H = params["gru"][0][0][1].shape[0]            # w_hh_t: (H, 3H)
    H_pad = round_up(H, 128)                       # lane-dense hidden
    B, T = x_ids.shape
    B_pad = round_up(B, 8)                         # sublane-dense batch
    num_dirs = 2 if use_bi_gru else 1

    # Timestep block: multiple steps per grid step; padded tail steps have mask=0
    # (correct for both directions since h is zeroed for t >= len).
    TB = min(16, round_up(T, 8))
    T_pad = round_up(T, TB)

    # Embedding gathered directly time-major (no (B,T,D) transpose pass).
    ids_tm = jnp.pad(jnp.transpose(x_ids), ((0, T_pad - T), (0, B_pad - B)))
    x_tm = jnp.take(embed, ids_tm, axis=0)                      # (T_pad, B_pad, D)

    # Lengths as a tiny resident VMEM block (mask built in-kernel per step).
    lens_i32 = jnp.pad(lengths.astype(jnp.int32), (0, B_pad - B)).reshape(B_pad, 1)

    h_in = x_tm
    out_f = out_b = None
    for layer_idx, dirs in enumerate(params["gru"]):
        gi_list, whh_list, bhhn_list = [], [], []
        Tn, Bp, Din = h_in.shape
        x2d = h_in.reshape(Tn * Bp, Din)
        for (w_ih_t, w_hh_t, b_ih, b_hh) in dirs:
            if layer_idx == 0:
                w_ih_p = pad_gate_cols(w_ih_t, H, H_pad)                       # (D, 3*H_pad)
            else:
                w_ih_p = pad_gate_cols(
                    pad_row_blocks(w_ih_t, num_dirs, H, H_pad), H, H_pad)      # (dirs*H_pad, 3*H_pad)
            b_ih_p = pad_gate_cols(b_ih.reshape(1, 3 * H), H, H_pad)
            b_hh_p = pad_gate_cols(b_hh.reshape(1, 3 * H), H, H_pad)
            # fold b_hh's r/z components into the hoisted projection; keep the
            # n-gate b_hh for in-kernel use (it must sit inside r*(...)).
            bias_fold = b_ih_p + b_hh_p.at[:, 2 * H_pad:].set(0.0)
            bhhn_list.append(b_hh_p[:, 2 * H_pad:3 * H_pad])                   # (1, H_pad) f32

            # Hoisted input projection: one big MXU matmul over all timesteps,
            # materialized in bf16 for the recurrence stream.
            gi = jnp.dot(x2d, w_ih_p, preferred_element_type=jnp.float32) + bias_fold
            gi_list.append(gi.astype(jnp.bfloat16).reshape(Tn, Bp, 3 * H_pad))

            whh_list.append(pad_gate_cols(
                jnp.pad(w_hh_t, ((0, H_pad - H), (0, 0))), H, H_pad
            ).astype(jnp.bfloat16))                                            # (H_pad, 3*H_pad) bf16

        out_f, out_b = run_recurrence(lens_i32, gi_list, whh_list, bhhn_list,
                                      H_pad, TB, use_bi_gru)
        h_in = jnp.concatenate([out_f, out_b], axis=-1) if use_bi_gru else out_f

    # avg of directions + l2norm (tiled Pallas kernel); padded lanes/rows are
    # exactly zero so they do not affect the norm.
    cap_tm = post_process(out_f, out_b, use_bi_gru, no_txtnorm)   # (T_pad, B_pad, H_pad)
    cap_emb = jnp.transpose(cap_tm[:T, :B, :H], (1, 0, 2))        # (B, T, H)
    return cap_emb, lengths


# ------------------------------ pure-JAX reference ----------------------------

def ref_gru_direction(x, lengths, w_ih_t, w_hh_t, b_ih, b_hh, reverse):
    B, T, D = x.shape
    H = w_hh_t.shape[0]
    ts = jnp.arange(T)
    if reverse:
        ts = ts[::-1]

    def step(h, t):
        x_t = x[:, t, :]
        gi = x_t @ w_ih_t + b_ih
        gh = h @ w_hh_t + b_hh
        r = jax.nn.sigmoid(gi[:, :H] + gh[:, :H])
        z = jax.nn.sigmoid(gi[:, H:2 * H] + gh[:, H:2 * H])
        n = jnp.tanh(gi[:, 2 * H:] + r * gh[:, 2 * H:])
        h_new = (1.0 - z) * n + z * h
        h_new = jnp.where((lengths > t)[:, None], h_new, 0.0)
        return h_new, h_new

    _, outs = lax.scan(step, jnp.zeros((B, H), jnp.float32), ts)
    outs = jnp.transpose(outs, (1, 0, 2))
    if reverse:
        outs = outs[:, ::-1, :]
    return outs


def ref_forward(params, x_ids, lengths, use_bi_gru=True, no_txtnorm=False):
    emb = params["embed"][x_ids]
    h_in = emb
    cap_emb = None
    for dirs in params["gru"]:
        fwd = ref_gru_direction(h_in, lengths, *dirs[0], reverse=False)
        if use_bi_gru:
            bwd = ref_gru_direction(h_in, lengths, *dirs[1], reverse=True)
            h_in = jnp.concatenate([fwd, bwd], axis=-1)
            cap_emb = (fwd + bwd) / 2.0
        else:
            h_in = fwd
            cap_emb = fwd
    if not no_txtnorm:
        norm = jnp.sqrt(jnp.sum(cap_emb ** 2, axis=-1, keepdims=True)) + 1e-8
        cap_emb = cap_emb / norm
    return cap_emb, lengths


# ----------------------------------- main -------------------------------------

if __name__ == "__main__":
    vocab_size, word_dim, embed_size = 50, 32, 32
    num_layers, use_bi_gru, no_txtnorm = 2, True, False
    B, T = 4, 8

    key = jax.random.PRNGKey(0)
    k_params, k_ids = jax.random.split(key)
    params = init_encoder_text_params(
        k_params, vocab_size, word_dim, embed_size, num_layers, use_bi_gru)

    x_ids = jax.random.randint(k_ids, (B, T), 0, vocab_size, dtype=jnp.int32)
    # pack_padded_sequence convention: lengths sorted descending, max len == T
    lengths = jnp.array([8, 7, 5, 3], dtype=jnp.int32)

    fwd_fn = jax.jit(functools.partial(
        encoder_text_forward, use_bi_gru=use_bi_gru, no_txtnorm=no_txtnorm))
    cap_emb, cap_len = fwd_fn(params, x_ids, lengths)
    cap_emb = jax.block_until_ready(cap_emb)

    ref_emb, _ = ref_forward(params, x_ids, lengths, use_bi_gru, no_txtnorm)
    # bf16 gi / bf16 recurrent matmul -> looser tolerance than the pure-f32 version
    np.testing.assert_allclose(np.asarray(cap_emb), np.asarray(ref_emb),
                               atol=2e-2, rtol=2e-2)
    print("KERNEL_OK")
</pallas_src>

<mosaic_0001>
module attributes {stable_mosaic.version = 11 : i64} {
  func.func @kernel(%arg0: i32, %arg1: memref<64x128xf32, #tpu.memory_space<vmem>>, %arg2: memref<64x128xf32, #tpu.memory_space<vmem>>, %arg3: memref<64x128xf32, #tpu.memory_space<vmem>>) attributes {dimension_semantics = [#tpu.dimension_semantics<parallel>], iteration_bounds = array<i64: 1>, scalar_prefetch = 0 : i64, scratch_operands = 0 : i64, tpu.core_type = #tpu.core_type<tc>, window_params = [{transform_indices = @transform_0, window_bounds = array<i64: 64, 128>}, {transform_indices = @transform_1, window_bounds = array<i64: 64, 128>}, {transform_indices = @transform_2, window_bounds = array<i64: 64, 128>}]} {
    %c0 = arith.constant 0 : index
    %c0_0 = arith.constant 0 : index
    %0 = vector.load %arg1[%c0, %c0_0] : memref<64x128xf32, #tpu.memory_space<vmem>>, vector<64x128xf32>
    %c0_1 = arith.constant 0 : index
    %c0_2 = arith.constant 0 : index
    %1 = vector.load %arg2[%c0_1, %c0_2] : memref<64x128xf32, #tpu.memory_space<vmem>>, vector<64x128xf32>
    %2 = arith.addf %0, %1 : vector<64x128xf32>
    %cst = arith.constant 5.000000e-01 : f32
    %3 = vector.broadcast %cst : f32 to vector<64x128xf32>
    %4 = arith.mulf %2, %3 : vector<64x128xf32>
    %5 = arith.mulf %4, %4 : vector<64x128xf32>
    %cst_3 = arith.constant dense<0.000000e+00> : vector<64xf32>
    %6 = vector.multi_reduction <add>, %5, %cst_3 [1] : vector<64x128xf32> to vector<64xf32>
    %7 = vector.shape_cast %6 : vector<64xf32> to vector<64x1xf32>
    %8 = math.sqrt %7 : vector<64x1xf32>
    %cst_4 = arith.constant 9.99999993E-9 : f32
    %9 = vector.broadcast %cst_4 : f32 to vector<64x1xf32>
    %10 = arith.addf %8, %9 : vector<64x1xf32>
    %11 = tpu.reciprocal %10 {approx = true} : vector<64x1xf32> -> vector<64x1xf32>
    %12 = vector.broadcast %11 : vector<64x1xf32> to vector<64x128xf32>
    %13 = arith.mulf %4, %12 : vector<64x128xf32>
    %c0_5 = arith.constant 0 : index
    %c0_6 = arith.constant 0 : index
    %14 = vector.load %arg3[%c0_5, %c0_6] : memref<64x128xf32, #tpu.memory_space<vmem>>, vector<64x128xf32>
    tpu.vector_store %arg3[%c0_5, %c0_6], %13 {strides = array<i32>} : memref<64x128xf32, #tpu.memory_space<vmem>>, vector<64x128xf32>,
    return
  }
  func.func @transform_0(%arg0: i32) -> (i32, i32) {
    %c0_i32 = arith.constant 0 : i32
    %c0_i32_0 = arith.constant 0 : i32
    return %arg0, %c0_i32 : i32, i32
  }
  func.func @transform_1(%arg0: i32) -> (i32, i32) {
    %c0_i32 = arith.constant 0 : i32
    %c0_i32_0 = arith.constant 0 : i32
    return %arg0, %c0_i32 : i32, i32
  }
  func.func @transform_2(%arg0: i32) -> (i32, i32) {
    %c0_i32 = arith.constant 0 : i32
    %c0_i32_0 = arith.constant 0 : i32
    return %arg0, %c0_i32 : i32, i32
  }
}

module attributes {stable_mosaic.version = 11 : i64} {
  func.func @kernel(%arg0: i32, %arg1: memref<8x1xi32, #tpu.memory_space<vmem>>, %arg2: memref<8x8x384xbf16, #tpu.memory_space<vmem>>, %arg3: memref<8x8x384xbf16, #tpu.memory_space<vmem>>, %arg4: memref<128x384xbf16, #tpu.memory_space<vmem>>, %arg5: memref<1x128xf32, #tpu.memory_space<vmem>>, %arg6: memref<128x384xbf16, #tpu.memory_space<vmem>>, %arg7: memref<1x128xf32, #tpu.memory_space<vmem>>, %arg8: memref<8x8x128xf32, #tpu.memory_space<vmem>>, %arg9: memref<8x8x128xf32, #tpu.memory_space<vmem>>, %arg10: memref<8x128xf32, #tpu.memory_space<vmem>>, %arg11: memref<8x128xf32, #tpu.memory_space<vmem>>) attributes {dimension_semantics = [#tpu.dimension_semantics<arbitrary>], iteration_bounds = array<i64: 1>, scalar_prefetch = 0 : i64, scratch_operands = 2 : i64, tpu.core_type = #tpu.core_type<tc>, window_params = [{pipeline_mode = #tpu.pipeline_mode<synchronous>, transform_indices = @transform_0, window_bounds = array<i64: 8, 1>}, {transform_indices = @transform_1, window_bounds = array<i64: 8, 8, 384>}, {transform_indices = @transform_2, window_bounds = array<i64: 8, 8, 384>}, {pipeline_mode = #tpu.pipeline_mode<synchronous>, transform_indices = @transform_3, window_bounds = array<i64: 128, 384>}, {pipeline_mode = #tpu.pipeline_mode<synchronous>, transform_indices = @transform_4, window_bounds = array<i64: 1, 128>}, {pipeline_mode = #tpu.pipeline_mode<synchronous>, transform_indices = @transform_5, window_bounds = array<i64: 128, 384>}, {pipeline_mode = #tpu.pipeline_mode<synchronous>, transform_indices = @transform_6, window_bounds = array<i64: 1, 128>}, {transform_indices = @transform_7, window_bounds = array<i64: 8, 8, 128>}, {transform_indices = @transform_8, window_bounds = array<i64: 8, 8, 128>}]} {
    %c0_i32 = arith.constant 0 : i32
    %0 = arith.cmpi eq, %arg0, %c0_i32 : i32
    %1 = arith.extui %0 : i1 to i32
    %c0_i32_0 = arith.constant 0 : i32
    %2 = arith.cmpi ne, %1, %c0_i32_0 : i32
    scf.if %2 {
      %cst_245 = arith.constant 0.000000e+00 : f32
      %735 = vector.broadcast %cst_245 : f32 to vector<8x128xf32>
      %c0_246 = arith.constant 0 : index
      %c0_247 = arith.constant 0 : index
      %736 = vector.load %arg10[%c0_246, %c0_247] : memref<8x128xf32, #tpu.memory_space<vmem>>, vector<8x128xf32>
      tpu.vector_store %arg10[%c0_246, %c0_247], %735 {strides = array<i32>} : memref<8x128xf32, #tpu.memory_space<vmem>>, vector<8x128xf32>,
      %cst_248 = arith.constant 0.000000e+00 : f32
      %737 = vector.broadcast %cst_248 : f32 to vector<8x128xf32>
      %c0_249 = arith.constant 0 : index
      %c0_250 = arith.constant 0 : index
      %738 = vector.load %arg11[%c0_249, %c0_250] : memref<8x128xf32, #tpu.memory_space<vmem>>, vector<8x128xf32>
      tpu.vector_store %arg11[%c0_249, %c0_250], %737 {strides = array<i32>} : memref<8x128xf32, #tpu.memory_space<vmem>>, vector<8x128xf32>,
    } else {
    }
    %c0 = arith.constant 0 : index
    %c0_1 = arith.constant 0 : index
    %3 = vector.load %arg1[%c0, %c0_1] : memref<8x1xi32, #tpu.memory_space<vmem>>, vector<8x1xi32>
    %c0_2 = arith.constant 0 : index
    %c0_3 = arith.constant 0 : index
    %4 = vector.load %arg4[%c0_2, %c0_3] : memref<128x384xbf16, #tpu.memory_space<vmem>>, vector<128x384xbf16>
    %c0_4 = arith.constant 0 : index
    %c0_5 = arith.constant 0 : index
    %5 = vector.load %arg6[%c0_4, %c0_5] : memref<128x384xbf16, #tpu.memory_space<vmem>>, vector<128x384xbf16>
    %c0_6 = arith.constant 0 : index
    %c0_7 = arith.constant 0 : index
    %6 = vector.load %arg5[%c0_6, %c0_7] : memref<1x128xf32, #tpu.memory_space<vmem>>, vector<1x128xf32>
    %c0_8 = arith.constant 0 : index
    %c0_9 = arith.constant 0 : index
    %7 = vector.load %arg7[%c0_8, %c0_9] : memref<1x128xf32, #tpu.memory_space<vmem>>, vector<1x128xf32>
    %c8_i32 = arith.constant 8 : i32
    %8 = arith.muli %arg0, %c8_i32 : i32
    %c0_i32_10 = arith.constant 0 : i32
    %9 = arith.subi %c0_i32_10, %arg0 : i32
    %c8_i32_11 = arith.constant 8 : i32
    %10 = arith.muli %9, %c8_i32_11 : i32
    %c0_12 = arith.constant 0 : index
    %c0_13 = arith.constant 0 : index
    %11 = vector.load %arg10[%c0_12, %c0_13] : memref<8x128xf32, #tpu.memory_space<vmem>>, vector<8x128xf32>
    %c0_14 = arith.constant 0 : index
    %c0_15 = arith.constant 0 : index
    %12 = vector.load %arg11[%c0_14, %c0_15] : memref<8x128xf32, #tpu.memory_space<vmem>>, vector<8x128xf32>
    %c0_16 = arith.constant 0 : index
    %c0_17 = arith.constant 0 : index
    %c0_18 = arith.constant 0 : index
    %13 = vector.load %arg2[%c0_16, %c0_17, %c0_18] : memref<8x8x384xbf16, #tpu.memory_space<vmem>>, vector<1x8x384xbf16>
    %14 = vector.shape_cast %13 : vector<1x8x384xbf16> to vector<8x384xbf16>
    %c0_i32_19 = arith.constant 0 : i32
    %15 = arith.addi %8, %c0_i32_19 : i32
    %16 = vector.broadcast %15 : i32 to vector<8x1xi32>
    %17 = arith.cmpi sgt, %3, %16 : vector<8x1xi32>
    %18 = arith.truncf %11 : vector<8x128xf32> to vector<8x128xbf16>
    %cst = arith.constant dense<0.000000e+00> : vector<8x384xf32>
    %19 = tpu.matmul %18, %4, %cst {dimension_numbers = #tpu.dot_dimension_numbers<[1], [0], [0], [1], [0, 0, 1, 1], [], []>} : vector<8x128xbf16>, vector<128x384xbf16>, vector<8x384xf32> -> vector<8x384xf32>
    %20 = arith.extf %14 : vector<8x384xbf16> to vector<8x384xf32>
    %21 = vector.extract_strided_slice %20 {offsets = [0, 0], sizes = [8, 128], strides = [1, 1]} : vector<8x384xf32> to vector<8x128xf32>
    %22 = vector.extract_strided_slice %19 {offsets = [0, 0], sizes = [8, 128], strides = [1, 1]} : vector<8x384xf32> to vector<8x128xf32>
    %23 = arith.addf %21, %22 : vector<8x128xf32>
    %cst_20 = arith.constant 5.000000e-01 : f32
    %24 = vector.broadcast %cst_20 : f32 to vector<8x128xf32>
    %25 = arith.mulf %24, %23 : vector<8x128xf32>
    %26 = math.tanh %25 : vector<8x128xf32>
    %cst_21 = arith.constant 1.000000e+00 : f32
    %27 = vector.broadcast %cst_21 : f32 to vector<8x128xf32>
    %28 = arith.addf %26, %27 : vector<8x128xf32>
    %cst_22 = arith.constant 5.000000e-01 : f32
    %29 = vector.broadcast %cst_22 : f32 to vector<8x128xf32>
    %30 = arith.mulf %29, %28 : vector<8x128xf32>
    %31 = vector.extract_strided_slice %20 {offsets = [0, 128], sizes = [8, 128], strides = [1, 1]} : vector<8x384xf32> to vector<8x128xf32>
    %32 = vector.extract_strided_slice %19 {offsets = [0, 128], sizes = [8, 128], strides = [1, 1]} : vector<8x384xf32> to vector<8x128xf32>
    %33 = arith.addf %31, %32 : vector<8x128xf32>
    %cst_23 = arith.constant 5.000000e-01 : f32
    %34 = vector.broadcast %cst_23 : f32 to vector<8x128xf32>
    %35 = arith.mulf %34, %33 : vector<8x128xf32>
    %36 = math.tanh %35 : vector<8x128xf32>
    %cst_24 = arith.constant 1.000000e+00 : f32
    %37 = vector.broadcast %cst_24 : f32 to vector<8x128xf32>
    %38 = arith.addf %36, %37 : vector<8x128xf32>
    %cst_25 = arith.constant 5.000000e-01 : f32
    %39 = vector.broadcast %cst_25 : f32 to vector<8x128xf32>
    %40 = arith.mulf %39, %38 : vector<8x128xf32>
    %41 = vector.extract_strided_slice %20 {offsets = [0, 256], sizes = [8, 128], strides = [1, 1]} : vector<8x384xf32> to vector<8x128xf32>
    %42 = vector.extract_strided_slice %19 {offsets = [0, 256], sizes = [8, 128], strides = [1, 1]} : vector<8x384xf32> to vector<8x128xf32>
    %43 = vector.broadcast %6 : vector<1x128xf32> to vector<8x128xf32>
    %44 = arith.addf %42, %43 : vector<8x128xf32>
    %45 = arith.mulf %30, %44 : vector<8x128xf32>
    %46 = arith.addf %41, %45 : vector<8x128xf32>
    %47 = math.tanh %46 : vector<8x128xf32>
    %48 = arith.subf %11, %47 : vector<8x128xf32>
    %49 = arith.mulf %40, %48 : vector<8x128xf32>
    %50 = arith.addf %47, %49 : vector<8x128xf32>
    %cst_26 = arith.constant 0.000000e+00 : f32
    %51 = vector.shape_cast %17 : vector<8x1xi1> to vector<8x1xi1>
    %52 = vector.broadcast %51 : vector<8x1xi1> to vector<8x128xi1>
    %53 = vector.broadcast %cst_26 : f32 to vector<8x128xf32>
    %54 = arith.select %52, %50, %53 : vector<8x128xi1>, vector<8x128xf32>
    %c0_27 = arith.constant 0 : index
    %c0_28 = arith.constant 0 : index
    %c0_29 = arith.constant 0 : index
    %55 = vector.load %arg8[%c0_27, %c0_28, %c0_29] : memref<8x8x128xf32, #tpu.memory_space<vmem>>, vector<1x8x128xf32>
    %56 = vector.shape_cast %55 : vector<1x8x128xf32> to vector<8x128xf32>
    %57 = vector.shape_cast %54 : vector<8x128xf32> to vector<1x8x128xf32>
    tpu.vector_store %arg8[%c0_27, %c0_28, %c0_29], %57 {strides = array<i32>} : memref<8x8x128xf32, #tpu.memory_space<vmem>>, vector<1x8x128xf32>,
    %c7 = arith.constant 7 : index
    %c0_30 = arith.constant 0 : index
    %c0_31 = arith.constant 0 : index
    %58 = vector.load %arg3[%c7, %c0_30, %c0_31] : memref<8x8x384xbf16, #tpu.memory_space<vmem>>, vector<1x8x384xbf16>
    %59 = vector.shape_cast %58 : vector<1x8x384xbf16> to vector<8x384xbf16>
    %c7_i32 = arith.constant 7 : i32
    %60 = arith.addi %10, %c7_i32 : i32
    %61 = vector.broadcast %60 : i32 to vector<8x1xi32>
    %62 = arith.cmpi sgt, %3, %61 : vector<8x1xi32>
    %63 = arith.truncf %12 : vector<8x128xf32> to vector<8x128xbf16>
    %cst_32 = arith.constant dense<0.000000e+00> : vector<8x384xf32>
    %64 = tpu.matmul %63, %5, %cst_32 {dimension_numbers = #tpu.dot_dimension_numbers<[1], [0], [0], [1], [0, 0, 1, 1], [], []>} : vector<8x128xbf16>, vector<128x384xbf16>, vector<8x384xf32> -> vector<8x384xf32>
    %65 = arith.extf %59 : vector<8x384xbf16> to vector<8x384xf32>
    %66 = vector.extract_strided_slice %65 {offsets = [0, 0], sizes = [8, 128], strides = [1, 1]} : vector<8x384xf32> to vector<8x128xf32>
    %67 = vector.extract_strided_slice %64 {offsets = [0, 0], sizes = [8, 128], strides = [1, 1]} : vector<8x384xf32> to vector<8x128xf32>
    %68 = arith.addf %66, %67 : vector<8x128xf32>
    %cst_33 = arith.constant 5.000000e-01 : f32
    %69 = vector.broadcast %cst_33 : f32 to vector<8x128xf32>
    %70 = arith.mulf %69, %68 : vector<8x128xf32>
    %71 = math.tanh %70 : vector<8x128xf32>
    %cst_34 = arith.constant 1.000000e+00 : f32
    %72 = vector.broadcast %cst_34 : f32 to vector<8x128xf32>
    %73 = arith.addf %71, %72 : vector<8x128xf32>
    %cst_35 = arith.constant 5.000000e-01 : f32
    %74 = vector.broadcast %cst_35 : f32 to vector<8x128xf32>
    %75 = arith.mulf %74, %73 : vector<8x128xf32>
    %76 = vector.extract_strided_slice %65 {offsets = [0, 128], sizes = [8, 128], strides = [1, 1]} : vector<8x384xf32> to vector<8x128xf32>
    %77 = vector.extract_strided_slice %64 {offsets = [0, 128], sizes = [8, 128], strides = [1, 1]} : vector<8x384xf32> to vector<8x128xf32>
    %78 = arith.addf %76, %77 : vector<8x128xf32>
    %cst_36 = arith.constant 5.000000e-01 : f32
    %79 = vector.broadcast %cst_36 : f32 to vector<8x128xf32>
    %80 = arith.mulf %79, %78 : vector<8x128xf32>
    %81 = math.tanh %80 : vector<8x128xf32>
    %cst_37 = arith.constant 1.000000e+00 : f32
    %82 = vector.broadcast %cst_37 : f32 to vector<8x128xf32>
    %83 = arith.addf %81, %82 : vector<8x128xf32>
    %cst_38 = arith.constant 5.000000e-01 : f32
    %84 = vector.broadcast %cst_38 : f32 to vector<8x128xf32>
    %85 = arith.mulf %84, %83 : vector<8x128xf32>
    %86 = vector.extract_strided_slice %65 {offsets = [0, 256], sizes = [8, 128], strides = [1, 1]} : vector<8x384xf32> to vector<8x128xf32>
    %87 = vector.extract_strided_slice %64 {offsets = [0, 256], sizes = [8, 128], strides = [1, 1]} : vector<8x384xf32> to vector<8x128xf32>
    %88 = vector.broadcast %7 : vector<1x128xf32> to vector<8x128xf32>
    %89 = arith.addf %87, %88 : vector<8x128xf32>
    %90 = arith.mulf %75, %89 : vector<8x128xf32>
    %91 = arith.addf %86, %90 : vector<8x128xf32>
    %92 = math.tanh %91 : vector<8x128xf32>
    %93 = arith.subf %12, %92 : vector<8x128xf32>
    %94 = arith.mulf %85, %93 : vector<8x128xf32>
    %95 = arith.addf %92, %94 : vector<8x128xf32>
    %cst_39 = arith.constant 0.000000e+00 : f32
    %96 = vector.shape_cast %62 : vector<8x1xi1> to vector<8x1xi1>
    %97 = vector.broadcast %96 : vector<8x1xi1> to vector<8x128xi1>
    %98 = vector.broadcast %cst_39 : f32 to vector<8x128xf32>
    %99 = arith.select %97, %95, %98 : vector<8x128xi1>, vector<8x128xf32>
    %c7_40 = arith.constant 7 : index
    %c0_41 = arith.constant 0 : index
    %c0_42 = arith.constant 0 : index
    %100 = vector.load %arg9[%c7_40, %c0_41, %c0_42] : memref<8x8x128xf32, #tpu.memory_space<vmem>>, vector<1x8x128xf32>
    %101 = vector.shape_cast %100 : vector<1x8x128xf32> to vector<8x128xf32>
    %102 = vector.shape_cast %99 : vector<8x128xf32> to vector<1x8x128xf32>
    tpu.vector_store %arg9[%c7_40, %c0_41, %c0_42], %102 {strides = array<i32>} : memref<8x8x128xf32, #tpu.memory_space<vmem>>, vector<1x8x128xf32>,
    %c1 = arith.constant 1 : index
    %c0_43 = arith.constant 0 : index
    %c0_44 = arith.constant 0 : index
    %103 = vector.load %arg2[%c1, %c0_43, %c0_44] : memref<8x8x384xbf16, #tpu.memory_space<vmem>>, vector<1x8x384xbf16>
    %104 = vector.shape_cast %103 : vector<1x8x384xbf16> to vector<8x384xbf16>
    %c1_i32 = arith.constant 1 : i32
    %105 = arith.addi %8, %c1_i32 : i32
    %106 = vector.broadcast %105 : i32 to vector<8x1xi32>
    %107 = arith.cmpi sgt, %3, %106 : vector<8x1xi32>
    %108 = arith.truncf %54 : vector<8x128xf32> to vector<8x128xbf16>
    %cst_45 = arith.constant dense<0.000000e+00> : vector<8x384xf32>
    %109 = tpu.matmul %108, %4, %cst_45 {dimension_numbers = #tpu.dot_dimension_numbers<[1], [0], [0], [1], [0, 0, 1, 1], [], []>} : vector<8x128xbf16>, vector<128x384xbf16>, vector<8x384xf32> -> vector<8x384xf32>
    %110 = arith.extf %104 : vector<8x384xbf16> to vector<8x384xf32>
    %111 = vector.extract_strided_slice %110 {offsets = [0, 0], sizes = [8, 128], strides = [1, 1]} : vector<8x384xf32> to vector<8x128xf32>
    %112 = vector.extract_strided_slice %109 {offsets = [0, 0], sizes = [8, 128], strides = [1, 1]} : vector<8x384xf32> to vector<8x128xf32>
    %113 = arith.addf %111, %112 : vector<8x128xf32>
    %cst_46 = arith.constant 5.000000e-01 : f32
    %114 = vector.broadcast %cst_46 : f32 to vector<8x128xf32>
    %115 = arith.mulf %114, %113 : vector<8x128xf32>
    %116 = math.tanh %115 : vector<8x128xf32>
    %cst_47 = arith.constant 1.000000e+00 : f32
    %117 = vector.broadcast %cst_47 : f32 to vector<8x128xf32>
    %118 = arith.addf %116, %117 : vector<8x128xf32>
    %cst_48 = arith.constant 5.000000e-01 : f32
    %119 = vector.broadcast %cst_48 : f32 to vector<8x128xf32>
    %120 = arith.mulf %119, %118 : vector<8x128xf32>
    %121 = vector.extract_strided_slice %110 {offsets = [0, 128], sizes = [8, 128], strides = [1, 1]} : vector<8x384xf32> to vector<8x128xf32>
    %122 = vector.extract_strided_slice %109 {offsets = [0, 128], sizes = [8, 128], strides = [1, 1]} : vector<8x384xf32> to vector<8x128xf32>
    %123 = arith.addf %121, %122 : vector<8x128xf32>
    %cst_49 = arith.constant 5.000000e-01 : f32
    %124 = vector.broadcast %cst_49 : f32 to vector<8x128xf32>
    %125 = arith.mulf %124, %123 : vector<8x128xf32>
    %126 = math.tanh %125 : vector<8x128xf32>
    %cst_50 = arith.constant 1.000000e+00 : f32
    %127 = vector.broadcast %cst_50 : f32 to vector<8x128xf32>
    %128 = arith.addf %126, %127 : vector<8x128xf32>
    %cst_51 = arith.constant 5.000000e-01 : f32
    %129 = vector.broadcast %cst_51 : f32 to vector<8x128xf32>
    %130 = arith.mulf %129, %128 : vector<8x128xf32>
    %131 = vector.extract_strided_slice %110 {offsets = [0, 256], sizes = [8, 128], strides = [1, 1]} : vector<8x384xf32> to vector<8x128xf32>
    %132 = vector.extract_strided_slice %109 {offsets = [0, 256], sizes = [8, 128], strides = [1, 1]} : vector<8x384xf32> to vector<8x128xf32>
    %133 = vector.broadcast %6 : vector<1x128xf32> to vector<8x128xf32>
    %134 = arith.addf %132, %133 : vector<8x128xf32>
    %135 = arith.mulf %120, %134 : vector<8x128xf32>
    %136 = arith.addf %131, %135 : vector<8x128xf32>
    %137 = math.tanh %136 : vector<8x128xf32>
    %138 = arith.subf %54, %137 : vector<8x128xf32>
    %139 = arith.mulf %130, %138 : vector<8x128xf32>
    %140 = arith.addf %137, %139 : vector<8x128xf32>
    %cst_52 = arith.constant 0.000000e+00 : f32
    %141 = vector.shape_cast %107 : vector<8x1xi1> to vector<8x1xi1>
    %142 = vector.broadcast %141 : vector<8x1xi1> to vector<8x128xi1>
    %143 = vector.broadcast %cst_52 : f32 to vector<8x128xf32>
    %144 = arith.select %142, %140, %143 : vector<8x128xi1>, vector<8x128xf32>
    %c1_53 = arith.constant 1 : index
    %c0_54 = arith.constant 0 : index
    %c0_55 = arith.constant 0 : index
    %145 = vector.load %arg8[%c1_53, %c0_54, %c0_55] : memref<8x8x128xf32, #tpu.memory_space<vmem>>, vector<1x8x128xf32>
    %146 = vector.shape_cast %145 : vector<1x8x128xf32> to vector<8x128xf32>
    %147 = vector.shape_cast %144 : vector<8x128xf32> to vector<1x8x128xf32>
    tpu.vector_store %arg8[%c1_53, %c0_54, %c0_55], %147 {strides = array<i32>} : memref<8x8x128xf32, #tpu.memory_space<vmem>>, vector<1x8x128xf32>,
    %c6 = arith.constant 6 : index
    %c0_56 = arith.constant 0 : index
    %c0_57 = arith.constant 0 : index
    %148 = vector.load %arg3[%c6, %c0_56, %c0_57] : memref<8x8x384xbf16, #tpu.memory_space<vmem>>, vector<1x8x384xbf16>
    %149 = vector.shape_cast %148 : vector<1x8x384xbf16> to vector<8x384xbf16>
    %c6_i32 = arith.constant 6 : i32
    %150 = arith.addi %10, %c6_i32 : i32
    %151 = vector.broadcast %150 : i32 to vector<8x1xi32>
    %152 = arith.cmpi sgt, %3, %151 : vector<8x1xi32>
    %153 = arith.truncf %99 : vector<8x128xf32> to vector<8x128xbf16>
    %cst_58 = arith.constant dense<0.000000e+00> : vector<8x384xf32>
    %154 = tpu.matmul %153, %5, %cst_58 {dimension_numbers = #tpu.dot_dimension_numbers<[1], [0], [0], [1], [0, 0, 1, 1], [], []>} : vector<8x128xbf16>, vector<128x384xbf16>, vector<8x384xf32> -> vector<8x384xf32>
    %155 = arith.extf %149 : vector<8x384xbf16> to vector<8x384xf32>
    %156 = vector.extract_strided_slice %155 {offsets = [0, 0], sizes = [8, 128], strides = [1, 1]} : vector<8x384xf32> to vector<8x128xf32>
    %157 = vector.extract_strided_slice %154 {offsets = [0, 0], sizes = [8, 128], strides = [1, 1]} : vector<8x384xf32> to vector<8x128xf32>
    %158 = arith.addf %156, %157 : vector<8x128xf32>
    %cst_59 = arith.constant 5.000000e-01 : f32
    %159 = vector.broadcast %cst_59 : f32 to vector<8x128xf32>
    %160 = arith.mulf %159, %158 : vector<8x128xf32>
    %161 = math.tanh %160 : vector<8x128xf32>
    %cst_60 = arith.constant 1.000000e+00 : f32
    %162 = vector.broadcast %cst_60 : f32 to vector<8x128xf32>
    %163 = arith.addf %161, %162 : vector<8x128xf32>
    %cst_61 = arith.constant 5.000000e-01 : f32
    %164 = vector.broadcast %cst_61 : f32 to vector<8x128xf32>
    %165 = arith.mulf %164, %163 : vector<8x128xf32>
    %166 = vector.extract_strided_slice %155 {offsets = [0, 128], sizes = [8, 128], strides = [1, 1]} : vector<8x384xf32> to vector<8x128xf32>
    %167 = vector.extract_strided_slice %154 {offsets = [0, 128], sizes = [8, 128], strides = [1, 1]} : vector<8x384xf32> to vector<8x128xf32>
    %168 = arith.addf %166, %167 : vector<8x128xf32>
    %cst_62 = arith.constant 5.000000e-01 : f32
    %169 = vector.broadcast %cst_62 : f32 to vector<8x128xf32>
    %170 = arith.mulf %169, %168 : vector<8x128xf32>
    %171 = math.tanh %170 : vector<8x128xf32>
    %cst_63 = arith.constant 1.000000e+00 : f32
    %172 = vector.broadcast %cst_63 : f32 to vector<8x128xf32>
    %173 = arith.addf %171, %172 : vector<8x128xf32>
    %cst_64 = arith.constant 5.000000e-01 : f32
    %174 = vector.broadcast %cst_64 : f32 to vector<8x128xf32>
    %175 = arith.mulf %174, %173 : vector<8x128xf32>
    %176 = vector.extract_strided_slice %155 {offsets = [0, 256], sizes = [8, 128], strides = [1, 1]} : vector<8x384xf32> to vector<8x128xf32>
    %177 = vector.extract_strided_slice %154 {offsets = [0, 256], sizes = [8, 128], strides = [1, 1]} : vector<8x384xf32> to vector<8x128xf32>
    %178 = vector.broadcast %7 : vector<1x128xf32> to vector<8x128xf32>
    %179 = arith.addf %177, %178 : vector<8x128xf32>
    %180 = arith.mulf %165, %179 : vector<8x128xf32>
    %181 = arith.addf %176, %180 : vector<8x128xf32>
    %182 = math.tanh %181 : vector<8x128xf32>
    %183 = arith.subf %99, %182 : vector<8x128xf32>
    %184 = arith.mulf %175, %183 : vector<8x128xf32>
    %185 = arith.addf %182, %184 : vector<8x128xf32>
    %cst_65 = arith.constant 0.000000e+00 : f32
    %186 = vector.shape_cast %152 : vector<8x1xi1> to vector<8x1xi1>
    %187 = vector.broadcast %186 : vector<8x1xi1> to vector<8x128xi1>
    %188 = vector.broadcast %cst_65 : f32 to vector<8x128xf32>
    %189 = arith.select %187, %185, %188 : vector<8x128xi1>, vector<8x128xf32>
    %c6_66 = arith.constant 6 : index
    %c0_67 = arith.constant 0 : index
    %c0_68 = arith.constant 0 : index
    %190 = vector.load %arg9[%c6_66, %c0_67, %c0_68] : memref<8x8x128xf32, #tpu.memory_space<vmem>>, vector<1x8x128xf32>
    %191 = vector.shape_cast %190 : vector<1x8x128xf32> to vector<8x128xf32>
    %192 = vector.shape_cast %189 : vector<8x128xf32> to vector<1x8x128xf32>
    tpu.vector_store %arg9[%c6_66, %c0_67, %c0_68], %192 {strides = array<i32>} : memref<8x8x128xf32, #tpu.memory_space<vmem>>, vector<1x8x128xf32>,
    %c2 = arith.constant 2 : index
    %c0_69 = arith.constant 0 : index
    %c0_70 = arith.constant 0 : index
    %193 = vector.load %arg2[%c2, %c0_69, %c0_70] : memref<8x8x384xbf16, #tpu.memory_space<vmem>>, vector<1x8x384xbf16>
    %194 = vector.shape_cast %193 : vector<1x8x384xbf16> to vector<8x384xbf16>
    %c2_i32 = arith.constant 2 : i32
    %195 = arith.addi %8, %c2_i32 : i32
    %196 = vector.broadcast %195 : i32 to vector<8x1xi32>
    %197 = arith.cmpi sgt, %3, %196 : vector<8x1xi32>
    %198 = arith.truncf %144 : vector<8x128xf32> to vector<8x128xbf16>
    %cst_71 = arith.constant dense<0.000000e+00> : vector<8x384xf32>
    %199 = tpu.matmul %198, %4, %cst_71 {dimension_numbers = #tpu.dot_dimension_numbers<[1], [0], [0], [1], [0, 0, 1, 1], [], []>} : vector<8x128xbf16>, vector<128x384xbf16>, vector<8x384xf32> -> vector<8x384xf32>
    %200 = arith.extf %194 : vector<8x384xbf16> to vector<8x384xf32>
    %201 = vector.extract_strided_slice %200 {offsets = [0, 0], sizes = [8, 128], strides = [1, 1]} : vector<8x384xf32> to vector<8x128xf32>
    %202 = vector.extract_strided_slice %199 {offsets = [0, 0], sizes = [8, 128], strides = [1, 1]} : vector<8x384xf32> to vector<8x128xf32>
    %203 = arith.addf %201, %202 : vector<8x128xf32>
    %cst_72 = arith.constant 5.000000e-01 : f32
    %204 = vector.broadcast %cst_72 : f32 to vector<8x128xf32>
    %205 = arith.mulf %204, %203 : vector<8x128xf32>
    %206 = math.tanh %205 : vector<8x128xf32>
    %cst_73 = arith.constant 1.000000e+00 : f32
    %207 = vector.broadcast %cst_73 : f32 to vector<8x128xf32>
    %208 = arith.addf %206, %207 : vector<8x128xf32>
    %cst_74 = arith.constant 5.000000e-01 : f32
    %209 = vector.broadcast %cst_74 : f32 to vector<8x128xf32>
    %210 = arith.mulf %209, %208 : vector<8x128xf32>
    %211 = vector.extract_strided_slice %200 {offsets = [0, 128], sizes = [8, 128], strides = [1, 1]} : vector<8x384xf32> to vector<8x128xf32>
    %212 = vector.extract_strided_slice %199 {offsets = [0, 128], sizes = [8, 128], strides = [1, 1]} : vector<8x384xf32> to vector<8x128xf32>
    %213 = arith.addf %211, %212 : vector<8x128xf32>
    %cst_75 = arith.constant 5.000000e-01 : f32
    %214 = vector.broadcast %cst_75 : f32 to vector<8x128xf32>
    %215 = arith.mulf %214, %213 : vector<8x128xf32>
    %216 = math.tanh %215 : vector<8x128xf32>
    %cst_76 = arith.constant 1.000000e+00 : f32
    %217 = vector.broadcast %cst_76 : f32 to vector<8x128xf32>
    %218 = arith.addf %216, %217 : vector<8x128xf32>
    %cst_77 = arith.constant 5.000000e-01 : f32
    %219 = vector.broadcast %cst_77 : f32 to vector<8x128xf32>
    %220 = arith.mulf %219, %218 : vector<8x128xf32>
    %221 = vector.extract_strided_slice %200 {offsets = [0, 256], sizes = [8, 128], strides = [1, 1]} : vector<8x384xf32> to vector<8x128xf32>
    %222 = vector.extract_strided_slice %199 {offsets = [0, 256], sizes = [8, 128], strides = [1, 1]} : vector<8x384xf32> to vector<8x128xf32>
    %223 = vector.broadcast %6 : vector<1x128xf32> to vector<8x128xf32>
    %224 = arith.addf %222, %223 : vector<8x128xf32>
    %225 = arith.mulf %210, %224 : vector<8x128xf32>
    %226 = arith.addf %221, %225 : vector<8x128xf32>
    %227 = math.tanh %226 : vector<8x128xf32>
    %228 = arith.subf %144, %227 : vector<8x128xf32>
    %229 = arith.mulf %220, %228 : vector<8x128xf32>
    %230 = arith.addf %227, %229 : vector<8x128xf32>
    %cst_78 = arith.constant 0.000000e+00 : f32
    %231 = vector.shape_cast %197 : vector<8x1xi1> to vector<8x1xi1>
    %232 = vector.broadcast %231 : vector<8x1xi1> to vector<8x128xi1>
    %233 = vector.broadcast %cst_78 : f32 to vector<8x128xf32>
    %234 = arith.select %232, %230, %233 : vector<8x128xi1>, vector<8x128xf32>
    %c2_79 = arith.constant 2 : index
    %c0_80 = arith.constant 0 : index
    %c0_81 = arith.constant 0 : index
    %235 = vector.load %arg8[%c2_79, %c0_80, %c0_81] : memref<8x8x128xf32, #tpu.memory_space<vmem>>, vector<1x8x128xf32>
    %236 = vector.shape_cast %235 : vector<1x8x128xf32> to vector<8x128xf32>
    %237 = vector.shape_cast %234 : vector<8x128xf32> to vector<1x8x128xf32>
    tpu.vector_store %arg8[%c2_79, %c0_80, %c0_81], %237 {strides = array<i32>} : memref<8x8x128xf32, #tpu.memory_space<vmem>>, vector<1x8x128xf32>,
    %c5 = arith.constant 5 : index
    %c0_82 = arith.constant 0 : index
    %c0_83 = arith.constant 0 : index
    %238 = vector.load %arg3[%c5, %c0_82, %c0_83] : memref<8x8x384xbf16, #tpu.memory_space<vmem>>, vector<1x8x384xbf16>
    %239 = vector.shape_cast %238 : vector<1x8x384xbf16> to vector<8x384xbf16>
    %c5_i32 = arith.constant 5 : i32
    %240 = arith.addi %10, %c5_i32 : i32
    %241 = vector.broadcast %240 : i32 to vector<8x1xi32>
    %242 = arith.cmpi sgt, %3, %241 : vector<8x1xi32>
    %243 = arith.truncf %189 : vector<8x128xf32> to vector<8x128xbf16>
    %cst_84 = arith.constant dense<0.000000e+00> : vector<8x384xf32>
    %244 = tpu.matmul %243, %5, %cst_84 {dimension_numbers = #tpu.dot_dimension_numbers<[1], [0], [0], [1], [0, 0, 1, 1], [], []>} : vector<8x128xbf16>, vector<128x384xbf16>, vector<8x384xf32> -> vector<8x384xf32>
    %245 = arith.extf %239 : vector<8x384xbf16> to vector<8x384xf32>
    %246 = vector.extract_strided_slice %245 {offsets = [0, 0], sizes = [8, 128], strides = [1, 1]} : vector<8x384xf32> to vector<8x128xf32>
    %247 = vector.extract_strided_slice %244 {offsets = [0, 0], sizes = [8, 128], strides = [1, 1]} : vector<8x384xf32> to vector<8x128xf32>
    %248 = arith.addf %246, %247 : vector<8x128xf32>
    %cst_85 = arith.constant 5.000000e-01 : f32
    %249 = vector.broadcast %cst_85 : f32 to vector<8x128xf32>
    %250 = arith.mulf %249, %248 : vector<8x128xf32>
    %251 = math.tanh %250 : vector<8x128xf32>
    %cst_86 = arith.constant 1.000000e+00 : f32
    %252 = vector.broadcast %cst_86 : f32 to vector<8x128xf32>
    %253 = arith.addf %251, %252 : vector<8x128xf32>
    %cst_87 = arith.constant 5.000000e-01 : f32
    %254 = vector.broadcast %cst_87 : f32 to vector<8x128xf32>
    %255 = arith.mulf %254, %253 : vector<8x128xf32>
    %256 = vector.extract_strided_slice %245 {offsets = [0, 128], sizes = [8, 128], strides = [1, 1]} : vector<8x384xf32> to vector<8x128xf32>
    %257 = vector.extract_strided_slice %244 {offsets = [0, 128], sizes = [8, 128], strides = [1, 1]} : vector<8x384xf32> to vector<8x128xf32>
    %258 = arith.addf %256, %257 : vector<8x128xf32>
    %cst_88 = arith.constant 5.000000e-01 : f32
    %259 = vector.broadcast %cst_88 : f32 to vector<8x128xf32>
    %260 = arith.mulf %259, %258 : vector<8x128xf32>
    %261 = math.tanh %260 : vector<8x128xf32>
    %cst_89 = arith.constant 1.000000e+00 : f32
    %262 = vector.broadcast %cst_89 : f32 to vector<8x128xf32>
    %263 = arith.addf %261, %262 : vector<8x128xf32>
    %cst_90 = arith.constant 5.000000e-01 : f32
    %264 = vector.broadcast %cst_90 : f32 to vector<8x128xf32>
    %265 = arith.mulf %264, %263 : vector<8x128xf32>
    %266 = vector.extract_strided_slice %245 {offsets = [0, 256], sizes = [8, 128], strides = [1, 1]} : vector<8x384xf32> to vector<8x128xf32>
    %267 = vector.extract_strided_slice %244 {offsets = [0, 256], sizes = [8, 128], strides = [1, 1]} : vector<8x384xf32> to vector<8x128xf32>
    %268 = vector.broadcast %7 : vector<1x128xf32> to vector<8x128xf32>
    %269 = arith.addf %267, %268 : vector<8x128xf32>
    %270 = arith.mulf %255, %269 : vector<8x128xf32>
    %271 = arith.addf %266, %270 : vector<8x128xf32>
    %272 = math.tanh %271 : vector<8x128xf32>
    %273 = arith.subf %189, %272 : vector<8x128xf32>
    %274 = arith.mulf %265, %273 : vector<8x128xf32>
    %275 = arith.addf %272, %274 : vector<8x128xf32>
    %cst_91 = arith.constant 0.000000e+00 : f32
    %276 = vector.shape_cast %242 : vector<8x1xi1> to vector<8x1xi1>
    %277 = vector.broadcast %276 : vector<8x1xi1> to vector<8x128xi1>
    %278 = vector.broadcast %cst_91 : f32 to vector<8x128xf32>
    %279 = arith.select %277, %275, %278 : vector<8x128xi1>, vector<8x128xf32>
    %c5_92 = arith.constant 5 : index
    %c0_93 = arith.constant 0 : index
    %c0_94 = arith.constant 0 : index
    %280 = vector.load %arg9[%c5_92, %c0_93, %c0_94] : memref<8x8x128xf32, #tpu.memory_space<vmem>>, vector<1x8x128xf32>
    %281 = vector.shape_cast %280 : vector<1x8x128xf32> to vector<8x128xf32>
    %282 = vector.shape_cast %279 : vector<8x128xf32> to vector<1x8x128xf32>
    tpu.vector_store %arg9[%c5_92, %c0_93, %c0_94], %282 {strides = array<i32>} : memref<8x8x128xf32, #tpu.memory_space<vmem>>, vector<1x8x128xf32>,
    %c3 = arith.constant 3 : index
    %c0_95 = arith.constant 0 : index
    %c0_96 = arith.constant 0 : index
    %283 = vector.load %arg2[%c3, %c0_95, %c0_96] : memref<8x8x384xbf16, #tpu.memory_space<vmem>>, vector<1x8x384xbf16>
    %284 = vector.shape_cast %283 : vector<1x8x384xbf16> to vector<8x384xbf16>
    %c3_i32 = arith.constant 3 : i32
    %285 = arith.addi %8, %c3_i32 : i32
    %286 = vector.broadcast %285 : i32 to vector<8x1xi32>
    %287 = arith.cmpi sgt, %3, %286 : vector<8x1xi32>
    %288 = arith.truncf %234 : vector<8x128xf32> to vector<8x128xbf16>
    %cst_97 = arith.constant dense<0.000000e+00> : vector<8x384xf32>
    %289 = tpu.matmul %288, %4, %cst_97 {dimension_numbers = #tpu.dot_dimension_numbers<[1], [0], [0], [1], [0, 0, 1, 1], [], []>} : vector<8x128xbf16>, vector<128x384xbf16>, vector<8x384xf32> -> vector<8x384xf32>
    %290 = arith.extf %284 : vector<8x384xbf16> to vector<8x384xf32>
    %291 = vector.extract_strided_slice %290 {offsets = [0, 0], sizes = [8, 128], strides = [1, 1]} : vector<8x384xf32> to vector<8x128xf32>
    %292 = vector.extract_strided_slice %289 {offsets = [0, 0], sizes = [8, 128], strides = [1, 1]} : vector<8x384xf32> to vector<8x128xf32>
    %293 = arith.addf %291, %292 : vector<8x128xf32>
    %cst_98 = arith.constant 5.000000e-01 : f32
    %294 = vector.broadcast %cst_98 : f32 to vector<8x128xf32>
    %295 = arith.mulf %294, %293 : vector<8x128xf32>
    %296 = math.tanh %295 : vector<8x128xf32>
    %cst_99 = arith.constant 1.000000e+00 : f32
    %297 = vector.broadcast %cst_99 : f32 to vector<8x128xf32>
    %298 = arith.addf %296, %297 : vector<8x128xf32>
    %cst_100 = arith.constant 5.000000e-01 : f32
    %299 = vector.broadcast %cst_100 : f32 to vector<8x128xf32>
    %300 = arith.mulf %299, %298 : vector<8x128xf32>
    %301 = vector.extract_strided_slice %290 {offsets = [0, 128], sizes = [8, 128], strides = [1, 1]} : vector<8x384xf32> to vector<8x128xf32>
    %302 = vector.extract_strided_slice %289 {offsets = [0, 128], sizes = [8, 128], strides = [1, 1]} : vector<8x384xf32> to vector<8x128xf32>
    %303 = arith.addf %301, %302 : vector<8x128xf32>
    %cst_101 = arith.constant 5.000000e-01 : f32
    %304 = vector.broadcast %cst_101 : f32 to vector<8x128xf32>
    %305 = arith.mulf %304, %303 : vector<8x128xf32>
    %306 = math.tanh %305 : vector<8x128xf32>
    %cst_102 = arith.constant 1.000000e+00 : f32
    %307 = vector.broadcast %cst_102 : f32 to vector<8x128xf32>
    %308 = arith.addf %306, %307 : vector<8x128xf32>
    %cst_103 = arith.constant 5.000000e-01 : f32
    %309 = vector.broadcast %cst_103 : f32 to vector<8x128xf32>
    %310 = arith.mulf %309, %308 : vector<8x128xf32>
    %311 = vector.extract_strided_slice %290 {offsets = [0, 256], sizes = [8, 128], strides = [1, 1]} : vector<8x384xf32> to vector<8x128xf32>
    %312 = vector.extract_strided_slice %289 {offsets = [0, 256], sizes = [8, 128], strides = [1, 1]} : vector<8x384xf32> to vector<8x128xf32>
    %313 = vector.broadcast %6 : vector<1x128xf32> to vector<8x128xf32>
    %314 = arith.addf %312, %313 : vector<8x128xf32>
    %315 = arith.mulf %300, %314 : vector<8x128xf32>
    %316 = arith.addf %311, %315 : vector<8x128xf32>
    %317 = math.tanh %316 : vector<8x128xf32>
    %318 = arith.subf %234, %317 : vector<8x128xf32>
    %319 = arith.mulf %310, %318 : vector<8x128xf32>
    %320 = arith.addf %317, %319 : vector<8x128xf32>
    %cst_104 = arith.constant 0.000000e+00 : f32
    %321 = vector.shape_cast %287 : vector<8x1xi1> to vector<8x1xi1>
    %322 = vector.broadcast %321 : vector<8x1xi1> to vector<8x128xi1>
    %323 = vector.broadcast %cst_104 : f32 to vector<8x128xf32>
    %324 = arith.select %322, %320, %323 : vector<8x128xi1>, vector<8x128xf32>
    %c3_105 = arith.constant 3 : index
    %c0_106 = arith.constant 0 : index
    %c0_107 = arith.constant 0 : index
    %325 = vector.load %arg8[%c3_105, %c0_106, %c0_107] : memref<8x8x128xf32, #tpu.memory_space<vmem>>, vector<1x8x128xf32>
    %326 = vector.shape_cast %325 : vector<1x8x128xf32> to vector<8x128xf32>
    %327 = vector.shape_cast %324 : vector<8x128xf32> to vector<1x8x128xf32>
    tpu.vector_store %arg8[%c3_105, %c0_106, %c0_107], %327 {strides = array<i32>} : memref<8x8x128xf32, #tpu.memory_space<vmem>>, vector<1x8x128xf32>,
    %c4 = arith.constant 4 : index
    %c0_108 = arith.constant 0 : index
    %c0_109 = arith.constant 0 : index
    %328 = vector.load %arg3[%c4, %c0_108, %c0_109] : memref<8x8x384xbf16, #tpu.memory_space<vmem>>, vector<1x8x384xbf16>
    %329 = vector.shape_cast %328 : vector<1x8x384xbf16> to vector<8x384xbf16>
    %c4_i32 = arith.constant 4 : i32
    %330 = arith.addi %10, %c4_i32 : i32
    %331 = vector.broadcast %330 : i32 to vector<8x1xi32>
    %332 = arith.cmpi sgt, %3, %331 : vector<8x1xi32>
    %333 = arith.truncf %279 : vector<8x128xf32> to vector<8x128xbf16>
    %cst_110 = arith.constant dense<0.000000e+00> : vector<8x384xf32>
    %334 = tpu.matmul %333, %5, %cst_110 {dimension_numbers = #tpu.dot_dimension_numbers<[1], [0], [0], [1], [0, 0, 1, 1], [], []>} : vector<8x128xbf16>, vector<128x384xbf16>, vector<8x384xf32> -> vector<8x384xf32>
    %335 = arith.extf %329 : vector<8x384xbf16> to vector<8x384xf32>
    %336 = vector.extract_strided_slice %335 {offsets = [0, 0], sizes = [8, 128], strides = [1, 1]} : vector<8x384xf32> to vector<8x128xf32>
    %337 = vector.extract_strided_slice %334 {offsets = [0, 0], sizes = [8, 128], strides = [1, 1]} : vector<8x384xf32> to vector<8x128xf32>
    %338 = arith.addf %336, %337 : vector<8x128xf32>
    %cst_111 = arith.constant 5.000000e-01 : f32
    %339 = vector.broadcast %cst_111 : f32 to vector<8x128xf32>
    %340 = arith.mulf %339, %338 : vector<8x128xf32>
    %341 = math.tanh %340 : vector<8x128xf32>
    %cst_112 = arith.constant 1.000000e+00 : f32
    %342 = vector.broadcast %cst_112 : f32 to vector<8x128xf32>
    %343 = arith.addf %341, %342 : vector<8x128xf32>
    %cst_113 = arith.constant 5.000000e-01 : f32
    %344 = vector.broadcast %cst_113 : f32 to vector<8x128xf32>
    %345 = arith.mulf %344, %343 : vector<8x128xf32>
    %346 = vector.extract_strided_slice %335 {offsets = [0, 128], sizes = [8, 128], strides = [1, 1]} : vector<8x384xf32> to vector<8x128xf32>
    %347 = vector.extract_strided_slice %334 {offsets = [0, 128], sizes = [8, 128], strides = [1, 1]} : vector<8x384xf32> to vector<8x128xf32>
    %348 = arith.addf %346, %347 : vector<8x128xf32>
    %cst_114 = arith.constant 5.000000e-01 : f32
    %349 = vector.broadcast %cst_114 : f32 to vector<8x128xf32>
    %350 = arith.mulf %349, %348 : vector<8x128xf32>
    %351 = math.tanh %350 : vector<8x128xf32>
    %cst_115 = arith.constant 1.000000e+00 : f32
    %352 = vector.broadcast %cst_115 : f32 to vector<8x128xf32>
    %353 = arith.addf %351, %352 : vector<8x128xf32>
    %cst_116 = arith.constant 5.000000e-01 : f32
    %354 = vector.broadcast %cst_116 : f32 to vector<8x128xf32>
    %355 = arith.mulf %354, %353 : vector<8x128xf32>
    %356 = vector.extract_strided_slice %335 {offsets = [0, 256], sizes = [8, 128], strides = [1, 1]} : vector<8x384xf32> to vector<8x128xf32>
    %357 = vector.extract_strided_slice %334 {offsets = [0, 256], sizes = [8, 128], strides = [1, 1]} : vector<8x384xf32> to vector<8x128xf32>
    %358 = vector.broadcast %7 : vector<1x128xf32> to vector<8x128xf32>
    %359 = arith.addf %357, %358 : vector<8x128xf32>
    %360 = arith.mulf %345, %359 : vector<8x128xf32>
    %361 = arith.addf %356, %360 : vector<8x128xf32>
    %362 = math.tanh %361 : vector<8x128xf32>
    %363 = arith.subf %279, %362 : vector<8x128xf32>
    %364 = arith.mulf %355, %363 : vector<8x128xf32>
    %365 = arith.addf %362, %364 : vector<8x128xf32>
    %cst_117 = arith.constant 0.000000e+00 : f32
    %366 = vector.shape_cast %332 : vector<8x1xi1> to vector<8x1xi1>
    %367 = vector.broadcast %366 : vector<8x1xi1> to vector<8x128xi1>
    %368 = vector.broadcast %cst_117 : f32 to vector<8x128xf32>
    %369 = arith.select %367, %365, %368 : vector<8x128xi1>, vector<8x128xf32>
    %c4_118 = arith.constant 4 : index
    %c0_119 = arith.constant 0 : index
    %c0_120 = arith.constant 0 : index
    %370 = vector.load %arg9[%c4_118, %c0_119, %c0_120] : memref<8x8x128xf32, #tpu.memory_space<vmem>>, vector<1x8x128xf32>
    %371 = vector.shape_cast %370 : vector<1x8x128xf32> to vector<8x128xf32>
    %372 = vector.shape_cast %369 : vector<8x128xf32> to vector<1x8x128xf32>
    tpu.vector_store %arg9[%c4_118, %c0_119, %c0_120], %372 {strides = array<i32>} : memref<8x8x128xf32, #tpu.memory_space<vmem>>, vector<1x8x128xf32>,
    %c4_121 = arith.constant 4 : index
    %c0_122 = arith.constant 0 : index
    %c0_123 = arith.constant 0 : index
    %373 = vector.load %arg2[%c4_121, %c0_122, %c0_123] : memref<8x8x384xbf16, #tpu.memory_space<vmem>>, vector<1x8x384xbf16>
    %374 = vector.shape_cast %373 : vector<1x8x384xbf16> to vector<8x384xbf16>
    %c4_i32_124 = arith.constant 4 : i32
    %375 = arith.addi %8, %c4_i32_124 : i32
    %376 = vector.broadcast %375 : i32 to vector<8x1xi32>
    %377 = arith.cmpi sgt, %3, %376 : vector<8x1xi32>
    %378 = arith.truncf %324 : vector<8x128xf32> to vector<8x128xbf16>
    %cst_125 = arith.constant dense<0.000000e+00> : vector<8x384xf32>
    %379 = tpu.matmul %378, %4, %cst_125 {dimension_numbers = #tpu.dot_dimension_numbers<[1], [0], [0], [1], [0, 0, 1, 1], [], []>} : vector<8x128xbf16>, vector<128x384xbf16>, vector<8x384xf32> -> vector<8x384xf32>
    %380 = arith.extf %374 : vector<8x384xbf16> to vector<8x384xf32>
    %381 = vector.extract_strided_slice %380 {offsets = [0, 0], sizes = [8, 128], strides = [1, 1]} : vector<8x384xf32> to vector<8x128xf32>
    %382 = vector.extract_strided_slice %379 {offsets = [0, 0], sizes = [8, 128], strides = [1, 1]} : vector<8x384xf32> to vector<8x128xf32>
    %383 = arith.addf %381, %382 : vector<8x128xf32>
    %cst_126 = arith.constant 5.000000e-01 : f32
    %384 = vector.broadcast %cst_126 : f32 to vector<8x128xf32>
    %385 = arith.mulf %384, %383 : vector<8x128xf32>
    %386 = math.tanh %385 : vector<8x128xf32>
    %cst_127 = arith.constant 1.000000e+00 : f32
    %387 = vector.broadcast %cst_127 : f32 to vector<8x128xf32>
    %388 = arith.addf %386, %387 : vector<8x128xf32>
    %cst_128 = arith.constant 5.000000e-01 : f32
    %389 = vector.broadcast %cst_128 : f32 to vector<8x128xf32>
    %390 = arith.mulf %389, %388 : vector<8x128xf32>
    %391 = vector.extract_strided_slice %380 {offsets = [0, 128], sizes = [8, 128], strides = [1, 1]} : vector<8x384xf32> to vector<8x128xf32>
    %392 = vector.extract_strided_slice %379 {offsets = [0, 128], sizes = [8, 128], strides = [1, 1]} : vector<8x384xf32> to vector<8x128xf32>
    %393 = arith.addf %391, %392 : vector<8x128xf32>
    %cst_129 = arith.constant 5.000000e-01 : f32
    %394 = vector.broadcast %cst_129 : f32 to vector<8x128xf32>
    %395 = arith.mulf %394, %393 : vector<8x128xf32>
    %396 = math.tanh %395 : vector<8x128xf32>
    %cst_130 = arith.constant 1.000000e+00 : f32
    %397 = vector.broadcast %cst_130 : f32 to vector<8x128xf32>
    %398 = arith.addf %396, %397 : vector<8x128xf32>
    %cst_131 = arith.constant 5.000000e-01 : f32
    %399 = vector.broadcast %cst_131 : f32 to vector<8x128xf32>
    %400 = arith.mulf %399, %398 : vector<8x128xf32>
    %401 = vector.extract_strided_slice %380 {offsets = [0, 256], sizes = [8, 128], strides = [1, 1]} : vector<8x384xf32> to vector<8x128xf32>
    %402 = vector.extract_strided_slice %379 {offsets = [0, 256], sizes = [8, 128], strides = [1, 1]} : vector<8x384xf32> to vector<8x128xf32>
    %403 = vector.broadcast %6 : vector<1x128xf32> to vector<8x128xf32>
    %404 = arith.addf %402, %403 : vector<8x128xf32>
    %405 = arith.mulf %390, %404 : vector<8x128xf32>
    %406 = arith.addf %401, %405 : vector<8x128xf32>
    %407 = math.tanh %406 : vector<8x128xf32>
    %408 = arith.subf %324, %407 : vector<8x128xf32>
    %409 = arith.mulf %400, %408 : vector<8x128xf32>
    %410 = arith.addf %407, %409 : vector<8x128xf32>
    %cst_132 = arith.constant 0.000000e+00 : f32
    %411 = vector.shape_cast %377 : vector<8x1xi1> to vector<8x1xi1>
    %412 = vector.broadcast %411 : vector<8x1xi1> to vector<8x128xi1>
    %413 = vector.broadcast %cst_132 : f32 to vector<8x128xf32>
    %414 = arith.select %412, %410, %413 : vector<8x128xi1>, vector<8x128xf32>
    %c4_133 = arith.constant 4 : index
    %c0_134 = arith.constant 0 : index
    %c0_135 = arith.constant 0 : index
    %415 = vector.load %arg8[%c4_133, %c0_134, %c0_135] : memref<8x8x128xf32, #tpu.memory_space<vmem>>, vector<1x8x128xf32>
    %416 = vector.shape_cast %415 : vector<1x8x128xf32> to vector<8x128xf32>
    %417 = vector.shape_cast %414 : vector<8x128xf32> to vector<1x8x128xf32>
    tpu.vector_store %arg8[%c4_133, %c0_134, %c0_135], %417 {strides = array<i32>} : memref<8x8x128xf32, #tpu.memory_space<vmem>>, vector<1x8x128xf32>,
    %c3_136 = arith.constant 3 : index
    %c0_137 = arith.constant 0 : index
    %c0_138 = arith.constant 0 : index
    %418 = vector.load %arg3[%c3_136, %c0_137, %c0_138] : memref<8x8x384xbf16, #tpu.memory_space<vmem>>, vector<1x8x384xbf16>
    %419 = vector.shape_cast %418 : vector<1x8x384xbf16> to vector<8x384xbf16>
    %c3_i32_139 = arith.constant 3 : i32
    %420 = arith.addi %10, %c3_i32_139 : i32
    %421 = vector.broadcast %420 : i32 to vector<8x1xi32>
    %422 = arith.cmpi sgt, %3, %421 : vector<8x1xi32>
    %423 = arith.truncf %369 : vector<8x128xf32> to vector<8x128xbf16>
    %cst_140 = arith.constant dense<0.000000e+00> : vector<8x384xf32>
    %424 = tpu.matmul %423, %5, %cst_140 {dimension_numbers = #tpu.dot_dimension_numbers<[1], [0], [0], [1], [0, 0, 1, 1], [], []>} : vector<8x128xbf16>, vector<128x384xbf16>, vector<8x384xf32> -> vector<8x384xf32>
    %425 = arith.extf %419 : vector<8x384xbf16> to vector<8x384xf32>
    %426 = vector.extract_strided_slice %425 {offsets = [0, 0], sizes = [8, 128], strides = [1, 1]} : vector<8x384xf32> to vector<8x128xf32>
    %427 = vector.extract_strided_slice %424 {offsets = [0, 0], sizes = [8, 128], strides = [1, 1]} : vector<8x384xf32> to vector<8x128xf32>
    %428 = arith.addf %426, %427 : vector<8x128xf32>
    %cst_141 = arith.constant 5.000000e-01 : f32
    %429 = vector.broadcast %cst_141 : f32 to vector<8x128xf32>
    %430 = arith.mulf %429, %428 : vector<8x128xf32>
    %431 = math.tanh %430 : vector<8x128xf32>
    %cst_142 = arith.constant 1.000000e+00 : f32
    %432 = vector.broadcast %cst_142 : f32 to vector<8x128xf32>
    %433 = arith.addf %431, %432 : vector<8x128xf32>
    %cst_143 = arith.constant 5.000000e-01 : f32
    %434 = vector.broadcast %cst_143 : f32 to vector<8x128xf32>
    %435 = arith.mulf %434, %433 : vector<8x128xf32>
    %436 = vector.extract_strided_slice %425 {offsets = [0, 128], sizes = [8, 128], strides = [1, 1]} : vector<8x384xf32> to vector<8x128xf32>
    %437 = vector.extract_strided_slice %424 {offsets = [0, 128], sizes = [8, 128], strides = [1, 1]} : vector<8x384xf32> to vector<8x128xf32>
    %438 = arith.addf %436, %437 : vector<8x128xf32>
    %cst_144 = arith.constant 5.000000e-01 : f32
    %439 = vector.broadcast %cst_144 : f32 to vector<8x128xf32>
    %440 = arith.mulf %439, %438 : vector<8x128xf32>
    %441 = math.tanh %440 : vector<8x128xf32>
    %cst_145 = arith.constant 1.000000e+00 : f32
    %442 = vector.broadcast %cst_145 : f32 to vector<8x128xf32>
    %443 = arith.addf %441, %442 : vector<8x128xf32>
    %cst_146 = arith.constant 5.000000e-01 : f32
    %444 = vector.broadcast %cst_146 : f32 to vector<8x128xf32>
    %445 = arith.mulf %444, %443 : vector<8x128xf32>
    %446 = vector.extract_strided_slice %425 {offsets = [0, 256], sizes = [8, 128], strides = [1, 1]} : vector<8x384xf32> to vector<8x128xf32>
    %447 = vector.extract_strided_slice %424 {offsets = [0, 256], sizes = [8, 128], strides = [1, 1]} : vector<8x384xf32> to vector<8x128xf32>
    %448 = vector.broadcast %7 : vector<1x128xf32> to vector<8x128xf32>
    %449 = arith.addf %447, %448 : vector<8x128xf32>
    %450 = arith.mulf %435, %449 : vector<8x128xf32>
    %451 = arith.addf %446, %450 : vector<8x128xf32>
    %452 = math.tanh %451 : vector<8x128xf32>
    %453 = arith.subf %369, %452 : vector<8x128xf32>
    %454 = arith.mulf %445, %453 : vector<8x128xf32>
    %455 = arith.addf %452, %454 : vector<8x128xf32>
    %cst_147 = arith.constant 0.000000e+00 : f32
    %456 = vector.shape_cast %422 : vector<8x1xi1> to vector<8x1xi1>
    %457 = vector.broadcast %456 : vector<8x1xi1> to vector<8x128xi1>
    %458 = vector.broadcast %cst_147 : f32 to vector<8x128xf32>
    %459 = arith.select %457, %455, %458 : vector<8x128xi1>, vector<8x128xf32>
    %c3_148 = arith.constant 3 : index
    %c0_149 = arith.constant 0 : index
    %c0_150 = arith.constant 0 : index
    %460 = vector.load %arg9[%c3_148, %c0_149, %c0_150] : memref<8x8x128xf32, #tpu.memory_space<vmem>>, vector<1x8x128xf32>
    %461 = vector.shape_cast %460 : vector<1x8x128xf32> to vector<8x128xf32>
    %462 = vector.shape_cast %459 : vector<8x128xf32> to vector<1x8x128xf32>
    tpu.vector_store %arg9[%c3_148, %c0_149, %c0_150], %462 {strides = array<i32>} : memref<8x8x128xf32, #tpu.memory_space<vmem>>, vector<1x8x128xf32>,
    %c5_151 = arith.constant 5 : index
    %c0_152 = arith.constant 0 : index
    %c0_153 = arith.constant 0 : index
    %463 = vector.load %arg2[%c5_151, %c0_152, %c0_153] : memref<8x8x384xbf16, #tpu.memory_space<vmem>>, vector<1x8x384xbf16>
    %464 = vector.shape_cast %463 : vector<1x8x384xbf16> to vector<8x384xbf16>
    %c5_i32_154 = arith.constant 5 : i32
    %465 = arith.addi %8, %c5_i32_154 : i32
    %466 = vector.broadcast %465 : i32 to vector<8x1xi32>
    %467 = arith.cmpi sgt, %3, %466 : vector<8x1xi32>
    %468 = arith.truncf %414 : vector<8x128xf32> to vector<8x128xbf16>
    %cst_155 = arith.constant dense<0.000000e+00> : vector<8x384xf32>
    %469 = tpu.matmul %468, %4, %cst_155 {dimension_numbers = #tpu.dot_dimension_numbers<[1], [0], [0], [1], [0, 0, 1, 1], [], []>} : vector<8x128xbf16>, vector<128x384xbf16>, vector<8x384xf32> -> vector<8x384xf32>
    %470 = arith.extf %464 : vector<8x384xbf16> to vector<8x384xf32>
    %471 = vector.extract_strided_slice %470 {offsets = [0, 0], sizes = [8, 128], strides = [1, 1]} : vector<8x384xf32> to vector<8x128xf32>
    %472 = vector.extract_strided_slice %469 {offsets = [0, 0], sizes = [8, 128], strides = [1, 1]} : vector<8x384xf32> to vector<8x128xf32>
    %473 = arith.addf %471, %472 : vector<8x128xf32>
    %cst_156 = arith.constant 5.000000e-01 : f32
    %474 = vector.broadcast %cst_156 : f32 to vector<8x128xf32>
    %475 = arith.mulf %474, %473 : vector<8x128xf32>
    %476 = math.tanh %475 : vector<8x128xf32>
    %cst_157 = arith.constant 1.000000e+00 : f32
    %477 = vector.broadcast %cst_157 : f32 to vector<8x128xf32>
    %478 = arith.addf %476, %477 : vector<8x128xf32>
    %cst_158 = arith.constant 5.000000e-01 : f32
    %479 = vector.broadcast %cst_158 : f32 to vector<8x128xf32>
    %480 = arith.mulf %479, %478 : vector<8x128xf32>
    %481 = vector.extract_strided_slice %470 {offsets = [0, 128], sizes = [8, 128], strides = [1, 1]} : vector<8x384xf32> to vector<8x128xf32>
    %482 = vector.extract_strided_slice %469 {offsets = [0, 128], sizes = [8, 128], strides = [1, 1]} : vector<8x384xf32> to vector<8x128xf32>
    %483 = arith.addf %481, %482 : vector<8x128xf32>
    %cst_159 = arith.constant 5.000000e-01 : f32
    %484 = vector.broadcast %cst_159 : f32 to vector<8x128xf32>
    %485 = arith.mulf %484, %483 : vector<8x128xf32>
    %486 = math.tanh %485 : vector<8x128xf32>
    %cst_160 = arith.constant 1.000000e+00 : f32
    %487 = vector.broadcast %cst_160 : f32 to vector<8x128xf32>
    %488 = arith.addf %486, %487 : vector<8x128xf32>
    %cst_161 = arith.constant 5.000000e-01 : f32
    %489 = vector.broadcast %cst_161 : f32 to vector<8x128xf32>
    %490 = arith.mulf %489, %488 : vector<8x128xf32>
    %491 = vector.extract_strided_slice %470 {offsets = [0, 256], sizes = [8, 128], strides = [1, 1]} : vector<8x384xf32> to vector<8x128xf32>
    %492 = vector.extract_strided_slice %469 {offsets = [0, 256], sizes = [8, 128], strides = [1, 1]} : vector<8x384xf32> to vector<8x128xf32>
    %493 = vector.broadcast %6 : vector<1x128xf32> to vector<8x128xf32>
    %494 = arith.addf %492, %493 : vector<8x128xf32>
    %495 = arith.mulf %480, %494 : vector<8x128xf32>
    %496 = arith.addf %491, %495 : vector<8x128xf32>
    %497 = math.tanh %496 : vector<8x128xf32>
    %498 = arith.subf %414, %497 : vector<8x128xf32>
    %499 = arith.mulf %490, %498 : vector<8x128xf32>
    %500 = arith.addf %497, %499 : vector<8x128xf32>
    %cst_162 = arith.constant 0.000000e+00 : f32
    %501 = vector.shape_cast %467 : vector<8x1xi1> to vector<8x1xi1>
    %502 = vector.broadcast %501 : vector<8x1xi1> to vector<8x128xi1>
    %503 = vector.broadcast %cst_162 : f32 to vector<8x128xf32>
    %504 = arith.select %502, %500, %503 : vector<8x128xi1>, vector<8x128xf32>
    %c5_163 = arith.constant 5 : index
    %c0_164 = arith.constant 0 : index
    %c0_165 = arith.constant 0 : index
    %505 = vector.load %arg8[%c5_163, %c0_164, %c0_165] : memref<8x8x128xf32, #tpu.memory_space<vmem>>, vector<1x8x128xf32>
    %506 = vector.shape_cast %505 : vector<1x8x128xf32> to vector<8x128xf32>
    %507 = vector.shape_cast %504 : vector<8x128xf32> to vector<1x8x128xf32>
    tpu.vector_store %arg8[%c5_163, %c0_164, %c0_165], %507 {strides = array<i32>} : memref<8x8x128xf32, #tpu.memory_space<vmem>>, vector<1x8x128xf32>,
    %c2_166 = arith.constant 2 : index
    %c0_167 = arith.constant 0 : index
    %c0_168 = arith.constant 0 : index
    %508 = vector.load %arg3[%c2_166, %c0_167, %c0_168] : memref<8x8x384xbf16, #tpu.memory_space<vmem>>, vector<1x8x384xbf16>
    %509 = vector.shape_cast %508 : vector<1x8x384xbf16> to vector<8x384xbf16>
    %c2_i32_169 = arith.constant 2 : i32
    %510 = arith.addi %10, %c2_i32_169 : i32
    %511 = vector.broadcast %510 : i32 to vector<8x1xi32>
    %512 = arith.cmpi sgt, %3, %511 : vector<8x1xi32>
    %513 = arith.truncf %459 : vector<8x128xf32> to vector<8x128xbf16>
    %cst_170 = arith.constant dense<0.000000e+00> : vector<8x384xf32>
    %514 = tpu.matmul %513, %5, %cst_170 {dimension_numbers = #tpu.dot_dimension_numbers<[1], [0], [0], [1], [0, 0, 1, 1], [], []>} : vector<8x128xbf16>, vector<128x384xbf16>, vector<8x384xf32> -> vector<8x384xf32>
    %515 = arith.extf %509 : vector<8x384xbf16> to vector<8x384xf32>
    %516 = vector.extract_strided_slice %515 {offsets = [0, 0], sizes = [8, 128], strides = [1, 1]} : vector<8x384xf32> to vector<8x128xf32>
    %517 = vector.extract_strided_slice %514 {offsets = [0, 0], sizes = [8, 128], strides = [1, 1]} : vector<8x384xf32> to vector<8x128xf32>
    %518 = arith.addf %516, %517 : vector<8x128xf32>
    %cst_171 = arith.constant 5.000000e-01 : f32
    %519 = vector.broadcast %cst_171 : f32 to vector<8x128xf32>
    %520 = arith.mulf %519, %518 : vector<8x128xf32>
    %521 = math.tanh %520 : vector<8x128xf32>
    %cst_172 = arith.constant 1.000000e+00 : f32
    %522 = vector.broadcast %cst_172 : f32 to vector<8x128xf32>
    %523 = arith.addf %521, %522 : vector<8x128xf32>
    %cst_173 = arith.constant 5.000000e-01 : f32
    %524 = vector.broadcast %cst_173 : f32 to vector<8x128xf32>
    %525 = arith.mulf %524, %523 : vector<8x128xf32>
    %526 = vector.extract_strided_slice %515 {offsets = [0, 128], sizes = [8, 128], strides = [1, 1]} : vector<8x384xf32> to vector<8x128xf32>
    %527 = vector.extract_strided_slice %514 {offsets = [0, 128], sizes = [8, 128], strides = [1, 1]} : vector<8x384xf32> to vector<8x128xf32>
    %528 = arith.addf %526, %527 : vector<8x128xf32>
    %cst_174 = arith.constant 5.000000e-01 : f32
    %529 = vector.broadcast %cst_174 : f32 to vector<8x128xf32>
    %530 = arith.mulf %529, %528 : vector<8x128xf32>
    %531 = math.tanh %530 : vector<8x128xf32>
    %cst_175 = arith.constant 1.000000e+00 : f32
    %532 = vector.broadcast %cst_175 : f32 to vector<8x128xf32>
    %533 = arith.addf %531, %532 : vector<8x128xf32>
    %cst_176 = arith.constant 5.000000e-01 : f32
    %534 = vector.broadcast %cst_176 : f32 to vector<8x128xf32>
    %535 = arith.mulf %534, %533 : vector<8x128xf32>
    %536 = vector.extract_strided_slice %515 {offsets = [0, 256], sizes = [8, 128], strides = [1, 1]} : vector<8x384xf32> to vector<8x128xf32>
    %537 = vector.extract_strided_slice %514 {offsets = [0, 256], sizes = [8, 128], strides = [1, 1]} : vector<8x384xf32> to vector<8x128xf32>
    %538 = vector.broadcast %7 : vector<1x128xf32> to vector<8x128xf32>
    %539 = arith.addf %537, %538 : vector<8x128xf32>
    %540 = arith.mulf %525, %539 : vector<8x128xf32>
    %541 = arith.addf %536, %540 : vector<8x128xf32>
    %542 = math.tanh %541 : vector<8x128xf32>
    %543 = arith.subf %459, %542 : vector<8x128xf32>
    %544 = arith.mulf %535, %543 : vector<8x128xf32>
    %545 = arith.addf %542, %544 : vector<8x128xf32>
    %cst_177 = arith.constant 0.000000e+00 : f32
    %546 = vector.shape_cast %512 : vector<8x1xi1> to vector<8x1xi1>
    %547 = vector.broadcast %546 : vector<8x1xi1> to vector<8x128xi1>
    %548 = vector.broadcast %cst_177 : f32 to vector<8x128xf32>
    %549 = arith.select %547, %545, %548 : vector<8x128xi1>, vector<8x128xf32>
    %c2_178 = arith.constant 2 : index
    %c0_179 = arith.constant 0 : index
    %c0_180 = arith.constant 0 : index
    %550 = vector.load %arg9[%c2_178, %c0_179, %c0_180] : memref<8x8x128xf32, #tpu.memory_space<vmem>>, vector<1x8x128xf32>
    %551 = vector.shape_cast %550 : vector<1x8x128xf32> to vector<8x128xf32>
    %552 = vector.shape_cast %549 : vector<8x128xf32> to vector<1x8x128xf32>
    tpu.vector_store %arg9[%c2_178, %c0_179, %c0_180], %552 {strides = array<i32>} : memref<8x8x128xf32, #tpu.memory_space<vmem>>, vector<1x8x128xf32>,
    %c6_181 = arith.constant 6 : index
    %c0_182 = arith.constant 0 : index
    %c0_183 = arith.constant 0 : index
    %553 = vector.load %arg2[%c6_181, %c0_182, %c0_183] : memref<8x8x384xbf16, #tpu.memory_space<vmem>>, vector<1x8x384xbf16>
    %554 = vector.shape_cast %553 : vector<1x8x384xbf16> to vector<8x384xbf16>
    %c6_i32_184 = arith.constant 6 : i32
    %555 = arith.addi %8, %c6_i32_184 : i32
    %556 = vector.broadcast %555 : i32 to vector<8x1xi32>
    %557 = arith.cmpi sgt, %3, %556 : vector<8x1xi32>
    %558 = arith.truncf %504 : vector<8x128xf32> to vector<8x128xbf16>
    %cst_185 = arith.constant dense<0.000000e+00> : vector<8x384xf32>
    %559 = tpu.matmul %558, %4, %cst_185 {dimension_numbers = #tpu.dot_dimension_numbers<[1], [0], [0], [1], [0, 0, 1, 1], [], []>} : vector<8x128xbf16>, vector<128x384xbf16>, vector<8x384xf32> -> vector<8x384xf32>
    %560 = arith.extf %554 : vector<8x384xbf16> to vector<8x384xf32>
    %561 = vector.extract_strided_slice %560 {offsets = [0, 0], sizes = [8, 128], strides = [1, 1]} : vector<8x384xf32> to vector<8x128xf32>
    %562 = vector.extract_strided_slice %559 {offsets = [0, 0], sizes = [8, 128], strides = [1, 1]} : vector<8x384xf32> to vector<8x128xf32>
    %563 = arith.addf %561, %562 : vector<8x128xf32>
    %cst_186 = arith.constant 5.000000e-01 : f32
    %564 = vector.broadcast %cst_186 : f32 to vector<8x128xf32>
    %565 = arith.mulf %564, %563 : vector<8x128xf32>
    %566 = math.tanh %565 : vector<8x128xf32>
    %cst_187 = arith.constant 1.000000e+00 : f32
    %567 = vector.broadcast %cst_187 : f32 to vector<8x128xf32>
    %568 = arith.addf %566, %567 : vector<8x128xf32>
    %cst_188 = arith.constant 5.000000e-01 : f32
    %569 = vector.broadcast %cst_188 : f32 to vector<8x128xf32>
    %570 = arith.mulf %569, %568 : vector<8x128xf32>
    %571 = vector.extract_strided_slice %560 {offsets = [0, 128], sizes = [8, 128], strides = [1, 1]} : vector<8x384xf32> to vector<8x128xf32>
    %572 = vector.extract_strided_slice %559 {offsets = [0, 128], sizes = [8, 128], strides = [1, 1]} : vector<8x384xf32> to vector<8x128xf32>
    %573 = arith.addf %571, %572 : vector<8x128xf32>
    %cst_189 = arith.constant 5.000000e-01 : f32
    %574 = vector.broadcast %cst_189 : f32 to vector<8x128xf32>
    %575 = arith.mulf %574, %573 : vector<8x128xf32>
    %576 = math.tanh %575 : vector<8x128xf32>
    %cst_190 = arith.constant 1.000000e+00 : f32
    %577 = vector.broadcast %cst_190 : f32 to vector<8x128xf32>
    %578 = arith.addf %576, %577 : vector<8x128xf32>
    %cst_191 = arith.constant 5.000000e-01 : f32
    %579 = vector.broadcast %cst_191 : f32 to vector<8x128xf32>
    %580 = arith.mulf %579, %578 : vector<8x128xf32>
    %581 = vector.extract_strided_slice %560 {offsets = [0, 256], sizes = [8, 128], strides = [1, 1]} : vector<8x384xf32> to vector<8x128xf32>
    %582 = vector.extract_strided_slice %559 {offsets = [0, 256], sizes = [8, 128], strides = [1, 1]} : vector<8x384xf32> to vector<8x128xf32>
    %583 = vector.broadcast %6 : vector<1x128xf32> to vector<8x128xf32>
    %584 = arith.addf %582, %583 : vector<8x128xf32>
    %585 = arith.mulf %570, %584 : vector<8x128xf32>
    %586 = arith.addf %581, %585 : vector<8x128xf32>
    %587 = math.tanh %586 : vector<8x128xf32>
    %588 = arith.subf %504, %587 : vector<8x128xf32>
    %589 = arith.mulf %580, %588 : vector<8x128xf32>
    %590 = arith.addf %587, %589 : vector<8x128xf32>
    %cst_192 = arith.constant 0.000000e+00 : f32
    %591 = vector.shape_cast %557 : vector<8x1xi1> to vector<8x1xi1>
    %592 = vector.broadcast %591 : vector<8x1xi1> to vector<8x128xi1>
    %593 = vector.broadcast %cst_192 : f32 to vector<8x128xf32>
    %594 = arith.select %592, %590, %593 : vector<8x128xi1>, vector<8x128xf32>
    %c6_193 = arith.constant 6 : index
    %c0_194 = arith.constant 0 : index
    %c0_195 = arith.constant 0 : index
    %595 = vector.load %arg8[%c6_193, %c0_194, %c0_195] : memref<8x8x128xf32, #tpu.memory_space<vmem>>, vector<1x8x128xf32>
    %596 = vector.shape_cast %595 : vector<1x8x128xf32> to vector<8x128xf32>
    %597 = vector.shape_cast %594 : vector<8x128xf32> to vector<1x8x128xf32>
    tpu.vector_store %arg8[%c6_193, %c0_194, %c0_195], %597 {strides = array<i32>} : memref<8x8x128xf32, #tpu.memory_space<vmem>>, vector<1x8x128xf32>,
    %c1_196 = arith.constant 1 : index
    %c0_197 = arith.constant 0 : index
    %c0_198 = arith.constant 0 : index
    %598 = vector.load %arg3[%c1_196, %c0_197, %c0_198] : memref<8x8x384xbf16, #tpu.memory_space<vmem>>, vector<1x8x384xbf16>
    %599 = vector.shape_cast %598 : vector<1x8x384xbf16> to vector<8x384xbf16>
    %c1_i32_199 = arith.constant 1 : i32
    %600 = arith.addi %10, %c1_i32_199 : i32
    %601 = vector.broadcast %600 : i32 to vector<8x1xi32>
    %602 = arith.cmpi sgt, %3, %601 : vector<8x1xi32>
    %603 = arith.truncf %549 : vector<8x128xf32> to vector<8x128xbf16>
    %cst_200 = arith.constant dense<0.000000e+00> : vector<8x384xf32>
    %604 = tpu.matmul %603, %5, %cst_200 {dimension_numbers = #tpu.dot_dimension_numbers<[1], [0], [0], [1], [0, 0, 1, 1], [], []>} : vector<8x128xbf16>, vector<128x384xbf16>, vector<8x384xf32> -> vector<8x384xf32>
    %605 = arith.extf %599 : vector<8x384xbf16> to vector<8x384xf32>
    %606 = vector.extract_strided_slice %605 {offsets = [0, 0], sizes = [8, 128], strides = [1, 1]} : vector<8x384xf32> to vector<8x128xf32>
    %607 = vector.extract_strided_slice %604 {offsets = [0, 0], sizes = [8, 128], strides = [1, 1]} : vector<8x384xf32> to vector<8x128xf32>
    %608 = arith.addf %606, %607 : vector<8x128xf32>
    %cst_201 = arith.constant 5.000000e-01 : f32
    %609 = vector.broadcast %cst_201 : f32 to vector<8x128xf32>
    %610 = arith.mulf %609, %608 : vector<8x128xf32>
    %611 = math.tanh %610 : vector<8x128xf32>
    %cst_202 = arith.constant 1.000000e+00 : f32
    %612 = vector.broadcast %cst_202 : f32 to vector<8x128xf32>
    %613 = arith.addf %611, %612 : vector<8x128xf32>
    %cst_203 = arith.constant 5.000000e-01 : f32
    %614 = vector.broadcast %cst_203 : f32 to vector<8x128xf32>
    %615 = arith.mulf %614, %613 : vector<8x128xf32>
    %616 = vector.extract_strided_slice %605 {offsets = [0, 128], sizes = [8, 128], strides = [1, 1]} : vector<8x384xf32> to vector<8x128xf32>
    %617 = vector.extract_strided_slice %604 {offsets = [0, 128], sizes = [8, 128], strides = [1, 1]} : vector<8x384xf32> to vector<8x128xf32>
    %618 = arith.addf %616, %617 : vector<8x128xf32>
    %cst_204 = arith.constant 5.000000e-01 : f32
    %619 = vector.broadcast %cst_204 : f32 to vector<8x128xf32>
    %620 = arith.mulf %619, %618 : vector<8x128xf32>
    %621 = math.tanh %620 : vector<8x128xf32>
    %cst_205 = arith.constant 1.000000e+00 : f32
    %622 = vector.broadcast %cst_205 : f32 to vector<8x128xf32>
    %623 = arith.addf %621, %622 : vector<8x128xf32>
    %cst_206 = arith.constant 5.000000e-01 : f32
    %624 = vector.broadcast %cst_206 : f32 to vector<8x128xf32>
    %625 = arith.mulf %624, %623 : vector<8x128xf32>
    %626 = vector.extract_strided_slice %605 {offsets = [0, 256], sizes = [8, 128], strides = [1, 1]} : vector<8x384xf32> to vector<8x128xf32>
    %627 = vector.extract_strided_slice %604 {offsets = [0, 256], sizes = [8, 128], strides = [1, 1]} : vector<8x384xf32> to vector<8x128xf32>
    %628 = vector.broadcast %7 : vector<1x128xf32> to vector<8x128xf32>
    %629 = arith.addf %627, %628 : vector<8x128xf32>
    %630 = arith.mulf %615, %629 : vector<8x128xf32>
    %631 = arith.addf %626, %630 : vector<8x128xf32>
    %632 = math.tanh %631 : vector<8x128xf32>
    %633 = arith.subf %549, %632 : vector<8x128xf32>
    %634 = arith.mulf %625, %633 : vector<8x128xf32>
    %635 = arith.addf %632, %634 : vector<8x128xf32>
    %cst_207 = arith.constant 0.000000e+00 : f32
    %636 = vector.shape_cast %602 : vector<8x1xi1> to vector<8x1xi1>
    %637 = vector.broadcast %636 : vector<8x1xi1> to vector<8x128xi1>
    %638 = vector.broadcast %cst_207 : f32 to vector<8x128xf32>
    %639 = arith.select %637, %635, %638 : vector<8x128xi1>, vector<8x128xf32>
    %c1_208 = arith.constant 1 : index
    %c0_209 = arith.constant 0 : index
    %c0_210 = arith.constant 0 : index
    %640 = vector.load %arg9[%c1_208, %c0_209, %c0_210] : memref<8x8x128xf32, #tpu.memory_space<vmem>>, vector<1x8x128xf32>
    %641 = vector.shape_cast %640 : vector<1x8x128xf32> to vector<8x128xf32>
    %642 = vector.shape_cast %639 : vector<8x128xf32> to vector<1x8x128xf32>
    tpu.vector_store %arg9[%c1_208, %c0_209, %c0_210], %642 {strides = array<i32>} : memref<8x8x128xf32, #tpu.memory_space<vmem>>, vector<1x8x128xf32>,
    %c7_211 = arith.constant 7 : index
    %c0_212 = arith.constant 0 : index
    %c0_213 = arith.constant 0 : index
    %643 = vector.load %arg2[%c7_211, %c0_212, %c0_213] : memref<8x8x384xbf16, #tpu.memory_space<vmem>>, vector<1x8x384xbf16>
    %644 = vector.shape_cast %643 : vector<1x8x384xbf16> to vector<8x384xbf16>
    %c7_i32_214 = arith.constant 7 : i32
    %645 = arith.addi %8, %c7_i32_214 : i32
    %646 = vector.broadcast %645 : i32 to vector<8x1xi32>
    %647 = arith.cmpi sgt, %3, %646 : vector<8x1xi32>
    %648 = arith.truncf %594 : vector<8x128xf32> to vector<8x128xbf16>
    %cst_215 = arith.constant dense<0.000000e+00> : vector<8x384xf32>
    %649 = tpu.matmul %648, %4, %cst_215 {dimension_numbers = #tpu.dot_dimension_numbers<[1], [0], [0], [1], [0, 0, 1, 1], [], []>} : vector<8x128xbf16>, vector<128x384xbf16>, vector<8x384xf32> -> vector<8x384xf32>
    %650 = arith.extf %644 : vector<8x384xbf16> to vector<8x384xf32>
    %651 = vector.extract_strided_slice %650 {offsets = [0, 0], sizes = [8, 128], strides = [1, 1]} : vector<8x384xf32> to vector<8x128xf32>
    %652 = vector.extract_strided_slice %649 {offsets = [0, 0], sizes = [8, 128], strides = [1, 1]} : vector<8x384xf32> to vector<8x128xf32>
    %653 = arith.addf %651, %652 : vector<8x128xf32>
    %cst_216 = arith.constant 5.000000e-01 : f32
    %654 = vector.broadcast %cst_216 : f32 to vector<8x128xf32>
    %655 = arith.mulf %654, %653 : vector<8x128xf32>
    %656 = math.tanh %655 : vector<8x128xf32>
    %cst_217 = arith.constant 1.000000e+00 : f32
    %657 = vector.broadcast %cst_217 : f32 to vector<8x128xf32>
    %658 = arith.addf %656, %657 : vector<8x128xf32>
    %cst_218 = arith.constant 5.000000e-01 : f32
    %659 = vector.broadcast %cst_218 : f32 to vector<8x128xf32>
    %660 = arith.mulf %659, %658 : vector<8x128xf32>
    %661 = vector.extract_strided_slice %650 {offsets = [0, 128], sizes = [8, 128], strides = [1, 1]} : vector<8x384xf32> to vector<8x128xf32>
    %662 = vector.extract_strided_slice %649 {offsets = [0, 128], sizes = [8, 128], strides = [1, 1]} : vector<8x384xf32> to vector<8x128xf32>
    %663 = arith.addf %661, %662 : vector<8x128xf32>
    %cst_219 = arith.constant 5.000000e-01 : f32
    %664 = vector.broadcast %cst_219 : f32 to vector<8x128xf32>
    %665 = arith.mulf %664, %663 : vector<8x128xf32>
    %666 = math.tanh %665 : vector<8x128xf32>
    %cst_220 = arith.constant 1.000000e+00 : f32
    %667 = vector.broadcast %cst_220 : f32 to vector<8x128xf32>
    %668 = arith.addf %666, %667 : vector<8x128xf32>
    %cst_221 = arith.constant 5.000000e-01 : f32
    %669 = vector.broadcast %cst_221 : f32 to vector<8x128xf32>
    %670 = arith.mulf %669, %668 : vector<8x128xf32>
    %671 = vector.extract_strided_slice %650 {offsets = [0, 256], sizes = [8, 128], strides = [1, 1]} : vector<8x384xf32> to vector<8x128xf32>
    %672 = vector.extract_strided_slice %649 {offsets = [0, 256], sizes = [8, 128], strides = [1, 1]} : vector<8x384xf32> to vector<8x128xf32>
    %673 = vector.broadcast %6 : vector<1x128xf32> to vector<8x128xf32>
    %674 = arith.addf %672, %673 : vector<8x128xf32>
    %675 = arith.mulf %660, %674 : vector<8x128xf32>
    %676 = arith.addf %671, %675 : vector<8x128xf32>
    %677 = math.tanh %676 : vector<8x128xf32>
    %678 = arith.subf %594, %677 : vector<8x128xf32>
    %679 = arith.mulf %670, %678 : vector<8x128xf32>
    %680 = arith.addf %677, %679 : vector<8x128xf32>
    %cst_222 = arith.constant 0.000000e+00 : f32
    %681 = vector.shape_cast %647 : vector<8x1xi1> to vector<8x1xi1>
    %682 = vector.broadcast %681 : vector<8x1xi1> to vector<8x128xi1>
    %683 = vector.broadcast %cst_222 : f32 to vector<8x128xf32>
    %684 = arith.select %682, %680, %683 : vector<8x128xi1>, vector<8x128xf32>
    %c7_223 = arith.constant 7 : index
    %c0_224 = arith.constant 0 : index
    %c0_225 = arith.constant 0 : index
    %685 = vector.load %arg8[%c7_223, %c0_224, %c0_225] : memref<8x8x128xf32, #tpu.memory_space<vmem>>, vector<1x8x128xf32>
    %686 = vector.shape_cast %685 : vector<1x8x128xf32> to vector<8x128xf32>
    %687 = vector.shape_cast %684 : vector<8x128xf32> to vector<1x8x128xf32>
    tpu.vector_store %arg8[%c7_223, %c0_224, %c0_225], %687 {strides = array<i32>} : memref<8x8x128xf32, #tpu.memory_space<vmem>>, vector<1x8x128xf32>,
    %c0_226 = arith.constant 0 : index
    %c0_227 = arith.constant 0 : index
    %c0_228 = arith.constant 0 : index
    %688 = vector.load %arg3[%c0_226, %c0_227, %c0_228] : memref<8x8x384xbf16, #tpu.memory_space<vmem>>, vector<1x8x384xbf16>
    %689 = vector.shape_cast %688 : vector<1x8x384xbf16> to vector<8x384xbf16>
    %c0_i32_229 = arith.constant 0 : i32
    %690 = arith.addi %10, %c0_i32_229 : i32
    %691 = vector.broadcast %690 : i32 to vector<8x1xi32>
    %692 = arith.cmpi sgt, %3, %691 : vector<8x1xi32>
    %693 = arith.truncf %639 : vector<8x128xf32> to vector<8x128xbf16>
    %cst_230 = arith.constant dense<0.000000e+00> : vector<8x384xf32>
    %694 = tpu.matmul %693, %5, %cst_230 {dimension_numbers = #tpu.dot_dimension_numbers<[1], [0], [0], [1], [0, 0, 1, 1], [], []>} : vector<8x128xbf16>, vector<128x384xbf16>, vector<8x384xf32> -> vector<8x384xf32>
    %695 = arith.extf %689 : vector<8x384xbf16> to vector<8x384xf32>
    %696 = vector.extract_strided_slice %695 {offsets = [0, 0], sizes = [8, 128], strides = [1, 1]} : vector<8x384xf32> to vector<8x128xf32>
    %697 = vector.extract_strided_slice %694 {offsets = [0, 0], sizes = [8, 128], strides = [1, 1]} : vector<8x384xf32> to vector<8x128xf32>
    %698 = arith.addf %696, %697 : vector<8x128xf32>
    %cst_231 = arith.constant 5.000000e-01 : f32
    %699 = vector.broadcast %cst_231 : f32 to vector<8x128xf32>
    %700 = arith.mulf %699, %698 : vector<8x128xf32>
    %701 = math.tanh %700 : vector<8x128xf32>
    %cst_232 = arith.constant 1.000000e+00 : f32
    %702 = vector.broadcast %cst_232 : f32 to vector<8x128xf32>
    %703 = arith.addf %701, %702 : vector<8x128xf32>
    %cst_233 = arith.constant 5.000000e-01 : f32
    %704 = vector.broadcast %cst_233 : f32 to vector<8x128xf32>
    %705 = arith.mulf %704, %703 : vector<8x128xf32>
    %706 = vector.extract_strided_slice %695 {offsets = [0, 128], sizes = [8, 128], strides = [1, 1]} : vector<8x384xf32> to vector<8x128xf32>
    %707 = vector.extract_strided_slice %694 {offsets = [0, 128], sizes = [8, 128], strides = [1, 1]} : vector<8x384xf32> to vector<8x128xf32>
    %708 = arith.addf %706, %707 : vector<8x128xf32>
    %cst_234 = arith.constant 5.000000e-01 : f32
    %709 = vector.broadcast %cst_234 : f32 to vector<8x128xf32>
    %710 = arith.mulf %709, %708 : vector<8x128xf32>
    %711 = math.tanh %710 : vector<8x128xf32>
    %cst_235 = arith.constant 1.000000e+00 : f32
    %712 = vector.broadcast %cst_235 : f32 to vector<8x128xf32>
    %713 = arith.addf %711, %712 : vector<8x128xf32>
    %cst_236 = arith.constant 5.000000e-01 : f32
    %714 = vector.broadcast %cst_236 : f32 to vector<8x128xf32>
    %715 = arith.mulf %714, %713 : vector<8x128xf32>
    %716 = vector.extract_strided_slice %695 {offsets = [0, 256], sizes = [8, 128], strides = [1, 1]} : vector<8x384xf32> to vector<8x128xf32>
    %717 = vector.extract_strided_slice %694 {offsets = [0, 256], sizes = [8, 128], strides = [1, 1]} : vector<8x384xf32> to vector<8x128xf32>
    %718 = vector.broadcast %7 : vector<1x128xf32> to vector<8x128xf32>
    %719 = arith.addf %717, %718 : vector<8x128xf32>
    %720 = arith.mulf %705, %719 : vector<8x128xf32>
    %721 = arith.addf %716, %720 : vector<8x128xf32>
    %722 = math.tanh %721 : vector<8x128xf32>
    %723 = arith.subf %639, %722 : vector<8x128xf32>
    %724 = arith.mulf %715, %723 : vector<8x128xf32>
    %725 = arith.addf %722, %724 : vector<8x128xf32>
    %cst_237 = arith.constant 0.000000e+00 : f32
    %726 = vector.shape_cast %692 : vector<8x1xi1> to vector<8x1xi1>
    %727 = vector.broadcast %726 : vector<8x1xi1> to vector<8x128xi1>
    %728 = vector.broadcast %cst_237 : f32 to vector<8x128xf32>
    %729 = arith.select %727, %725, %728 : vector<8x128xi1>, vector<8x128xf32>
    %c0_238 = arith.constant 0 : index
    %c0_239 = arith.constant 0 : index
    %c0_240 = arith.constant 0 : index
    %730 = vector.load %arg9[%c0_238, %c0_239, %c0_240] : memref<8x8x128xf32, #tpu.memory_space<vmem>>, vector<1x8x128xf32>
    %731 = vector.shape_cast %730 : vector<1x8x128xf32> to vector<8x128xf32>
    %732 = vector.shape_cast %729 : vector<8x128xf32> to vector<1x8x128xf32>
    tpu.vector_store %arg9[%c0_238, %c0_239, %c0_240], %732 {strides = array<i32>} : memref<8x8x128xf32, #tpu.memory_space<vmem>>, vector<1x8x128xf32>,
    %c0_241 = arith.constant 0 : index
    %c0_242 = arith.constant 0 : index
    %733 = vector.load %arg10[%c0_241, %c0_242] : memref<8x128xf32, #tpu.memory_space<vmem>>, vector<8x128xf32>
    tpu.vector_store %arg10[%c0_241, %c0_242], %684 {strides = array<i32>} : memref<8x128xf32, #tpu.memory_space<vmem>>, vector<8x128xf32>,
    %c0_243 = arith.constant 0 : index
    %c0_244 = arith.constant 0 : index
    %734 = vector.load %arg11[%c0_243, %c0_244] : memref<8x128xf32, #tpu.memory_space<vmem>>, vector<8x128xf32>
    tpu.vector_store %arg11[%c0_243, %c0_244], %729 {strides = array<i32>} : memref<8x128xf32, #tpu.memory_space<vmem>>, vector<8x128xf32>,
    return
  }
  func.func @transform_0(%arg0: i32) -> (i32, i32) {
    %c0_i32 = arith.constant 0 : i32
    %c0_i32_0 = arith.constant 0 : i32
    %c0_i32_1 = arith.constant 0 : i32
    return %c0_i32, %c0_i32_0 : i32, i32
  }
  func.func @transform_1(%arg0: i32) -> (i32, i32, i32) {
    %c0_i32 = arith.constant 0 : i32
    %c0_i32_0 = arith.constant 0 : i32
    %c0_i32_1 = arith.constant 0 : i32
    return %arg0, %c0_i32, %c0_i32_0 : i32, i32, i32
  }
  func.func @transform_2(%arg0: i32) -> (i32, i32, i32) {
    %c0_i32 = arith.constant 0 : i32
    %0 = arith.subi %c0_i32, %arg0 : i32
    %c0_i32_0 = arith.constant 0 : i32
    %c0_i32_1 = arith.constant 0 : i32
    %c0_i32_2 = arith.constant 0 : i32
    return %0, %c0_i32_0, %c0_i32_1 : i32, i32, i32
  }
  func.func @transform_3(%arg0: i32) -> (i32, i32) {
    %c0_i32 = arith.constant 0 : i32
    %c0_i32_0 = arith.constant 0 : i32
    %c0_i32_1 = arith.constant 0 : i32
    return %c0_i32, %c0_i32_0 : i32, i32
  }
  func.func @transform_4(%arg0: i32) -> (i32, i32) {
    %c0_i32 = arith.constant 0 : i32
    %c0_i32_0 = arith.constant 0 : i32
    %c0_i32_1 = arith.constant 0 : i32
    return %c0_i32, %c0_i32_0 : i32, i32
  }
  func.func @transform_5(%arg0: i32) -> (i32, i32) {
    %c0_i32 = arith.constant 0 : i32
    %c0_i32_0 = arith.constant 0 : i32
    %c0_i32_1 = arith.constant 0 : i32
    return %c0_i32, %c0_i32_0 : i32, i32
  }
  func.func @transform_6(%arg0: i32) -> (i32, i32) {
    %c0_i32 = arith.constant 0 : i32
    %c0_i32_0 = arith.constant 0 : i32
    %c0_i32_1 = arith.constant 0 : i32
    return %c0_i32, %c0_i32_0 : i32, i32
  }
  func.func @transform_7(%arg0: i32) -> (i32, i32, i32) {
    %c0_i32 = arith.constant 0 : i32
    %c0_i32_0 = arith.constant 0 : i32
    %c0_i32_1 = arith.constant 0 : i32
    return %arg0, %c0_i32, %c0_i32_0 : i32, i32, i32
  }
  func.func @transform_8(%arg0: i32) -> (i32, i32, i32) {
    %c0_i32 = arith.constant 0 : i32
    %0 = arith.subi %c0_i32, %arg0 : i32
    %c0_i32_0 = arith.constant 0 : i32
    %c0_i32_1 = arith.constant 0 : i32
    %c0_i32_2 = arith.constant 0 : i32
    return %0, %c0_i32_0, %c0_i32_1 : i32, i32, i32
  }
}

</mosaic_0001>

<llo_original>
// kernel: encoder_text_forward.5
$region0: #{encoder_text_forward.5}
  #allocation0 [shape = 'u32[]', space=smem, size = 0x4, offset = 0x4, fixed_abs, tag = 'smem constant byte address 0x4 - core index']
  #allocation1 [shape = 'u32[144,128]{1,0:T(1,128)}', space=vmem, size = 0x12000, scoped, tag = 'internal scratch']
  %s0 = inlined_call_operand.vmem [shape: f32[64,128], index: 0, kind: input, shape index: {}]
  %s1 = inlined_call_operand.vmem [shape: f32[64,128], index: 1, kind: input, shape index: {}]
  %s2 = inlined_call_operand.vmem [shape: f32[64,128], index: 2, kind: output, shape index: {}]
  %s3 = sld [smem:[#allocation0]]
  $region18: #{encoder_text_forward.5} parent=0
    _
  %s5 = ssub.s32 1, %s3
  %s6 = scalar_select 0, %s5, %s3
  // Predicated region
  $region2: #{encoder_text_forward.5} parent=0 // pred_check
    _
  $region3: #{encoder_text_forward.5} parent=0 // pred_check_branch
    %8 = sbr.rel (0) target = $region5
  $region4: #{encoder_text_forward.5} parent=0 // pred_region
    _
  $region5: #{encoder_text_forward.5} parent=0 // pred_fallthru
    _
  // Predicated region
  $region6: #{encoder_text_forward.5} parent=0 // pred_check
    _
  $region7: #{encoder_text_forward.5} parent=0 // pred_check_branch
    %10 = sbr.rel (0) target = $region9
  $region8: #{encoder_text_forward.5} parent=0 // pred_region
    _
  $region9: #{encoder_text_forward.5} parent=0 // pred_fallthru
    _
  %v11 = vld [vmem:[%s0] sm:$0xff]
  %v12 = vld [vmem:[%s0 + $0x8] sm:$0xff]
  %v13 = vld [vmem:[%s0 + $0x10] sm:$0xff]
  %v14 = vld [vmem:[%s0 + $0x18] sm:$0xff]
  %v15 = vld [vmem:[%s0 + $0x20] sm:$0xff]
  %v16 = vld [vmem:[%s0 + $0x28] sm:$0xff]
  %v17 = vld [vmem:[%s0 + $0x30] sm:$0xff]
  %v18 = vld [vmem:[%s0 + $0x38] sm:$0xff]
  %v19 = vld [vmem:[%s1] sm:$0xff]
  %v20 = vld [vmem:[%s1 + $0x8] sm:$0xff]
  %v21 = vld [vmem:[%s1 + $0x10] sm:$0xff]
  %v22 = vld [vmem:[%s1 + $0x18] sm:$0xff]
  %v23 = vld [vmem:[%s1 + $0x20] sm:$0xff]
  %v24 = vld [vmem:[%s1 + $0x28] sm:$0xff]
  %v25 = vld [vmem:[%s1 + $0x30] sm:$0xff]
  %v26 = vld [vmem:[%s1 + $0x38] sm:$0xff]
  %v27 = vadd.f32 %v11, %v19
  %v28 = vadd.f32 %v12, %v20
  %v29 = vadd.f32 %v13, %v21
  %v30 = vadd.f32 %v14, %v22
  %v31 = vadd.f32 %v15, %v23
  %v32 = vadd.f32 %v16, %v24
  %v33 = vadd.f32 %v17, %v25
  %v34 = vadd.f32 %v18, %v26
  %v35 = vmul.f32 %v27, 0.5
  %v36 = vmul.f32 %v28, 0.5
  %v37 = vmul.f32 %v29, 0.5
  %v38 = vmul.f32 %v30, 0.5
  %v39 = vmul.f32 %v31, 0.5
  %v40 = vmul.f32 %v32, 0.5
  %v41 = vmul.f32 %v33, 0.5
  %v42 = vmul.f32 %v34, 0.5
  %v43 = vmul.f32 %v35, %v35
  %v44 = vmul.f32 %v36, %v36
  %v45 = vmul.f32 %v37, %v37
  %v46 = vmul.f32 %v38, %v38
  %v47 = vmul.f32 %v39, %v39
  %v48 = vmul.f32 %v40, %v40
  %v49 = vmul.f32 %v41, %v41
  %v50 = vmul.f32 %v42, %v42
  %51 = vadd.xlane.f32.xlu0 %v43
  %v52 = vpop.xlane.xlu0 %51
  %53 = vadd.xlane.f32.xlu0 %v44
  %v54 = vpop.xlane.xlu0 %53
  %55 = vadd.xlane.f32.xlu0 %v45
  %v56 = vpop.xlane.xlu0 %55
  %57 = vadd.xlane.f32.xlu0 %v46
  %v58 = vpop.xlane.xlu0 %57
  %59 = vadd.xlane.f32.xlu0 %v47
  %v60 = vpop.xlane.xlu0 %59
  %61 = vadd.xlane.f32.xlu0 %v48
  %v62 = vpop.xlane.xlu0 %61
  %63 = vadd.xlane.f32.xlu0 %v49
  %v64 = vpop.xlane.xlu0 %63
  %65 = vadd.xlane.f32.xlu0 %v50
  %v66 = vpop.xlane.xlu0 %65
  %v67 = vrsqrt.pop %v52
  %v68 = vmul.f32 %v52, %v67
  %vm69 = vcmp.eq.f32.partialorder %v52, inf
  %v70 = vsel %vm69, %v52, %v68
  %vm71 = vcmp.eq.f32.partialorder %v52, 0.0
  %v72 = vand.u32 %v52, 2147483648
  %v73 = vsel %vm71, %v72, %v70
  %v74 = vrsqrt.pop %v54
  %v75 = vmul.f32 %v54, %v74
  %vm76 = vcmp.eq.f32.partialorder %v54, inf
  %v77 = vsel %vm76, %v54, %v75
  %vm78 = vcmp.eq.f32.partialorder %v54, 0.0
  %v79 = vand.u32 %v54, 2147483648
  %v80 = vsel %vm78, %v79, %v77
  %v81 = vrsqrt.pop %v56
  %v82 = vmul.f32 %v56, %v81
  %vm83 = vcmp.eq.f32.partialorder %v56, inf
  %v84 = vsel %vm83, %v56, %v82
  %vm85 = vcmp.eq.f32.partialorder %v56, 0.0
  %v86 = vand.u32 %v56, 2147483648
  %v87 = vsel %vm85, %v86, %v84
  %v88 = vrsqrt.pop %v58
  %v89 = vmul.f32 %v58, %v88
  %vm90 = vcmp.eq.f32.partialorder %v58, inf
  %v91 = vsel %vm90, %v58, %v89
  %vm92 = vcmp.eq.f32.partialorder %v58, 0.0
  %v93 = vand.u32 %v58, 2147483648
  %v94 = vsel %vm92, %v93, %v91
  %v95 = vrsqrt.pop %v60
  %v96 = vmul.f32 %v60, %v95
  %vm97 = vcmp.eq.f32.partialorder %v60, inf
  %v98 = vsel %vm97, %v60, %v96
  %vm99 = vcmp.eq.f32.partialorder %v60, 0.0
  %v100 = vand.u32 %v60, 2147483648
  %v101 = vsel %vm99, %v100, %v98
  %v102 = vrsqrt.pop %v62
  %v103 = vmul.f32 %v62, %v102
  %vm104 = vcmp.eq.f32.partialorder %v62, inf
  %v105 = vsel %vm104, %v62, %v103
  %vm106 = vcmp.eq.f32.partialorder %v62, 0.0
  %v107 = vand.u32 %v62, 2147483648
  %v108 = vsel %vm106, %v107, %v105
  %v109 = vrsqrt.pop %v64
  %v110 = vmul.f32 %v64, %v109
  %vm111 = vcmp.eq.f32.partialorder %v64, inf
  %v112 = vsel %vm111, %v64, %v110
  %vm113 = vcmp.eq.f32.partialorder %v64, 0.0
  %v114 = vand.u32 %v64, 2147483648
  %v115 = vsel %vm113, %v114, %v112
  %v116 = vrsqrt.pop %v66
  %v117 = vmul.f32 %v66, %v116
  %vm118 = vcmp.eq.f32.partialorder %v66, inf
  %v119 = vsel %vm118, %v66, %v117
  %vm120 = vcmp.eq.f32.partialorder %v66, 0.0
  %v121 = vand.u32 %v66, 2147483648
  %v122 = vsel %vm120, %v121, %v119
  %v123 = vadd.f32 %v73, 1e-08
  %v124 = vadd.f32 %v80, 1e-08
  %v125 = vadd.f32 %v87, 1e-08
  %v126 = vadd.f32 %v94, 1e-08
  %v127 = vadd.f32 %v101, 1e-08
  %v128 = vadd.f32 %v108, 1e-08
  %v129 = vadd.f32 %v115, 1e-08
  %v130 = vadd.f32 %v122, 1e-08
  %v131 = vrcp.pop %v123
  %v132 = vrcp.pop %v124
  %v133 = vrcp.pop %v125
  %v134 = vrcp.pop %v126
  %v135 = vrcp.pop %v127
  %v136 = vrcp.pop %v128
  %v137 = vrcp.pop %v129
  %v138 = vrcp.pop %v130
  %v139 = vmul.f32 %v35, %v131
  %v140 = vmul.f32 %v36, %v132
  %v141 = vmul.f32 %v37, %v133
  %v142 = vmul.f32 %v38, %v134
  %v143 = vmul.f32 %v39, %v135
  %v144 = vmul.f32 %v40, %v136
  %v145 = vmul.f32 %v41, %v137
  %v146 = vmul.f32 %v42, %v138
  %147 = vst [vmem:[%s2] sm:$0xff] %v139
  %148 = vst [vmem:[%s2 + $0x8] sm:$0xff] %v140
  %149 = vst [vmem:[%s2 + $0x10] sm:$0xff] %v141
  %150 = vst [vmem:[%s2 + $0x18] sm:$0xff] %v142
  %151 = vst [vmem:[%s2 + $0x20] sm:$0xff] %v143
  %152 = vst [vmem:[%s2 + $0x28] sm:$0xff] %v144
  %153 = vst [vmem:[%s2 + $0x30] sm:$0xff] %v145
  %154 = vst [vmem:[%s2 + $0x38] sm:$0xff] %v146
  // Predicated region
  $region10: #{encoder_text_forward.5} parent=0 // pred_check
    _
  $region11: #{encoder_text_forward.5} parent=0 // pred_check_branch
    %156 = sbr.rel (0) target = $region13
  $region12: #{encoder_text_forward.5} parent=0 // pred_region
    _
  $region13: #{encoder_text_forward.5} parent=0 // pred_fallthru
    _
  // Predicated region
  $region14: #{encoder_text_forward.5} parent=0 // pred_check
    _
  $region15: #{encoder_text_forward.5} parent=0 // pred_check_branch
    %158 = sbr.rel (0) target = $region17
  $region16: #{encoder_text_forward.5} parent=0 // pred_region
    _
  $region17: #{encoder_text_forward.5} parent=0 // pred_fallthru
    _

// kernel: encoder_text_forward.3
$region0: #{encoder_text_forward.3}
  #allocation0 [shape = 'u32[]', space=smem, size = 0x4, offset = 0x4, fixed_abs, tag = 'smem constant byte address 0x4 - core index']
  #allocation1 [shape = 'u32[144,128]{1,0:T(1,128)}', space=vmem, size = 0x12000, scoped, tag = 'internal scratch']
  #allocation2 [shape = 'f32[8,128]{1,0:T(8,128)}', space=vmem, size = 0x1000, scoped, tag = 'scratch operand']
  #allocation3 [shape = 'f32[8,128]{1,0:T(8,128)}', space=vmem, size = 0x1000, scoped, tag = 'scratch operand']
  %s0 = inlined_call_operand.vmem [shape: s32[8,1], index: 0, kind: input, shape index: {}]
  %s1 = inlined_call_operand.vmem [shape: bf16[8,8,384], index: 1, kind: input, shape index: {}]
  %s2 = inlined_call_operand.vmem [shape: bf16[8,8,384], index: 2, kind: input, shape index: {}]
  %s3 = inlined_call_operand.vmem [shape: bf16[128,384], index: 3, kind: input, shape index: {}]
  %s4 = inlined_call_operand.vmem [shape: f32[1,128], index: 4, kind: input, shape index: {}]
  %s5 = inlined_call_operand.vmem [shape: bf16[128,384], index: 5, kind: input, shape index: {}]
  %s6 = inlined_call_operand.vmem [shape: f32[1,128], index: 6, kind: input, shape index: {}]
  %s7 = inlined_call_operand.vmem [shape: f32[8,8,128], index: 7, kind: output, shape index: {0}]
  %s8 = inlined_call_operand.vmem [shape: f32[8,8,128], index: 8, kind: output, shape index: {1}]
  %9 = xla_tuple %s7, %s8
  %s10 = sld [smem:[#allocation0]]
  $region50: #{encoder_text_forward.3} parent=0
    _
  %s12 = ssub.s32 1, %s10
  %s13 = scalar_select 0, %s12, %s10
  // Predicated region
  $region2: #{encoder_text_forward.3} parent=0 // pred_check
    _
  $region3: #{encoder_text_forward.3} parent=0 // pred_check_branch
    %15 = sbr.rel (0) target = $region5
  $region4: #{encoder_text_forward.3} parent=0 // pred_region
    _
  $region5: #{encoder_text_forward.3} parent=0 // pred_fallthru
    _
  // Predicated region
  $region6: #{encoder_text_forward.3} parent=0 // pred_check
    _
  $region7: #{encoder_text_forward.3} parent=0 // pred_check_branch
    %17 = sbr.rel (0) target = $region9
  $region8: #{encoder_text_forward.3} parent=0 // pred_region
    _
  $region9: #{encoder_text_forward.3} parent=0 // pred_fallthru
    _
  // Predicated region
  $region10: #{encoder_text_forward.3} parent=0 // pred_check
    _
  $region11: #{encoder_text_forward.3} parent=0 // pred_check_branch
    %19 = sbr.rel (0) target = $region13
  $region12: #{encoder_text_forward.3} parent=0 // pred_region
    %s20 = ssub.s32 0, 0
    %s21 = smul.u32 8, %s20
    %p22 = scmp.lt.s32.totalorder %s21, 7
    %s23 = scalar_select %p22, %s21, 7
    %s24 = smul.addr %s23, 3
    %s25 = smul.addr %s24, 4
    %s26 = scalar_lea.vmem %s2, %s25
    %s27 = ssub.s32 0, 0
    %s28 = smul.u32 8, %s27
  $region13: #{encoder_text_forward.3} parent=0 // pred_fallthru
    _
  // Predicated region
  $region14: #{encoder_text_forward.3} parent=0 // pred_check
    _
  $region15: #{encoder_text_forward.3} parent=0 // pred_check_branch
    %30 = sbr.rel (0) target = $region17
  $region16: #{encoder_text_forward.3} parent=0 // pred_region
    _
  $region17: #{encoder_text_forward.3} parent=0 // pred_fallthru
    _
  // Predicated region
  $region18: #{encoder_text_forward.3} parent=0 // pred_check
    _
  $region19: #{encoder_text_forward.3} parent=0 // pred_check_branch
    %32 = sbr.rel (0) target = $region21
  $region20: #{encoder_text_forward.3} parent=0 // pred_region
    _
  $region21: #{encoder_text_forward.3} parent=0 // pred_fallthru
    _
  // Predicated region
  $region22: #{encoder_text_forward.3} parent=0 // pred_check
    _
  $region23: #{encoder_text_forward.3} parent=0 // pred_check_branch
    %34 = sbr.rel (0) target = $region25
  $region24: #{encoder_text_forward.3} parent=0 // pred_region
    _
  $region25: #{encoder_text_forward.3} parent=0 // pred_fallthru
    _
  // Predicated region
  $region26: #{encoder_text_forward.3} parent=0 // pred_check
    _
  $region27: #{encoder_text_forward.3} parent=0 // pred_check_branch
    %36 = sbr.rel (0) target = $region29
  $region28: #{encoder_text_forward.3} parent=0 // pred_region
    _
  $region29: #{encoder_text_forward.3} parent=0 // pred_fallthru
    _
  %s37 = ssub.s32 0, 0
  %s38 = smul.u32 8, %s37
  %p39 = scmp.lt.s32.totalorder %s38, 7
  %s40 = scalar_select %p39, %s38, 7
  %s41 = smul.addr %s40, 3
  %s42 = smul.addr %s41, 4
  %s43 = scalar_lea.vmem %s2, %s42
  %s44 = ssub.s32 0, 0
  %s45 = smul.u32 8, %s44
  %p46 = scmp.lt.s32.totalorder %s45, 7
  %s47 = scalar_select %p46, %s45, 7
  %s48 = smul.addr %s47, 8
  %s49 = scalar_lea.vmem %s8, %s48
  %s50 = ssub.s32 0, 0
  %s51 = smul.u32 8, %s50
  %p52 = scmp.lt.s32.totalorder %s51, 7
  %s53 = scalar_select %p52, %s51, 7
  %s54 = smul.addr %s53, 3
  %s55 = smul.addr %s54, 4
  %s56 = scalar_lea.vmem %s2, %s55
  %s57 = ssub.s32 0, 0
  %s58 = smul.u32 8, %s57
  %s59 = ssub.s32 0, 0
  %s60 = smul.u32 8, %s59
  %p61 = scmp.lt.s32.totalorder %s60, 7
  %s62 = scalar_select %p61, %s60, 7
  %s63 = smul.addr %s62, 8
  %s64 = scalar_lea.vmem %s8, %s63
  %s65 = ssub.s32 0, 0
  %s66 = smul.u32 8, %s65
  %p68 = scmp.eq.s32.totalorder 0, 0
  // Predicated region
  $region30: #{encoder_text_forward.3} parent=0 // pred_check
    %p69 = pneg %p68
  $region31: #{encoder_text_forward.3} parent=0 // pred_check_branch
    %71 = sbr.rel (%p69) target = $region33
  $region32: #{encoder_text_forward.3} parent=0 // pred_region
    %72 = vst [vmem:[#allocation2] sm:$0xff] 0.0
    %73 = vst [vmem:[#allocation3] sm:$0xff] 0.0
  $region33: #{encoder_text_forward.3} parent=0 // pred_fallthru
    _
  %v74 = vld [vmem:[%s0] sm:$0xff]
  %v75 = vld [vmem:[%s3] sm:$0xff]
  %v76 = vld [vmem:[%s3 + $0x8] sm:$0xf]
  %v77 = vld [vmem:[%s3 + $0xc] sm:$0xff]
  %v78 = vld [vmem:[%s3 + $0x14] sm:$0xf]
  %v79 = vld [vmem:[%s3 + $0x18] sm:$0xff]
  %v80 = vld [vmem:[%s3 + $0x20] sm:$0xf]
  %v81 = vld [vmem:[%s3 + $0x24] sm:$0xff]
  %v82 = vld [vmem:[%s3 + $0x2c] sm:$0xf]
  %v83 = vld [vmem:[%s3 + $0x30] sm:$0xff]
  %v84 = vld [vmem:[%s3 + $0x38] sm:$0xf]
  %v85 = vld [vmem:[%s3 + $0x3c] sm:$0xff]
  %v86 = vld [vmem:[%s3 + $0x44] sm:$0xf]
  %v87 = vld [vmem:[%s3 + $0x48] sm:$0xff]
  %v88 = vld [vmem:[%s3 + $0x50] sm:$0xf]
  %v89 = vld [vmem:[%s3 + $0x54] sm:$0xff]
  %v90 = vld [vmem:[%s3 + $0x5c] sm:$0xf]
  %v91 = vld [vmem:[%s3 + $0x60] sm:$0xff]
  %v92 = vld [vmem:[%s3 + $0x68] sm:$0xf]
  %v93 = vld [vmem:[%s3 + $0x6c] sm:$0xff]
  %v94 = vld [vmem:[%s3 + $0x74] sm:$0xf]
  %v95 = vld [vmem:[%s3 + $0x78] sm:$0xff]
  %v96 = vld [vmem:[%s3 + $0x80] sm:$0xf]
  %v97 = vld [vmem:[%s3 + $0x84] sm:$0xff]
  %v98 = vld [vmem:[%s3 + $0x8c] sm:$0xf]
  %v99 = vld [vmem:[%s3 + $0x90] sm:$0xff]
  %v100 = vld [vmem:[%s3 + $0x98] sm:$0xf]
  %v101 = vld [vmem:[%s3 + $0x9c] sm:$0xff]
  %v102 = vld [vmem:[%s3 + $0xa4] sm:$0xf]
  %v103 = vld [vmem:[%s3 + $0xa8] sm:$0xff]
  %v104 = vld [vmem:[%s3 + $0xb0] sm:$0xf]
  %v105 = vld [vmem:[%s3 + $0xb4] sm:$0xff]
  %v106 = vld [vmem:[%s3 + $0xbc] sm:$0xf]
  %v107 = vld [vmem:[%s5] sm:$0xff]
  %v108 = vld [vmem:[%s5 + $0x8] sm:$0xf]
  %v109 = vld [vmem:[%s5 + $0xc] sm:$0xff]
  %v110 = vld [vmem:[%s5 + $0x14] sm:$0xf]
  %v111 = vld [vmem:[%s5 + $0x18] sm:$0xff]
  %v112 = vld [vmem:[%s5 + $0x20] sm:$0xf]
  %v113 = vld [vmem:[%s5 + $0x24] sm:$0xff]
  %v114 = vld [vmem:[%s5 + $0x2c] sm:$0xf]
  %v115 = vld [vmem:[%s5 + $0x30] sm:$0xff]
  %v116 = vld [vmem:[%s5 + $0x38] sm:$0xf]
  %v117 = vld [vmem:[%s5 + $0x3c] sm:$0xff]
  %v118 = vld [vmem:[%s5 + $0x44] sm:$0xf]
  %v119 = vld [vmem:[%s5 + $0x48] sm:$0xff]
  %v120 = vld [vmem:[%s5 + $0x50] sm:$0xf]
  %v121 = vld [vmem:[%s5 + $0x54] sm:$0xff]
  %v122 = vld [vmem:[%s5 + $0x5c] sm:$0xf]
  %v123 = vld [vmem:[%s5 + $0x60] sm:$0xff]
  %v124 = vld [vmem:[%s5 + $0x68] sm:$0xf]
  %v125 = vld [vmem:[%s5 + $0x6c] sm:$0xff]
  %v126 = vld [vmem:[%s5 + $0x74] sm:$0xf]
  %v127 = vld [vmem:[%s5 + $0x78] sm:$0xff]
  %v128 = vld [vmem:[%s5 + $0x80] sm:$0xf]
  %v129 = vld [vmem:[%s5 + $0x84] sm:$0xff]
  %v130 = vld [vmem:[%s5 + $0x8c] sm:$0xf]
  %v131 = vld [vmem:[%s5 + $0x90] sm:$0xff]
  %v132 = vld [vmem:[%s5 + $0x98] sm:$0xf]
  %v133 = vld [vmem:[%s5 + $0x9c] sm:$0xff]
  %v134 = vld [vmem:[%s5 + $0xa4] sm:$0xf]
  %v135 = vld [vmem:[%s5 + $0xa8] sm:$0xff]
  %v136 = vld [vmem:[%s5 + $0xb0] sm:$0xf]
  %v137 = vld [vmem:[%s5 + $0xb4] sm:$0xff]
  %v138 = vld [vmem:[%s5 + $0xbc] sm:$0xf]
  %v139 = vld [vmem:[%s4] sm:$0x1]
  %v140 = vld [vmem:[%s6] sm:$0x1]
  %s141 = smul.u32 0, 8
  %s142 = ssub.s32 0, 0
  %s143 = smul.u32 %s142, 8
  %v144 = vld [vmem:[#allocation2] sm:$0xff]
  %v145 = vld [vmem:[#allocation3] sm:$0xff]
  %v146 = vld [vmem:[%s1] sm:$0xff]
  %v147 = vld [vmem:[%s1 + $0x8] sm:$0xf]
  %v148 = vstv %s141
  %vm149 = vcmp.gt.s32.totalorder %v74, %v148
  %v150 = vpack.c.bf16 %v144, %v144
  %v183 = vunpack.c.l.b16 %v75
  %v184 = vunpack.c.h.b16 %v75
  %v185 = vunpack.c.l.b16 %v76
  %v186 = vunpack.c.l.b16 %v77
  %v187 = vunpack.c.h.b16 %v77
  %v188 = vunpack.c.l.b16 %v78
  %v189 = vunpack.c.l.b16 %v79
  %v190 = vunpack.c.h.b16 %v79
  %v191 = vunpack.c.l.b16 %v80
  %v192 = vunpack.c.l.b16 %v81
  %v193 = vunpack.c.h.b16 %v81
  %v194 = vunpack.c.l.b16 %v82
  %v195 = vunpack.c.l.b16 %v83
  %v196 = vunpack.c.h.b16 %v83
  %v197 = vunpack.c.l.b16 %v84
  %v198 = vunpack.c.l.b16 %v85
  %v199 = vunpack.c.h.b16 %v85
  %v200 = vunpack.c.l.b16 %v86
  %v201 = vunpack.c.l.b16 %v87
  %v202 = vunpack.c.h.b16 %v87
  %v203 = vunpack.c.l.b16 %v88
  %v204 = vunpack.c.l.b16 %v89
  %v205 = vunpack.c.h.b16 %v89
  %v206 = vunpack.c.l.b16 %v90
  %v207 = vunpack.c.l.b16 %v91
  %v208 = vunpack.c.h.b16 %v91
  %v209 = vunpack.c.l.b16 %v92
  %v210 = vunpack.c.l.b16 %v93
  %v211 = vunpack.c.h.b16 %v93
  %v212 = vunpack.c.l.b16 %v94
  %v213 = vunpack.c.l.b16 %v95
  %v214 = vunpack.c.h.b16 %v95
  %v215 = vunpack.c.l.b16 %v96
  %v216 = vunpack.c.l.b16 %v97
  %v217 = vunpack.c.h.b16 %v97
  %v218 = vunpack.c.l.b16 %v98
  %v219 = vunpack.c.l.b16 %v99
  %v220 = vunpack.c.h.b16 %v99
  %v221 = vunpack.c.l.b16 %v100
  %v222 = vunpack.c.l.b16 %v101
  %v223 = vunpack.c.h.b16 %v101
  %v224 = vunpack.c.l.b16 %v102
  %v225 = vunpack.c.l.b16 %v103
  %v226 = vunpack.c.h.b16 %v103
  %v227 = vunpack.c.l.b16 %v104
  %v228 = vunpack.c.l.b16 %v105
  %v229 = vunpack.c.h.b16 %v105
  %v230 = vunpack.c.l.b16 %v106
  %v231 = vpack.c.b16 %v186, %v183
  %v232 = vpack.c.b16 %v187, %v184
  %v233 = vpack.c.b16 %v188, %v185
  %v234 = vpack.c.b16 %v192, %v189
  %v235 = vpack.c.b16 %v193, %v190
  %v236 = vpack.c.b16 %v194, %v191
  %v237 = vpack.c.b16 %v198, %v195
  %v238 = vpack.c.b16 %v199, %v196
  %v239 = vpack.c.b16 %v200, %v197
  %v240 = vpack.c.b16 %v204, %v201
  %v241 = vpack.c.b16 %v205, %v202
  %v242 = vpack.c.b16 %v206, %v203
  %v243 = vpack.c.b16 %v210, %v207
  %v244 = vpack.c.b16 %v211, %v208
  %v245 = vpack.c.b16 %v212, %v209
  %v246 = vpack.c.b16 %v216, %v213
  %v247 = vpack.c.b16 %v217, %v214
  %v248 = vpack.c.b16 %v218, %v215
  %v249 = vpack.c.b16 %v222, %v219
  %v250 = vpack.c.b16 %v223, %v220
  %v251 = vpack.c.b16 %v224, %v221
  %v252 = vpack.c.b16 %v228, %v225
  %v253 = vpack.c.b16 %v229, %v226
  %v254 = vpack.c.b16 %v230, %v227
  %279 = vmatprep.subr.bf16.mxu0 %v253
  %280 = vmatpush1.bf16.msra.mxu0 %v252
  %281 = vmatprep.subr.bf16.mxu0 %v250
  %282 = vmatpush1.bf16.msra.mxu0 %v249
  %283 = vmatprep.subr.bf16.mxu0 %v247
  %284 = vmatpush1.bf16.msra.mxu0 %v246
  %285 = vmatprep.subr.bf16.mxu0 %v244
  %286 = vmatpush1.bf16.msra.mxu0 %v243
  %287 = vmatprep.subr.bf16.mxu0 %v241
  %288 = vmatpush1.bf16.msra.mxu0 %v240
  %289 = vmatprep.subr.bf16.mxu0 %v238
  %290 = vmatpush1.bf16.msra.mxu0 %v237
  %291 = vmatprep.subr.bf16.mxu0 %v235
  %292 = vmatpush1.bf16.msra.mxu0 %v234
  %293 = vmatprep.subr.bf16.mxu0 %v232
  %294 = vmatpush1.bf16.msra.mxu0 %v231
  %295 = vmatprep.subr.bf16.mxu0 0
  %296 = vmatpush2.bf16.msra.mxu0 0
  %297 = vmatprep.subr.bf16.mxu0 0
  %298 = vmatpush2.bf16.msra.mxu0 0
  %299 = vmatprep.subr.bf16.mxu0 0
  %300 = vmatpush2.bf16.msra.mxu0 0
  %301 = vmatprep.subr.bf16.mxu0 0
  %302 = vmatpush2.bf16.msra.mxu0 0
  %303 = vmatprep.subr.bf16.mxu0 0
  %304 = vmatpush2.bf16.msra.mxu0 0
  %305 = vmatprep.subr.bf16.mxu0 0
  %306 = vmatpush2.bf16.msra.mxu0 0
  %307 = vmatprep.subr.bf16.mxu0 0
  %308 = vmatpush2.bf16.msra.mxu0 0
  %309 = vmatprep.subr.bf16.mxu0 0
  %310 = vmatpush2.bf16.msra.mxu0 0
  %311 = vmatprep.mubr.bf16.mxu0 0
  %312 = vmatmul.mubr.bf16.gmra.mxu0 %v150
  %v313 = vpop.f32.mrf.mxu0
  %v314 = vadd.f32 0.0, %v313
  %v315 = vpop.f32.mrf.mxu0
  %v316 = vadd.f32 0.0, %v315
  %v317 = vpop.f32.mrf.mxu0
  %v318 = vpop.f32.mrf.mxu0
  %319 = vdwg.mxu0
  %320 = vmatprep.subr.bf16.mxu0 0
  %321 = vmatpush1.bf16.msra.mxu0 %v254
  %322 = vmatprep.subr.bf16.mxu0 0
  %323 = vmatpush1.bf16.msra.mxu0 %v251
  %324 = vmatprep.subr.bf16.mxu0 0
  %325 = vmatpush1.bf16.msra.mxu0 %v248
  %326 = vmatprep.subr.bf16.mxu0 0
  %327 = vmatpush1.bf16.msra.mxu0 %v245
  %328 = vmatprep.subr.bf16.mxu0 0
  %329 = vmatpush1.bf16.msra.mxu0 %v242
  %330 = vmatprep.subr.bf16.mxu0 0
  %331 = vmatpush1.bf16.msra.mxu0 %v239
  %332 = vmatprep.subr.bf16.mxu0 0
  %333 = vmatpush1.bf16.msra.mxu0 %v236
  %334 = vmatprep.subr.bf16.mxu0 0
  %335 = vmatpush1.bf16.msra.mxu0 %v233
  %336 = vmatprep.subr.bf16.mxu0 0
  %337 = vmatpush2.bf16.msra.mxu0 0
  %338 = vmatprep.subr.bf16.mxu0 0
  %339 = vmatpush2.bf16.msra.mxu0 0
  %340 = vmatprep.subr.bf16.mxu0 0
  %341 = vmatpush2.bf16.msra.mxu0 0
  %342 = vmatprep.subr.bf16.mxu0 0
  %343 = vmatpush2.bf16.msra.mxu0 0
  %344 = vmatprep.subr.bf16.mxu0 0
  %345 = vmatpush2.bf16.msra.mxu0 0
  %346 = vmatprep.subr.bf16.mxu0 0
  %347 = vmatpush2.bf16.msra.mxu0 0
  %348 = vmatprep.subr.bf16.mxu0 0
  %349 = vmatpush2.bf16.msra.mxu0 0
  %350 = vmatprep.subr.bf16.mxu0 0
  %351 = vmatpush2.bf16.msra.mxu0 0
  %352 = vmatprep.mubr.bf16.mxu0 0
  %353 = vmatmul.mubr.bf16.gmra.mxu0 %v150
  %v354 = vpop.f32.mrf.mxu0
  %v355 = vadd.f32 0.0, %v354
  %v356 = vpop.f32.mrf.mxu0
  %v357 = vpop.f32.mrf.mxu0
  %v358 = vpop.f32.mrf.mxu0
  %359 = vdwg.mxu0
  %v360 = vunpack.c.l.bf16 %v146
  %v361 = vunpack.c.h.bf16 %v146
  %v362 = vunpack.c.l.bf16 %v147
  %v363 = vadd.f32 %v360, %v314
  %v364 = vmul.f32 %v363, 0.5
  %v365 = vtanh.pop %v364
  %v366 = vadd.f32 %v365, 1.0
  %v367 = vmul.f32 %v366, 0.5
  %v368 = vadd.f32 %v361, %v316
  %v369 = vmul.f32 %v368, 0.5
  %v370 = vtanh.pop %v369
  %v371 = vadd.f32 %v370, 1.0
  %v372 = vmul.f32 %v371, 0.5
  %v374 = vlaneseq
  %v375 = vshrl.u32 %v374, 7
  %v376 = vsub.s32 0, %v375
  %v377 = vrot.slane %v139, %v376
  %v379 = vadd.f32 %v355, %v377
  %v380 = vmul.f32 %v367, %v379
  %v381 = vadd.f32 %v362, %v380
  %v382 = vtanh.pop %v381
  %v383 = vsub.f32 %v144, %v382
  %v384 = vmul.f32 %v372, %v383
  %v385 = vadd.f32 %v382, %v384
  %v386 = vsel %vm149, 1, 0
  %387 = vset.pattern.permute.xlu0 0
  %388 = vperm.xlu0 %387, %v386
  %v389 = vpop.permute.xlu0 %388
  %vm390 = vcmp.eq.s32.totalorder %v389, 1
  %v391 = vsel %vm390, %v385, 0.0
  %392 = vst [vmem:[%s7] sm:$0xff] %v391
  %s393 = scalar_lea.vmem %s56, 84
  %v394 = vld [vmem:[%s393] sm:$0xff]
  %v395 = vld [vmem:[%s393 + $0x8] sm:$0xf]
  %s396 = sadd.s32 %s143, 7
  %v397 = vstv %s396
  %vm398 = vcmp.gt.s32.totalorder %v74, %v397
  %v399 = vpack.c.bf16 %v145, %v145
  %v432 = vunpack.c.l.b16 %v107
  %v433 = vunpack.c.h.b16 %v107
  %v434 = vunpack.c.l.b16 %v108
  %v435 = vunpack.c.l.b16 %v109
  %v436 = vunpack.c.h.b16 %v109
  %v437 = vunpack.c.l.b16 %v110
  %v438 = vunpack.c.l.b16 %v111
  %v439 = vunpack.c.h.b16 %v111
  %v440 = vunpack.c.l.b16 %v112
  %v441 = vunpack.c.l.b16 %v113
  %v442 = vunpack.c.h.b16 %v113
  %v443 = vunpack.c.l.b16 %v114
  %v444 = vunpack.c.l.b16 %v115
  %v445 = vunpack.c.h.b16 %v115
  %v446 = vunpack.c.l.b16 %v116
  %v447 = vunpack.c.l.b16 %v117
  %v448 = vunpack.c.h.b16 %v117
  %v449 = vunpack.c.l.b16 %v118
  %v450 = vunpack.c.l.b16 %v119
  %v451 = vunpack.c.h.b16 %v119
  %v452 = vunpack.c.l.b16 %v120
  %v453 = vunpack.c.l.b16 %v121
  %v454 = vunpack.c.h.b16 %v121
  %v455 = vunpack.c.l.b16 %v122
  %v456 = vunpack.c.l.b16 %v123
  %v457 = vunpack.c.h.b16 %v123
  %v458 = vunpack.c.l.b16 %v124
  %v459 = vunpack.c.l.b16 %v125
  %v460 = vunpack.c.h.b16 %v125
  %v461 = vunpack.c.l.b16 %v126
  %v462 = vunpack.c.l.b16 %v127
  %v463 = vunpack.c.h.b16 %v127
  %v464 = vunpack.c.l.b16 %v128
  %v465 = vunpack.c.l.b16 %v129
  %v466 = vunpack.c.h.b16 %v129
  %v467 = vunpack.c.l.b16 %v130
  %v468 = vunpack.c.l.b16 %v131
  %v469 = vunpack.c.h.b16 %v131
  %v470 = vunpack.c.l.b16 %v132
  %v471 = vunpack.c.l.b16 %v133
  %v472 = vunpack.c.h.b16 %v133
  %v473 = vunpack.c.l.b16 %v134
  %v474 = vunpack.c.l.b16 %v135
  %v475 = vunpack.c.h.b16 %v135
  %v476 = vunpack.c.l.b16 %v136
  %v477 = vunpack.c.l.b16 %v137
  %v478 = vunpack.c.h.b16 %v137
  %v479 = vunpack.c.l.b16 %v138
  %v480 = vpack.c.b16 %v435, %v432
  %v481 = vpack.c.b16 %v436, %v433
  %v482 = vpack.c.b16 %v437, %v434
  %v483 = vpack.c.b16 %v441, %v438
  %v484 = vpack.c.b16 %v442, %v439
  %v485 = vpack.c.b16 %v443, %v440
  %v486 = vpack.c.b16 %v447, %v444
  %v487 = vpack.c.b16 %v448, %v445
  %v488 = vpack.c.b16 %v449, %v446
  %v489 = vpack.c.b16 %v453, %v450
  %v490 = vpack.c.b16 %v454, %v451
  %v491 = vpack.c.b16 %v455, %v452
  %v492 = vpack.c.b16 %v459, %v456
  %v493 = vpack.c.b16 %v460, %v457
  %v494 = vpack.c.b16 %v461, %v458
  %v495 = vpack.c.b16 %v465, %v462
  %v496 = vpack.c.b16 %v466, %v463
  %v497 = vpack.c.b16 %v467, %v464
  %v498 = vpack.c.b16 %v471, %v468
  %v499 = vpack.c.b16 %v472, %v469
  %v500 = vpack.c.b16 %v473, %v470
  %v501 = vpack.c.b16 %v477, %v474
  %v502 = vpack.c.b16 %v478, %v475
  %v503 = vpack.c.b16 %v479, %v476
  %528 = vmatprep.subr.bf16.mxu0 %v502
  %529 = vmatpush1.bf16.msra.mxu0 %v501
  %530 = vmatprep.subr.bf16.mxu0 %v499
  %531 = vmatpush1.bf16.msra.mxu0 %v498
  %532 = vmatprep.subr.bf16.mxu0 %v496
  %533 = vmatpush1.bf16.msra.mxu0 %v495
  %534 = vmatprep.subr.bf16.mxu0 %v493
  %535 = vmatpush1.bf16.msra.mxu0 %v492
  %536 = vmatprep.subr.bf16.mxu0 %v490
  %537 = vmatpush1.bf16.msra.mxu0 %v489
  %538 = vmatprep.subr.bf16.mxu0 %v487
  %539 = vmatpush1.bf16.msra.mxu0 %v486
  %540 = vmatprep.subr.bf16.mxu0 %v484
  %541 = vmatpush1.bf16.msra.mxu0 %v483
  %542 = vmatprep.subr.bf16.mxu0 %v481
  %543 = vmatpush1.bf16.msra.mxu0 %v480
  %544 = vmatprep.subr.bf16.mxu0 0
  %545 = vmatpush2.bf16.msra.mxu0 0
  %546 = vmatprep.subr.bf16.mxu0 0
  %547 = vmatpush2.bf16.msra.mxu0 0
  %548 = vmatprep.subr.bf16.mxu0 0
  %549 = vmatpush2.bf16.msra.mxu0 0
  %550 = vmatprep.subr.bf16.mxu0 0
  %551 = vmatpush2.bf16.msra.mxu0 0
  %552 = vmatprep.subr.bf16.mxu0 0
  %553 = vmatpush2.bf16.msra.mxu0 0
  %554 = vmatprep.subr.bf16.mxu0 0
  %555 = vmatpush2.bf16.msra.mxu0 0
  %556 = vmatprep.subr.bf16.mxu0 0
  %557 = vmatpush2.bf16.msra.mxu0 0
  %558 = vmatprep.subr.bf16.mxu0 0
  %559 = vmatpush2.bf16.msra.mxu0 0
  %560 = vmatprep.mubr.bf16.mxu0 0
  %561 = vmatmul.mubr.bf16.gmra.mxu0 %v399
  %v562 = vpop.f32.mrf.mxu0
  %v563 = vadd.f32 0.0, %v562
  %v564 = vpop.f32.mrf.mxu0
  %v565 = vadd.f32 0.0, %v564
  %v566 = vpop.f32.mrf.mxu0
  %v567 = vpop.f32.mrf.mxu0
  %568 = vdwg.mxu0
  %569 = vmatprep.subr.bf16.mxu0 0
  %570 = vmatpush1.bf16.msra.mxu0 %v503
  %571 = vmatprep.subr.bf16.mxu0 0
  %572 = vmatpush1.bf16.msra.mxu0 %v500
  %573 = vmatprep.subr.bf16.mxu0 0
  %574 = vmatpush1.bf16.msra.mxu0 %v497
  %575 = vmatprep.subr.bf16.mxu0 0
  %576 = vmatpush1.bf16.msra.mxu0 %v494
  %577 = vmatprep.subr.bf16.mxu0 0
  %578 = vmatpush1.bf16.msra.mxu0 %v491
  %579 = vmatprep.subr.bf16.mxu0 0
  %580 = vmatpush1.bf16.msra.mxu0 %v488
  %581 = vmatprep.subr.bf16.mxu0 0
  %582 = vmatpush1.bf16.msra.mxu0 %v485
  %583 = vmatprep.subr.bf16.mxu0 0
  %584 = vmatpush1.bf16.msra.mxu0 %v482
  %585 = vmatprep.subr.bf16.mxu0 0
  %586 = vmatpush2.bf16.msra.mxu0 0
  %587 = vmatprep.subr.bf16.mxu0 0
  %588 = vmatpush2.bf16.msra.mxu0 0
  %589 = vmatprep.subr.bf16.mxu0 0
  %590 = vmatpush2.bf16.msra.mxu0 0
  %591 = vmatprep.subr.bf16.mxu0 0
  %592 = vmatpush2.bf16.msra.mxu0 0
  %593 = vmatprep.subr.bf16.mxu0 0
  %594 = vmatpush2.bf16.msra.mxu0 0
  %595 = vmatprep.subr.bf16.mxu0 0
  %596 = vmatpush2.bf16.msra.mxu0 0
  %597 = vmatprep.subr.bf16.mxu0 0
  %598 = vmatpush2.bf16.msra.mxu0 0
  %599 = vmatprep.subr.bf16.mxu0 0
  %600 = vmatpush2.bf16.msra.mxu0 0
  %601 = vmatprep.mubr.bf16.mxu0 0
  %602 = vmatmul.mubr.bf16.gmra.mxu0 %v399
  %v603 = vpop.f32.mrf.mxu0
  %v604 = vadd.f32 0.0, %v603
  %v605 = vpop.f32.mrf.mxu0
  %v606 = vpop.f32.mrf.mxu0
  %v607 = vpop.f32.mrf.mxu0
  %608 = vdwg.mxu0
  %v609 = vunpack.c.l.bf16 %v394
  %v610 = vunpack.c.h.bf16 %v394
  %v611 = vunpack.c.l.bf16 %v395
  %v612 = vadd.f32 %v609, %v563
  %v613 = vmul.f32 %v612, 0.5
  %v614 = vtanh.pop %v613
  %v615 = vadd.f32 %v614, 1.0
  %v616 = vmul.f32 %v615, 0.5
  %v617 = vadd.f32 %v610, %v565
  %v618 = vmul.f32 %v617, 0.5
  %v619 = vtanh.pop %v618
  %v620 = vadd.f32 %v619, 1.0
  %v621 = vmul.f32 %v620, 0.5
  %v623 = vlaneseq
  %v624 = vshrl.u32 %v623, 7
  %v625 = vsub.s32 0, %v624
  %v626 = vrot.slane %v140, %v625
  %v628 = vadd.f32 %v604, %v626
  %v629 = vmul.f32 %v616, %v628
  %v630 = vadd.f32 %v611, %v629
  %v631 = vtanh.pop %v630
  %v632 = vsub.f32 %v145, %v631
  %v633 = vmul.f32 %v621, %v632
  %v634 = vadd.f32 %v631, %v633
  %v635 = vsel %vm398, 1, 0
  %636 = vset.pattern.permute.xlu0 0
  %637 = vperm.xlu0 %636, %v635
  %v638 = vpop.permute.xlu0 %637
  %vm639 = vcmp.eq.s32.totalorder %v638, 1
  %v640 = vsel %vm639, %v634, 0.0
  %s641 = scalar_lea.vmem %s64, 56
  %642 = vst [vmem:[%s641] sm:$0xff] %v640
  %s643 = scalar_lea.vmem %s1, 12
  %v644 = vld [vmem:[%s643] sm:$0xff]
  %v645 = vld [vmem:[%s643 + $0x8] sm:$0xf]
  %s646 = sadd.s32 %s141, 1
  %v647 = vstv %s646
  %vm648 = vcmp.gt.s32.totalorder %v74, %v647
  %v649 = vpack.c.bf16 %v391, %v391
  %650 = vmatprep.subr.bf16.mxu0 %v253
  %651 = vmatpush1.bf16.msra.mxu0 %v252
  %652 = vmatprep.subr.bf16.mxu0 %v250
  %653 = vmatpush1.bf16.msra.mxu0 %v249
  %654 = vmatprep.subr.bf16.mxu0 %v247
  %655 = vmatpush1.bf16.msra.mxu0 %v246
  %656 = vmatprep.subr.bf16.mxu0 %v244
  %657 = vmatpush1.bf16.msra.mxu0 %v243
  %658 = vmatprep.subr.bf16.mxu0 %v241
  %659 = vmatpush1.bf16.msra.mxu0 %v240
  %660 = vmatprep.subr.bf16.mxu0 %v238
  %661 = vmatpush1.bf16.msra.mxu0 %v237
  %662 = vmatprep.subr.bf16.mxu0 %v235
  %663 = vmatpush1.bf16.msra.mxu0 %v234
  %664 = vmatprep.subr.bf16.mxu0 %v232
  %665 = vmatpush1.bf16.msra.mxu0 %v231
  %666 = vmatprep.subr.bf16.mxu0 0
  %667 = vmatpush2.bf16.msra.mxu0 0
  %668 = vmatprep.subr.bf16.mxu0 0
  %669 = vmatpush2.bf16.msra.mxu0 0
  %670 = vmatprep.subr.bf16.mxu0 0
  %671 = vmatpush2.bf16.msra.mxu0 0
  %672 = vmatprep.subr.bf16.mxu0 0
  %673 = vmatpush2.bf16.msra.mxu0 0
  %674 = vmatprep.subr.bf16.mxu0 0
  %675 = vmatpush2.bf16.msra.mxu0 0
  %676 = vmatprep.subr.bf16.mxu0 0
  %677 = vmatpush2.bf16.msra.mxu0 0
  %678 = vmatprep.subr.bf16.mxu0 0
  %679 = vmatpush2.bf16.msra.mxu0 0
  %680 = vmatprep.subr.bf16.mxu0 0
  %681 = vmatpush2.bf16.msra.mxu0 0
  %682 = vmatprep.mubr.bf16.mxu0 0
  %683 = vmatmul.mubr.bf16.gmra.mxu0 %v649
  %v684 = vpop.f32.mrf.mxu0
  %v685 = vadd.f32 0.0, %v684
  %v686 = vpop.f32.mrf.mxu0
  %v687 = vadd.f32 0.0, %v686
  %v688 = vpop.f32.mrf.mxu0
  %v689 = vpop.f32.mrf.mxu0
  %690 = vdwg.mxu0
  %691 = vmatprep.subr.bf16.mxu0 0
  %692 = vmatpush1.bf16.msra.mxu0 %v254
  %693 = vmatprep.subr.bf16.mxu0 0
  %694 = vmatpush1.bf16.msra.mxu0 %v251
  %695 = vmatprep.subr.bf16.mxu0 0
  %696 = vmatpush1.bf16.msra.mxu0 %v248
  %697 = vmatprep.subr.bf16.mxu0 0
  %698 = vmatpush1.bf16.msra.mxu0 %v245
  %699 = vmatprep.subr.bf16.mxu0 0
  %700 = vmatpush1.bf16.msra.mxu0 %v242
  %701 = vmatprep.subr.bf16.mxu0 0
  %702 = vmatpush1.bf16.msra.mxu0 %v239
  %703 = vmatprep.subr.bf16.mxu0 0
  %704 = vmatpush1.bf16.msra.mxu0 %v236
  %705 = vmatprep.subr.bf16.mxu0 0
  %706 = vmatpush1.bf16.msra.mxu0 %v233
  %707 = vmatprep.subr.bf16.mxu0 0
  %708 = vmatpush2.bf16.msra.mxu0 0
  %709 = vmatprep.subr.bf16.mxu0 0
  %710 = vmatpush2.bf16.msra.mxu0 0
  %711 = vmatprep.subr.bf16.mxu0 0
  %712 = vmatpush2.bf16.msra.mxu0 0
  %713 = vmatprep.subr.bf16.mxu0 0
  %714 = vmatpush2.bf16.msra.mxu0 0
  %715 = vmatprep.subr.bf16.mxu0 0
  %716 = vmatpush2.bf16.msra.mxu0 0
  %717 = vmatprep.subr.bf16.mxu0 0
  %718 = vmatpush2.bf16.msra.mxu0 0
  %719 = vmatprep.subr.bf16.mxu0 0
  %720 = vmatpush2.bf16.msra.mxu0 0
  %721 = vmatprep.subr.bf16.mxu0 0
  %722 = vmatpush2.bf16.msra.mxu0 0
  %723 = vmatprep.mubr.bf16.mxu0 0
  %724 = vmatmul.mubr.bf16.gmra.mxu0 %v649
  %v725 = vpop.f32.mrf.mxu0
  %v726 = vadd.f32 0.0, %v725
  %v727 = vpop.f32.mrf.mxu0
  %v728 = vpop.f32.mrf.mxu0
  %v729 = vpop.f32.mrf.mxu0
  %730 = vdwg.mxu0
  %v731 = vunpack.c.l.bf16 %v644
  %v732 = vunpack.c.h.bf16 %v644
  %v733 = vunpack.c.l.bf16 %v645
  %v734 = vadd.f32 %v731, %v685
  %v735 = vmul.f32 %v734, 0.5
  %v736 = vtanh.pop %v735
  %v737 = vadd.f32 %v736, 1.0
  %v738 = vmul.f32 %v737, 0.5
  %v739 = vadd.f32 %v732, %v687
  %v740 = vmul.f32 %v739, 0.5
  %v741 = vtanh.pop %v740
  %v742 = vadd.f32 %v741, 1.0
  %v743 = vmul.f32 %v742, 0.5
  %v744 = vadd.f32 %v726, %v377
  %v745 = vmul.f32 %v738, %v744
  %v746 = vadd.f32 %v733, %v745
  %v747 = vtanh.pop %v746
  %v748 = vsub.f32 %v391, %v747
  %v749 = vmul.f32 %v743, %v748
  %v750 = vadd.f32 %v747, %v749
  %v751 = vsel %vm648, 1, 0
  %752 = vset.pattern.permute.xlu0 0
  %753 = vperm.xlu0 %752, %v751
  %v754 = vpop.permute.xlu0 %753
  %vm755 = vcmp.eq.s32.totalorder %v754, 1
  %v756 = vsel %vm755, %v750, 0.0
  %s757 = scalar_lea.vmem %s7, 8
  %758 = vst [vmem:[%s757] sm:$0xff] %v756
  %s759 = scalar_lea.vmem %s56, 72
  %v760 = vld [vmem:[%s759] sm:$0xff]
  %v761 = vld [vmem:[%s759 + $0x8] sm:$0xf]
  %s762 = sadd.s32 %s143, 6
  %v763 = vstv %s762
  %vm764 = vcmp.gt.s32.totalorder %v74, %v763
  %v765 = vpack.c.bf16 %v640, %v640
  %766 = vmatprep.subr.bf16.mxu0 %v502
  %767 = vmatpush1.bf16.msra.mxu0 %v501
  %768 = vmatprep.subr.bf16.mxu0 %v499
  %769 = vmatpush1.bf16.msra.mxu0 %v498
  %770 = vmatprep.subr.bf16.mxu0 %v496
  %771 = vmatpush1.bf16.msra.mxu0 %v495
  %772 = vmatprep.subr.bf16.mxu0 %v493
  %773 = vmatpush1.bf16.msra.mxu0 %v492
  %774 = vmatprep.subr.bf16.mxu0 %v490
  %775 = vmatpush1.bf16.msra.mxu0 %v489
  %776 = vmatprep.subr.bf16.mxu0 %v487
  %777 = vmatpush1.bf16.msra.mxu0 %v486
  %778 = vmatprep.subr.bf16.mxu0 %v484
  %779 = vmatpush1.bf16.msra.mxu0 %v483
  %780 = vmatprep.subr.bf16.mxu0 %v481
  %781 = vmatpush1.bf16.msra.mxu0 %v480
  %782 = vmatprep.subr.bf16.mxu0 0
  %783 = vmatpush2.bf16.msra.mxu0 0
  %784 = vmatprep.subr.bf16.mxu0 0
  %785 = vmatpush2.bf16.msra.mxu0 0
  %786 = vmatprep.subr.bf16.mxu0 0
  %787 = vmatpush2.bf16.msra.mxu0 0
  %788 = vmatprep.subr.bf16.mxu0 0
  %789 = vmatpush2.bf16.msra.mxu0 0
  %790 = vmatprep.subr.bf16.mxu0 0
  %791 = vmatpush2.bf16.msra.mxu0 0
  %792 = vmatprep.subr.bf16.mxu0 0
  %793 = vmatpush2.bf16.msra.mxu0 0
  %794 = vmatprep.subr.bf16.mxu0 0
  %795 = vmatpush2.bf16.msra.mxu0 0
  %796 = vmatprep.subr.bf16.mxu0 0
  %797 = vmatpush2.bf16.msra.mxu0 0
  %798 = vmatprep.mubr.bf16.mxu0 0
  %799 = vmatmul.mubr.bf16.gmra.mxu0 %v765
  %v800 = vpop.f32.mrf.mxu0
  %v801 = vadd.f32 0.0, %v800
  %v802 = vpop.f32.mrf.mxu0
  %v803 = vadd.f32 0.0, %v802
  %v804 = vpop.f32.mrf.mxu0
  %v805 = vpop.f32.mrf.mxu0
  %806 = vdwg.mxu0
  %807 = vmatprep.subr.bf16.mxu0 0
  %808 = vmatpush1.bf16.msra.mxu0 %v503
  %809 = vmatprep.subr.bf16.mxu0 0
  %810 = vmatpush1.bf16.msra.mxu0 %v500
  %811 = vmatprep.subr.bf16.mxu0 0
  %812 = vmatpush1.bf16.msra.mxu0 %v497
  %813 = vmatprep.subr.bf16.mxu0 0
  %814 = vmatpush1.bf16.msra.mxu0 %v494
  %815 = vmatprep.subr.bf16.mxu0 0
  %816 = vmatpush1.bf16.msra.mxu0 %v491
  %817 = vmatprep.subr.bf16.mxu0 0
  %818 = vmatpush1.bf16.msra.mxu0 %v488
  %819 = vmatprep.subr.bf16.mxu0 0
  %820 = vmatpush1.bf16.msra.mxu0 %v485
  %821 = vmatprep.subr.bf16.mxu0 0
  %822 = vmatpush1.bf16.msra.mxu0 %v482
  %823 = vmatprep.subr.bf16.mxu0 0
  %824 = vmatpush2.bf16.msra.mxu0 0
  %825 = vmatprep.subr.bf16.mxu0 0
  %826 = vmatpush2.bf16.msra.mxu0 0
  %827 = vmatprep.subr.bf16.mxu0 0
  %828 = vmatpush2.bf16.msra.mxu0 0
  %829 = vmatprep.subr.bf16.mxu0 0
  %830 = vmatpush2.bf16.msra.mxu0 0
  %831 = vmatprep.subr.bf16.mxu0 0
  %832 = vmatpush2.bf16.msra.mxu0 0
  %833 = vmatprep.subr.bf16.mxu0 0
  %834 = vmatpush2.bf16.msra.mxu0 0
  %835 = vmatprep.subr.bf16.mxu0 0
  %836 = vmatpush2.bf16.msra.mxu0 0
  %837 = vmatprep.subr.bf16.mxu0 0
  %838 = vmatpush2.bf16.msra.mxu0 0
  %839 = vmatprep.mubr.bf16.mxu0 0
  %840 = vmatmul.mubr.bf16.gmra.mxu0 %v765
  %v841 = vpop.f32.mrf.mxu0
  %v842 = vadd.f32 0.0, %v841
  %v843 = vpop.f32.mrf.mxu0
  %v844 = vpop.f32.mrf.mxu0
  %v845 = vpop.f32.mrf.mxu0
  %846 = vdwg.mxu0
  %v847 = vunpack.c.l.bf16 %v760
  %v848 = vunpack.c.h.bf16 %v760
  %v849 = vunpack.c.l.bf16 %v761
  %v850 = vadd.f32 %v847, %v801
  %v851 = vmul.f32 %v850, 0.5
  %v852 = vtanh.pop %v851
  %v853 = vadd.f32 %v852, 1.0
  %v854 = vmul.f32 %v853, 0.5
  %v855 = vadd.f32 %v848, %v803
  %v856 = vmul.f32 %v855, 0.5
  %v857 = vtanh.pop %v856
  %v858 = vadd.f32 %v857, 1.0
  %v859 = vmul.f32 %v858, 0.5
  %v860 = vadd.f32 %v842, %v626
  %v861 = vmul.f32 %v854, %v860
  %v862 = vadd.f32 %v849, %v861
  %v863 = vtanh.pop %v862
  %v864 = vsub.f32 %v640, %v863
  %v865 = vmul.f32 %v859, %v864
  %v866 = vadd.f32 %v863, %v865
  %v867 = vsel %vm764, 1, 0
  %868 = vset.pattern.permute.xlu0 0
  %869 = vperm.xlu0 %868, %v867
  %v870 = vpop.permute.xlu0 %869
  %vm871 = vcmp.eq.s32.totalorder %v870, 1
  %v872 = vsel %vm871, %v866, 0.0
  %s873 = scalar_lea.vmem %s64, 48
  %874 = vst [vmem:[%s873] sm:$0xff] %v872
  %s875 = scalar_lea.vmem %s1, 24
  %v876 = vld [vmem:[%s875] sm:$0xff]
  %v877 = vld [vmem:[%s875 + $0x8] sm:$0xf]
  %s878 = sadd.s32 %s141, 2
  %v879 = vstv %s878
  %vm880 = vcmp.gt.s32.totalorder %v74, %v879
  %v881 = vpack.c.bf16 %v756, %v756
  %882 = vmatprep.subr.bf16.mxu0 %v253
  %883 = vmatpush1.bf16.msra.mxu0 %v252
  %884 = vmatprep.subr.bf16.mxu0 %v250
  %885 = vmatpush1.bf16.msra.mxu0 %v249
  %886 = vmatprep.subr.bf16.mxu0 %v247
  %887 = vmatpush1.bf16.msra.mxu0 %v246
  %888 = vmatprep.subr.bf16.mxu0 %v244
  %889 = vmatpush1.bf16.msra.mxu0 %v243
  %890 = vmatprep.subr.bf16.mxu0 %v241
  %891 = vmatpush1.bf16.msra.mxu0 %v240
  %892 = vmatprep.subr.bf16.mxu0 %v238
  %893 = vmatpush1.bf16.msra.mxu0 %v237
  %894 = vmatprep.subr.bf16.mxu0 %v235
  %895 = vmatpush1.bf16.msra.mxu0 %v234
  %896 = vmatprep.subr.bf16.mxu0 %v232
  %897 = vmatpush1.bf16.msra.mxu0 %v231
  %898 = vmatprep.subr.bf16.mxu0 0
  %899 = vmatpush2.bf16.msra.mxu0 0
  %900 = vmatprep.subr.bf16.mxu0 0
  %901 = vmatpush2.bf16.msra.mxu0 0
  %902 = vmatprep.subr.bf16.mxu0 0
  %903 = vmatpush2.bf16.msra.mxu0 0
  %904 = vmatprep.subr.bf16.mxu0 0
  %905 = vmatpush2.bf16.msra.mxu0 0
  %906 = vmatprep.subr.bf16.mxu0 0
  %907 = vmatpush2.bf16.msra.mxu0 0
  %908 = vmatprep.subr.bf16.mxu0 0
  %909 = vmatpush2.bf16.msra.mxu0 0
  %910 = vmatprep.subr.bf16.mxu0 0
  %911 = vmatpush2.bf16.msra.mxu0 0
  %912 = vmatprep.subr.bf16.mxu0 0
  %913 = vmatpush2.bf16.msra.mxu0 0
  %914 = vmatprep.mubr.bf16.mxu0 0
  %915 = vmatmul.mubr.bf16.gmra.mxu0 %v881
  %v916 = vpop.f32.mrf.mxu0
  %v917 = vadd.f32 0.0, %v916
  %v918 = vpop.f32.mrf.mxu0
  %v919 = vadd.f32 0.0, %v918
  %v920 = vpop.f32.mrf.mxu0
  %v921 = vpop.f32.mrf.mxu0
  %922 = vdwg.mxu0
  %923 = vmatprep.subr.bf16.mxu0 0
  %924 = vmatpush1.bf16.msra.mxu0 %v254
  %925 = vmatprep.subr.bf16.mxu0 0
  %926 = vmatpush1.bf16.msra.mxu0 %v251
  %927 = vmatprep.subr.bf16.mxu0 0
  %928 = vmatpush1.bf16.msra.mxu0 %v248
  %929 = vmatprep.subr.bf16.mxu0 0
  %930 = vmatpush1.bf16.msra.mxu0 %v245
  %931 = vmatprep.subr.bf16.mxu0 0
  %932 = vmatpush1.bf16.msra.mxu0 %v242
  %933 = vmatprep.subr.bf16.mxu0 0
  %934 = vmatpush1.bf16.msra.mxu0 %v239
  %935 = vmatprep.subr.bf16.mxu0 0
  %936 = vmatpush1.bf16.msra.mxu0 %v236
  %937 = vmatprep.subr.bf16.mxu0 0
  %938 = vmatpush1.bf16.msra.mxu0 %v233
  %939 = vmatprep.subr.bf16.mxu0 0
  %940 = vmatpush2.bf16.msra.mxu0 0
  %941 = vmatprep.subr.bf16.mxu0 0
  %942 = vmatpush2.bf16.msra.mxu0 0
  %943 = vmatprep.subr.bf16.mxu0 0
  %944 = vmatpush2.bf16.msra.mxu0 0
  %945 = vmatprep.subr.bf16.mxu0 0
  %946 = vmatpush2.bf16.msra.mxu0 0
  %947 = vmatprep.subr.bf16.mxu0 0
  %948 = vmatpush2.bf16.msra.mxu0 0
  %949 = vmatprep.subr.bf16.mxu0 0
  %950 = vmatpush2.bf16.msra.mxu0 0
  %951 = vmatprep.subr.bf16.mxu0 0
  %952 = vmatpush2.bf16.msra.mxu0 0
  %953 = vmatprep.subr.bf16.mxu0 0
  %954 = vmatpush2.bf16.msra.mxu0 0
  %955 = vmatprep.mubr.bf16.mxu0 0
  %956 = vmatmul.mubr.bf16.gmra.mxu0 %v881
  %v957 = vpop.f32.mrf.mxu0
  %v958 = vadd.f32 0.0, %v957
  %v959 = vpop.f32.mrf.mxu0
  %v960 = vpop.f32.mrf.mxu0
  %v961 = vpop.f32.mrf.mxu0
  %962 = vdwg.mxu0
  %v963 = vunpack.c.l.bf16 %v876
  %v964 = vunpack.c.h.bf16 %v876
  %v965 = vunpack.c.l.bf16 %v877
  %v966 = vadd.f32 %v963, %v917
  %v967 = vmul.f32 %v966, 0.5
  %v968 = vtanh.pop %v967
  %v969 = vadd.f32 %v968, 1.0
  %v970 = vmul.f32 %v969, 0.5
  %v971 = vadd.f32 %v964, %v919
  %v972 = vmul.f32 %v971, 0.5
  %v973 = vtanh.pop %v972
  %v974 = vadd.f32 %v973, 1.0
  %v975 = vmul.f32 %v974, 0.5
  %v976 = vadd.f32 %v958, %v377
  %v977 = vmul.f32 %v970, %v976
  %v978 = vadd.f32 %v965, %v977
  %v979 = vtanh.pop %v978
  %v980 = vsub.f32 %v756, %v979
  %v981 = vmul.f32 %v975, %v980
  %v982 = vadd.f32 %v979, %v981
  %v983 = vsel %vm880, 1, 0
  %984 = vset.pattern.permute.xlu0 0
  %985 = vperm.xlu0 %984, %v983
  %v986 = vpop.permute.xlu0 %985
  %vm987 = vcmp.eq.s32.totalorder %v986, 1
  %v988 = vsel %vm987, %v982, 0.0
  %s989 = scalar_lea.vmem %s7, 16
  %990 = vst [vmem:[%s989] sm:$0xff] %v988
  %s991 = scalar_lea.vmem %s56, 60
  %v992 = vld [vmem:[%s991] sm:$0xff]
  %v993 = vld [vmem:[%s991 + $0x8] sm:$0xf]
  %s994 = sadd.s32 %s143, 5
  %v995 = vstv %s994
  %vm996 = vcmp.gt.s32.totalorder %v74, %v995
  %v997 = vpack.c.bf16 %v872, %v872
  %998 = vmatprep.subr.bf16.mxu0 %v502
  %999 = vmatpush1.bf16.msra.mxu0 %v501
  %1000 = vmatprep.subr.bf16.mxu0 %v499
  %1001 = vmatpush1.bf16.msra.mxu0 %v498
  %1002 = vmatprep.subr.bf16.mxu0 %v496
  %1003 = vmatpush1.bf16.msra.mxu0 %v495
  %1004 = vmatprep.subr.bf16.mxu0 %v493
  %1005 = vmatpush1.bf16.msra.mxu0 %v492
  %1006 = vmatprep.subr.bf16.mxu0 %v490
  %1007 = vmatpush1.bf16.msra.mxu0 %v489
  %1008 = vmatprep.subr.bf16.mxu0 %v487
  %1009 = vmatpush1.bf16.msra.mxu0 %v486
  %1010 = vmatprep.subr.bf16.mxu0 %v484
  %1011 = vmatpush1.bf16.msra.mxu0 %v483
  %1012 = vmatprep.subr.bf16.mxu0 %v481
  %1013 = vmatpush1.bf16.msra.mxu0 %v480
  %1014 = vmatprep.subr.bf16.mxu0 0
  %1015 = vmatpush2.bf16.msra.mxu0 0
  %1016 = vmatprep.subr.bf16.mxu0 0
  %1017 = vmatpush2.bf16.msra.mxu0 0
  %1018 = vmatprep.subr.bf16.mxu0 0
  %1019 = vmatpush2.bf16.msra.mxu0 0
  %1020 = vmatprep.subr.bf16.mxu0 0
  %1021 = vmatpush2.bf16.msra.mxu0 0
  %1022 = vmatprep.subr.bf16.mxu0 0
  %1023 = vmatpush2.bf16.msra.mxu0 0
  %1024 = vmatprep.subr.bf16.mxu0 0
  %1025 = vmatpush2.bf16.msra.mxu0 0
  %1026 = vmatprep.subr.bf16.mxu0 0
  %1027 = vmatpush2.bf16.msra.mxu0 0
  %1028 = vmatprep.subr.bf16.mxu0 0
  %1029 = vmatpush2.bf16.msra.mxu0 0
  %1030 = vmatprep.mubr.bf16.mxu0 0
  %1031 = vmatmul.mubr.bf16.gmra.mxu0 %v997
  %v1032 = vpop.f32.mrf.mxu0
  %v1033 = vadd.f32 0.0, %v1032
  %v1034 = vpop.f32.mrf.mxu0
  %v1035 = vadd.f32 0.0, %v1034
  %v1036 = vpop.f32.mrf.mxu0
  %v1037 = vpop.f32.mrf.mxu0
  %1038 = vdwg.mxu0
  %1039 = vmatprep.subr.bf16.mxu0 0
  %1040 = vmatpush1.bf16.msra.mxu0 %v503
  %1041 = vmatprep.subr.bf16.mxu0 0
  %1042 = vmatpush1.bf16.msra.mxu0 %v500
  %1043 = vmatprep.subr.bf16.mxu0 0
  %1044 = vmatpush1.bf16.msra.mxu0 %v497
  %1045 = vmatprep.subr.bf16.mxu0 0
  %1046 = vmatpush1.bf16.msra.mxu0 %v494
  %1047 = vmatprep.subr.bf16.mxu0 0
  %1048 = vmatpush1.bf16.msra.mxu0 %v491
  %1049 = vmatprep.subr.bf16.mxu0 0
  %1050 = vmatpush1.bf16.msra.mxu0 %v488
  %1051 = vmatprep.subr.bf16.mxu0 0
  %1052 = vmatpush1.bf16.msra.mxu0 %v485
  %1053 = vmatprep.subr.bf16.mxu0 0
  %1054 = vmatpush1.bf16.msra.mxu0 %v482
  %1055 = vmatprep.subr.bf16.mxu0 0
  %1056 = vmatpush2.bf16.msra.mxu0 0
  %1057 = vmatprep.subr.bf16.mxu0 0
  %1058 = vmatpush2.bf16.msra.mxu0 0
  %1059 = vmatprep.subr.bf16.mxu0 0
  %1060 = vmatpush2.bf16.msra.mxu0 0
  %1061 = vmatprep.subr.bf16.mxu0 0
  %1062 = vmatpush2.bf16.msra.mxu0 0
  %1063 = vmatprep.subr.bf16.mxu0 0
  %1064 = vmatpush2.bf16.msra.mxu0 0
  %1065 = vmatprep.subr.bf16.mxu0 0
  %1066 = vmatpush2.bf16.msra.mxu0 0
  %1067 = vmatprep.subr.bf16.mxu0 0
  %1068 = vmatpush2.bf16.msra.mxu0 0
  %1069 = vmatprep.subr.bf16.mxu0 0
  %1070 = vmatpush2.bf16.msra.mxu0 0
  %1071 = vmatprep.mubr.bf16.mxu0 0
  %1072 = vmatmul.mubr.bf16.gmra.mxu0 %v997
  %v1073 = vpop.f32.mrf.mxu0
  %v1074 = vadd.f32 0.0, %v1073
  %v1075 = vpop.f32.mrf.mxu0
  %v1076 = vpop.f32.mrf.mxu0
  %v1077 = vpop.f32.mrf.mxu0
  %1078 = vdwg.mxu0
  %v1079 = vunpack.c.l.bf16 %v992
  %v1080 = vunpack.c.h.bf16 %v992
  %v1081 = vunpack.c.l.bf16 %v993
  %v1082 = vadd.f32 %v1079, %v1033
  %v1083 = vmul.f32 %v1082, 0.5
  %v1084 = vtanh.pop %v1083
  %v1085 = vadd.f32 %v1084, 1.0
  %v1086 = vmul.f32 %v1085, 0.5
  %v1087 = vadd.f32 %v1080, %v1035
  %v1088 = vmul.f32 %v1087, 0.5
  %v1089 = vtanh.pop %v1088
  %v1090 = vadd.f32 %v1089, 1.0
  %v1091 = vmul.f32 %v1090, 0.5
  %v1092 = vadd.f32 %v1074, %v626
  %v1093 = vmul.f32 %v1086, %v1092
  %v1094 = vadd.f32 %v1081, %v1093
  %v1095 = vtanh.pop %v1094
  %v1096 = vsub.f32 %v872, %v1095
  %v1097 = vmul.f32 %v1091, %v1096
  %v1098 = vadd.f32 %v1095, %v1097
  %v1099 = vsel %vm996, 1, 0
  %1100 = vset.pattern.permute.xlu0 0
  %1101 = vperm.xlu0 %1100, %v1099
  %v1102 = vpop.permute.xlu0 %1101
  %vm1103 = vcmp.eq.s32.totalorder %v1102, 1
  %v1104 = vsel %vm1103, %v1098, 0.0
  %s1105 = scalar_lea.vmem %s64, 40
  %1106 = vst [vmem:[%s1105] sm:$0xff] %v1104
  %s1107 = scalar_lea.vmem %s1, 36
  %v1108 = vld [vmem:[%s1107] sm:$0xff]
  %v1109 = vld [vmem:[%s1107 + $0x8] sm:$0xf]
  %s1110 = sadd.s32 %s141, 3
  %v1111 = vstv %s1110
  %vm1112 = vcmp.gt.s32.totalorder %v74, %v1111
  %v1113 = vpack.c.bf16 %v988, %v988
  %1114 = vmatprep.subr.bf16.mxu0 %v253
  %1115 = vmatpush1.bf16.msra.mxu0 %v252
  %1116 = vmatprep.subr.bf16.mxu0 %v250
  %1117 = vmatpush1.bf16.msra.mxu0 %v249
  %1118 = vmatprep.subr.bf16.mxu0 %v247
  %1119 = vmatpush1.bf16.msra.mxu0 %v246
  %1120 = vmatprep.subr.bf16.mxu0 %v244
  %1121 = vmatpush1.bf16.msra.mxu0 %v243
  %1122 = vmatprep.subr.bf16.mxu0 %v241
  %1123 = vmatpush1.bf16.msra.mxu0 %v240
  %1124 = vmatprep.subr.bf16.mxu0 %v238
  %1125 = vmatpush1.bf16.msra.mxu0 %v237
  %1126 = vmatprep.subr.bf16.mxu0 %v235
  %1127 = vmatpush1.bf16.msra.mxu0 %v234
  %1128 = vmatprep.subr.bf16.mxu0 %v232
  %1129 = vmatpush1.bf16.msra.mxu0 %v231
  %1130 = vmatprep.subr.bf16.mxu0 0
  %1131 = vmatpush2.bf16.msra.mxu0 0
  %1132 = vmatprep.subr.bf16.mxu0 0
  %1133 = vmatpush2.bf16.msra.mxu0 0
  %1134 = vmatprep.subr.bf16.mxu0 0
  %1135 = vmatpush2.bf16.msra.mxu0 0
  %1136 = vmatprep.subr.bf16.mxu0 0
  %1137 = vmatpush2.bf16.msra.mxu0 0
  %1138 = vmatprep.subr.bf16.mxu0 0
  %1139 = vmatpush2.bf16.msra.mxu0 0
  %1140 = vmatprep.subr.bf16.mxu0 0
  %1141 = vmatpush2.bf16.msra.mxu0 0
  %1142 = vmatprep.subr.bf16.mxu0 0
  %1143 = vmatpush2.bf16.msra.mxu0 0
  %1144 = vmatprep.subr.bf16.mxu0 0
  %1145 = vmatpush2.bf16.msra.mxu0 0
  %1146 = vmatprep.mubr.bf16.mxu0 0
  %1147 = vmatmul.mubr.bf16.gmra.mxu0 %v1113
  %v1148 = vpop.f32.mrf.mxu0
  %v1149 = vadd.f32 0.0, %v1148
  %v1150 = vpop.f32.mrf.mxu0
  %v1151 = vadd.f32 0.0, %v1150
  %v1152 = vpop.f32.mrf.mxu0
  %v1153 = vpop.f32.mrf.mxu0
  %1154 = vdwg.mxu0
  %1155 = vmatprep.subr.bf16.mxu0 0
  %1156 = vmatpush1.bf16.msra.mxu0 %v254
  %1157 = vmatprep.subr.bf16.mxu0 0
  %1158 = vmatpush1.bf16.msra.mxu0 %v251
  %1159 = vmatprep.subr.bf16.mxu0 0
  %1160 = vmatpush1.bf16.msra.mxu0 %v248
  %1161 = vmatprep.subr.bf16.mxu0 0
  %1162 = vmatpush1.bf16.msra.mxu0 %v245
  %1163 = vmatprep.subr.bf16.mxu0 0
  %1164 = vmatpush1.bf16.msra.mxu0 %v242
  %1165 = vmatprep.subr.bf16.mxu0 0
  %1166 = vmatpush1.bf16.msra.mxu0 %v239
  %1167 = vmatprep.subr.bf16.mxu0 0
  %1168 = vmatpush1.bf16.msra.mxu0 %v236
  %1169 = vmatprep.subr.bf16.mxu0 0
  %1170 = vmatpush1.bf16.msra.mxu0 %v233
  %1171 = vmatprep.subr.bf16.mxu0 0
  %1172 = vmatpush2.bf16.msra.mxu0 0
  %1173 = vmatprep.subr.bf16.mxu0 0
  %1174 = vmatpush2.bf16.msra.mxu0 0
  %1175 = vmatprep.subr.bf16.mxu0 0
  %1176 = vmatpush2.bf16.msra.mxu0 0
  %1177 = vmatprep.subr.bf16.mxu0 0
  %1178 = vmatpush2.bf16.msra.mxu0 0
  %1179 = vmatprep.subr.bf16.mxu0 0
  %1180 = vmatpush2.bf16.msra.mxu0 0
  %1181 = vmatprep.subr.bf16.mxu0 0
  %1182 = vmatpush2.bf16.msra.mxu0 0
  %1183 = vmatprep.subr.bf16.mxu0 0
  %1184 = vmatpush2.bf16.msra.mxu0 0
  %1185 = vmatprep.subr.bf16.mxu0 0
  %1186 = vmatpush2.bf16.msra.mxu0 0
  %1187 = vmatprep.mubr.bf16.mxu0 0
  %1188 = vmatmul.mubr.bf16.gmra.mxu0 %v1113
  %v1189 = vpop.f32.mrf.mxu0
  %v1190 = vadd.f32 0.0, %v1189
  %v1191 = vpop.f32.mrf.mxu0
  %v1192 = vpop.f32.mrf.mxu0
  %v1193 = vpop.f32.mrf.mxu0
  %1194 = vdwg.mxu0
  %v1195 = vunpack.c.l.bf16 %v1108
  %v1196 = vunpack.c.h.bf16 %v1108
  %v1197 = vunpack.c.l.bf16 %v1109
  %v1198 = vadd.f32 %v1195, %v1149
  %v1199 = vmul.f32 %v1198, 0.5
  %v1200 = vtanh.pop %v1199
  %v1201 = vadd.f32 %v1200, 1.0
  %v1202 = vmul.f32 %v1201, 0.5
  %v1203 = vadd.f32 %v1196, %v1151
  %v1204 = vmul.f32 %v1203, 0.5
  %v1205 = vtanh.pop %v1204
  %v1206 = vadd.f32 %v1205, 1.0
  %v1207 = vmul.f32 %v1206, 0.5
  %v1208 = vadd.f32 %v1190, %v377
  %v1209 = vmul.f32 %v1202, %v1208
  %v1210 = vadd.f32 %v1197, %v1209
  %v1211 = vtanh.pop %v1210
  %v1212 = vsub.f32 %v988, %v1211
  %v1213 = vmul.f32 %v1207, %v1212
  %v1214 = vadd.f32 %v1211, %v1213
  %v1215 = vsel %vm1112, 1, 0
  %1216 = vset.pattern.permute.xlu0 0
  %1217 = vperm.xlu0 %1216, %v1215
  %v1218 = vpop.permute.xlu0 %1217
  %vm1219 = vcmp.eq.s32.totalorder %v1218, 1
  %v1220 = vsel %vm1219, %v1214, 0.0
  %s1221 = scalar_lea.vmem %s7, 24
  %1222 = vst [vmem:[%s1221] sm:$0xff] %v1220
  %s1223 = scalar_lea.vmem %s56, 48
  %v1224 = vld [vmem:[%s1223] sm:$0xff]
  %v1225 = vld [vmem:[%s1223 + $0x8] sm:$0xf]
  %s1226 = sadd.s32 %s143, 4
  %v1227 = vstv %s1226
  %vm1228 = vcmp.gt.s32.totalorder %v74, %v1227
  %v1229 = vpack.c.bf16 %v1104, %v1104
  %1230 = vmatprep.subr.bf16.mxu0 %v502
  %1231 = vmatpush1.bf16.msra.mxu0 %v501
  %1232 = vmatprep.subr.bf16.mxu0 %v499
  %1233 = vmatpush1.bf16.msra.mxu0 %v498
  %1234 = vmatprep.subr.bf16.mxu0 %v496
  %1235 = vmatpush1.bf16.msra.mxu0 %v495
  %1236 = vmatprep.subr.bf16.mxu0 %v493
  %1237 = vmatpush1.bf16.msra.mxu0 %v492
  %1238 = vmatprep.subr.bf16.mxu0 %v490
  %1239 = vmatpush1.bf16.msra.mxu0 %v489
  %1240 = vmatprep.subr.bf16.mxu0 %v487
  %1241 = vmatpush1.bf16.msra.mxu0 %v486
  %1242 = vmatprep.subr.bf16.mxu0 %v484
  %1243 = vmatpush1.bf16.msra.mxu0 %v483
  %1244 = vmatprep.subr.bf16.mxu0 %v481
  %1245 = vmatpush1.bf16.msra.mxu0 %v480
  %1246 = vmatprep.subr.bf16.mxu0 0
  %1247 = vmatpush2.bf16.msra.mxu0 0
  %1248 = vmatprep.subr.bf16.mxu0 0
  %1249 = vmatpush2.bf16.msra.mxu0 0
  %1250 = vmatprep.subr.bf16.mxu0 0
  %1251 = vmatpush2.bf16.msra.mxu0 0
  %1252 = vmatprep.subr.bf16.mxu0 0
  %1253 = vmatpush2.bf16.msra.mxu0 0
  %1254 = vmatprep.subr.bf16.mxu0 0
  %1255 = vmatpush2.bf16.msra.mxu0 0
  %1256 = vmatprep.subr.bf16.mxu0 0
  %1257 = vmatpush2.bf16.msra.mxu0 0
  %1258 = vmatprep.subr.bf16.mxu0 0
  %1259 = vmatpush2.bf16.msra.mxu0 0
  %1260 = vmatprep.subr.bf16.mxu0 0
  %1261 = vmatpush2.bf16.msra.mxu0 0
  %1262 = vmatprep.mubr.bf16.mxu0 0
  %1263 = vmatmul.mubr.bf16.gmra.mxu0 %v1229
  %v1264 = vpop.f32.mrf.mxu0
  %v1265 = vadd.f32 0.0, %v1264
  %v1266 = vpop.f32.mrf.mxu0
  %v1267 = vadd.f32 0.0, %v1266
  %v1268 = vpop.f32.mrf.mxu0
  %v1269 = vpop.f32.mrf.mxu0
  %1270 = vdwg.mxu0
  %1271 = vmatprep.subr.bf16.mxu0 0
  %1272 = vmatpush1.bf16.msra.mxu0 %v503
  %1273 = vmatprep.subr.bf16.mxu0 0
  %1274 = vmatpush1.bf16.msra.mxu0 %v500
  %1275 = vmatprep.subr.bf16.mxu0 0
  %1276 = vmatpush1.bf16.msra.mxu0 %v497
  %1277 = vmatprep.subr.bf16.mxu0 0
  %1278 = vmatpush1.bf16.msra.mxu0 %v494
  %1279 = vmatprep.subr.bf16.mxu0 0
  %1280 = vmatpush1.bf16.msra.mxu0 %v491
  %1281 = vmatprep.subr.bf16.mxu0 0
  %1282 = vmatpush1.bf16.msra.mxu0 %v488
  %1283 = vmatprep.subr.bf16.mxu0 0
  %1284 = vmatpush1.bf16.msra.mxu0 %v485
  %1285 = vmatprep.subr.bf16.mxu0 0
  %1286 = vmatpush1.bf16.msra.mxu0 %v482
  %1287 = vmatprep.subr.bf16.mxu0 0
  %1288 = vmatpush2.bf16.msra.mxu0 0
  %1289 = vmatprep.subr.bf16.mxu0 0
  %1290 = vmatpush2.bf16.msra.mxu0 0
  %1291 = vmatprep.subr.bf16.mxu0 0
  %1292 = vmatpush2.bf16.msra.mxu0 0
  %1293 = vmatprep.subr.bf16.mxu0 0
  %1294 = vmatpush2.bf16.msra.mxu0 0
  %1295 = vmatprep.subr.bf16.mxu0 0
  %1296 = vmatpush2.bf16.msra.mxu0 0
  %1297 = vmatprep.subr.bf16.mxu0 0
  %1298 = vmatpush2.bf16.msra.mxu0 0
  %1299 = vmatprep.subr.bf16.mxu0 0
  %1300 = vmatpush2.bf16.msra.mxu0 0
  %1301 = vmatprep.subr.bf16.mxu0 0
  %1302 = vmatpush2.bf16.msra.mxu0 0
  %1303 = vmatprep.mubr.bf16.mxu0 0
  %1304 = vmatmul.mubr.bf16.gmra.mxu0 %v1229
  %v1305 = vpop.f32.mrf.mxu0
  %v1306 = vadd.f32 0.0, %v1305
  %v1307 = vpop.f32.mrf.mxu0
  %v1308 = vpop.f32.mrf.mxu0
  %v1309 = vpop.f32.mrf.mxu0
  %1310 = vdwg.mxu0
  %v1311 = vunpack.c.l.bf16 %v1224
  %v1312 = vunpack.c.h.bf16 %v1224
  %v1313 = vunpack.c.l.bf16 %v1225
  %v1314 = vadd.f32 %v1311, %v1265
  %v1315 = vmul.f32 %v1314, 0.5
  %v1316 = vtanh.pop %v1315
  %v1317 = vadd.f32 %v1316, 1.0
  %v1318 = vmul.f32 %v1317, 0.5
  %v1319 = vadd.f32 %v1312, %v1267
  %v1320 = vmul.f32 %v1319, 0.5
  %v1321 = vtanh.pop %v1320
  %v1322 = vadd.f32 %v1321, 1.0
  %v1323 = vmul.f32 %v1322, 0.5
  %v1324 = vadd.f32 %v1306, %v626
  %v1325 = vmul.f32 %v1318, %v1324
  %v1326 = vadd.f32 %v1313, %v1325
  %v1327 = vtanh.pop %v1326
  %v1328 = vsub.f32 %v1104, %v1327
  %v1329 = vmul.f32 %v1323, %v1328
  %v1330 = vadd.f32 %v1327, %v1329
  %v1331 = vsel %vm1228, 1, 0
  %1332 = vset.pattern.permute.xlu0 0
  %1333 = vperm.xlu0 %1332, %v1331
  %v1334 = vpop.permute.xlu0 %1333
  %vm1335 = vcmp.eq.s32.totalorder %v1334, 1
  %v1336 = vsel %vm1335, %v1330, 0.0
  %s1337 = scalar_lea.vmem %s64, 32
  %1338 = vst [vmem:[%s1337] sm:$0xff] %v1336
  %s1339 = scalar_lea.vmem %s1, 48
  %v1340 = vld [vmem:[%s1339] sm:$0xff]
  %v1341 = vld [vmem:[%s1339 + $0x8] sm:$0xf]
  %s1342 = sadd.s32 %s141, 4
  %v1343 = vstv %s1342
  %vm1344 = vcmp.gt.s32.totalorder %v74, %v1343
  %v1345 = vpack.c.bf16 %v1220, %v1220
  %1346 = vmatprep.subr.bf16.mxu0 %v253
  %1347 = vmatpush1.bf16.msra.mxu0 %v252
  %1348 = vmatprep.subr.bf16.mxu0 %v250
  %1349 = vmatpush1.bf16.msra.mxu0 %v249
  %1350 = vmatprep.subr.bf16.mxu0 %v247
  %1351 = vmatpush1.bf16.msra.mxu0 %v246
  %1352 = vmatprep.subr.bf16.mxu0 %v244
  %1353 = vmatpush1.bf16.msra.mxu0 %v243
  %1354 = vmatprep.subr.bf16.mxu0 %v241
  %1355 = vmatpush1.bf16.msra.mxu0 %v240
  %1356 = vmatprep.subr.bf16.mxu0 %v238
  %1357 = vmatpush1.bf16.msra.mxu0 %v237
  %1358 = vmatprep.subr.bf16.mxu0 %v235
  %1359 = vmatpush1.bf16.msra.mxu0 %v234
  %1360 = vmatprep.subr.bf16.mxu0 %v232
  %1361 = vmatpush1.bf16.msra.mxu0 %v231
  %1362 = vmatprep.subr.bf16.mxu0 0
  %1363 = vmatpush2.bf16.msra.mxu0 0
  %1364 = vmatprep.subr.bf16.mxu0 0
  %1365 = vmatpush2.bf16.msra.mxu0 0
  %1366 = vmatprep.subr.bf16.mxu0 0
  %1367 = vmatpush2.bf16.msra.mxu0 0
  %1368 = vmatprep.subr.bf16.mxu0 0
  %1369 = vmatpush2.bf16.msra.mxu0 0
  %1370 = vmatprep.subr.bf16.mxu0 0
  %1371 = vmatpush2.bf16.msra.mxu0 0
  %1372 = vmatprep.subr.bf16.mxu0 0
  %1373 = vmatpush2.bf16.msra.mxu0 0
  %1374 = vmatprep.subr.bf16.mxu0 0
  %1375 = vmatpush2.bf16.msra.mxu0 0
  %1376 = vmatprep.subr.bf16.mxu0 0
  %1377 = vmatpush2.bf16.msra.mxu0 0
  %1378 = vmatprep.mubr.bf16.mxu0 0
  %1379 = vmatmul.mubr.bf16.gmra.mxu0 %v1345
  %v1380 = vpop.f32.mrf.mxu0
  %v1381 = vadd.f32 0.0, %v1380
  %v1382 = vpop.f32.mrf.mxu0
  %v1383 = vadd.f32 0.0, %v1382
  %v1384 = vpop.f32.mrf.mxu0
  %v1385 = vpop.f32.mrf.mxu0
  %1386 = vdwg.mxu0
  %1387 = vmatprep.subr.bf16.mxu0 0
  %1388 = vmatpush1.bf16.msra.mxu0 %v254
  %1389 = vmatprep.subr.bf16.mxu0 0
  %1390 = vmatpush1.bf16.msra.mxu0 %v251
  %1391 = vmatprep.subr.bf16.mxu0 0
  %1392 = vmatpush1.bf16.msra.mxu0 %v248
  %1393 = vmatprep.subr.bf16.mxu0 0
  %1394 = vmatpush1.bf16.msra.mxu0 %v245
  %1395 = vmatprep.subr.bf16.mxu0 0
  %1396 = vmatpush1.bf16.msra.mxu0 %v242
  %1397 = vmatprep.subr.bf16.mxu0 0
  %1398 = vmatpush1.bf16.msra.mxu0 %v239
  %1399 = vmatprep.subr.bf16.mxu0 0
  %1400 = vmatpush1.bf16.msra.mxu0 %v236
  %1401 = vmatprep.subr.bf16.mxu0 0
  %1402 = vmatpush1.bf16.msra.mxu0 %v233
  %1403 = vmatprep.subr.bf16.mxu0 0
  %1404 = vmatpush2.bf16.msra.mxu0 0
  %1405 = vmatprep.subr.bf16.mxu0 0
  %1406 = vmatpush2.bf16.msra.mxu0 0
  %1407 = vmatprep.subr.bf16.mxu0 0
  %1408 = vmatpush2.bf16.msra.mxu0 0
  %1409 = vmatprep.subr.bf16.mxu0 0
  %1410 = vmatpush2.bf16.msra.mxu0 0
  %1411 = vmatprep.subr.bf16.mxu0 0
  %1412 = vmatpush2.bf16.msra.mxu0 0
  %1413 = vmatprep.subr.bf16.mxu0 0
  %1414 = vmatpush2.bf16.msra.mxu0 0
  %1415 = vmatprep.subr.bf16.mxu0 0
  %1416 = vmatpush2.bf16.msra.mxu0 0
  %1417 = vmatprep.subr.bf16.mxu0 0
  %1418 = vmatpush2.bf16.msra.mxu0 0
  %1419 = vmatprep.mubr.bf16.mxu0 0
  %1420 = vmatmul.mubr.bf16.gmra.mxu0 %v1345
  %v1421 = vpop.f32.mrf.mxu0
  %v1422 = vadd.f32 0.0, %v1421
  %v1423 = vpop.f32.mrf.mxu0
  %v1424 = vpop.f32.mrf.mxu0
  %v1425 = vpop.f32.mrf.mxu0
  %1426 = vdwg.mxu0
  %v1427 = vunpack.c.l.bf16 %v1340
  %v1428 = vunpack.c.h.bf16 %v1340
  %v1429 = vunpack.c.l.bf16 %v1341
  %v1430 = vadd.f32 %v1427, %v1381
  %v1431 = vmul.f32 %v1430, 0.5
  %v1432 = vtanh.pop %v1431
  %v1433 = vadd.f32 %v1432, 1.0
  %v1434 = vmul.f32 %v1433, 0.5
  %v1435 = vadd.f32 %v1428, %v1383
  %v1436 = vmul.f32 %v1435, 0.5
  %v1437 = vtanh.pop %v1436
  %v1438 = vadd.f32 %v1437, 1.0
  %v1439 = vmul.f32 %v1438, 0.5
  %v1440 = vadd.f32 %v1422, %v377
  %v1441 = vmul.f32 %v1434, %v1440
  %v1442 = vadd.f32 %v1429, %v1441
  %v1443 = vtanh.pop %v1442
  %v1444 = vsub.f32 %v1220, %v1443
  %v1445 = vmul.f32 %v1439, %v1444
  %v1446 = vadd.f32 %v1443, %v1445
  %v1447 = vsel %vm1344, 1, 0
  %1448 = vset.pattern.permute.xlu0 0
  %1449 = vperm.xlu0 %1448, %v1447
  %v1450 = vpop.permute.xlu0 %1449
  %vm1451 = vcmp.eq.s32.totalorder %v1450, 1
  %v1452 = vsel %vm1451, %v1446, 0.0
  %s1453 = scalar_lea.vmem %s7, 32
  %1454 = vst [vmem:[%s1453] sm:$0xff] %v1452
  %s1455 = scalar_lea.vmem %s56, 36
  %v1456 = vld [vmem:[%s1455] sm:$0xff]
  %v1457 = vld [vmem:[%s1455 + $0x8] sm:$0xf]
  %s1458 = sadd.s32 %s143, 3
  %v1459 = vstv %s1458
  %vm1460 = vcmp.gt.s32.totalorder %v74, %v1459
  %v1461 = vpack.c.bf16 %v1336, %v1336
  %1462 = vmatprep.subr.bf16.mxu0 %v502
  %1463 = vmatpush1.bf16.msra.mxu0 %v501
  %1464 = vmatprep.subr.bf16.mxu0 %v499
  %1465 = vmatpush1.bf16.msra.mxu0 %v498
  %1466 = vmatprep.subr.bf16.mxu0 %v496
  %1467 = vmatpush1.bf16.msra.mxu0 %v495
  %1468 = vmatprep.subr.bf16.mxu0 %v493
  %1469 = vmatpush1.bf16.msra.mxu0 %v492
  %1470 = vmatprep.subr.bf16.mxu0 %v490
  %1471 = vmatpush1.bf16.msra.mxu0 %v489
  %1472 = vmatprep.subr.bf16.mxu0 %v487
  %1473 = vmatpush1.bf16.msra.mxu0 %v486
  %1474 = vmatprep.subr.bf16.mxu0 %v484
  %1475 = vmatpush1.bf16.msra.mxu0 %v483
  %1476 = vmatprep.subr.bf16.mxu0 %v481
  %1477 = vmatpush1.bf16.msra.mxu0 %v480
  %1478 = vmatprep.subr.bf16.mxu0 0
  %1479 = vmatpush2.bf16.msra.mxu0 0
  %1480 = vmatprep.subr.bf16.mxu0 0
  %1481 = vmatpush2.bf16.msra.mxu0 0
  %1482 = vmatprep.subr.bf16.mxu0 0
  %1483 = vmatpush2.bf16.msra.mxu0 0
  %1484 = vmatprep.subr.bf16.mxu0 0
  %1485 = vmatpush2.bf16.msra.mxu0 0
  %1486 = vmatprep.subr.bf16.mxu0 0
  %1487 = vmatpush2.bf16.msra.mxu0 0
  %1488 = vmatprep.subr.bf16.mxu0 0
  %1489 = vmatpush2.bf16.msra.mxu0 0
  %1490 = vmatprep.subr.bf16.mxu0 0
  %1491 = vmatpush2.bf16.msra.mxu0 0
  %1492 = vmatprep.subr.bf16.mxu0 0
  %1493 = vmatpush2.bf16.msra.mxu0 0
  %1494 = vmatprep.mubr.bf16.mxu0 0
  %1495 = vmatmul.mubr.bf16.gmra.mxu0 %v1461
  %v1496 = vpop.f32.mrf.mxu0
  %v1497 = vadd.f32 0.0, %v1496
  %v1498 = vpop.f32.mrf.mxu0
  %v1499 = vadd.f32 0.0, %v1498
  %v1500 = vpop.f32.mrf.mxu0
  %v1501 = vpop.f32.mrf.mxu0
  %1502 = vdwg.mxu0
  %1503 = vmatprep.subr.bf16.mxu0 0
  %1504 = vmatpush1.bf16.msra.mxu0 %v503
  %1505 = vmatprep.subr.bf16.mxu0 0
  %1506 = vmatpush1.bf16.msra.mxu0 %v500
  %1507 = vmatprep.subr.bf16.mxu0 0
  %1508 = vmatpush1.bf16.msra.mxu0 %v497
  %1509 = vmatprep.subr.bf16.mxu0 0
  %1510 = vmatpush1.bf16.msra.mxu0 %v494
  %1511 = vmatprep.subr.bf16.mxu0 0
  %1512 = vmatpush1.bf16.msra.mxu0 %v491
  %1513 = vmatprep.subr.bf16.mxu0 0
  %1514 = vmatpush1.bf16.msra.mxu0 %v488
  %1515 = vmatprep.subr.bf16.mxu0 0
  %1516 = vmatpush1.bf16.msra.mxu0 %v485
  %1517 = vmatprep.subr.bf16.mxu0 0
  %1518 = vmatpush1.bf16.msra.mxu0 %v482
  %1519 = vmatprep.subr.bf16.mxu0 0
  %1520 = vmatpush2.bf16.msra.mxu0 0
  %1521 = vmatprep.subr.bf16.mxu0 0
  %1522 = vmatpush2.bf16.msra.mxu0 0
  %1523 = vmatprep.subr.bf16.mxu0 0
  %1524 = vmatpush2.bf16.msra.mxu0 0
  %1525 = vmatprep.subr.bf16.mxu0 0
  %1526 = vmatpush2.bf16.msra.mxu0 0
  %1527 = vmatprep.subr.bf16.mxu0 0
  %1528 = vmatpush2.bf16.msra.mxu0 0
  %1529 = vmatprep.subr.bf16.mxu0 0
  %1530 = vmatpush2.bf16.msra.mxu0 0
  %1531 = vmatprep.subr.bf16.mxu0 0
  %1532 = vmatpush2.bf16.msra.mxu0 0
  %1533 = vmatprep.subr.bf16.mxu0 0
  %1534 = vmatpush2.bf16.msra.mxu0 0
  %1535 = vmatprep.mubr.bf16.mxu0 0
  %1536 = vmatmul.mubr.bf16.gmra.mxu0 %v1461
  %v1537 = vpop.f32.mrf.mxu0
  %v1538 = vadd.f32 0.0, %v1537
  %v1539 = vpop.f32.mrf.mxu0
  %v1540 = vpop.f32.mrf.mxu0
  %v1541 = vpop.f32.mrf.mxu0
  %1542 = vdwg.mxu0
  %v1543 = vunpack.c.l.bf16 %v1456
  %v1544 = vunpack.c.h.bf16 %v1456
  %v1545 = vunpack.c.l.bf16 %v1457
  %v1546 = vadd.f32 %v1543, %v1497
  %v1547 = vmul.f32 %v1546, 0.5
  %v1548 = vtanh.pop %v1547
  %v1549 = vadd.f32 %v1548, 1.0
  %v1550 = vmul.f32 %v1549, 0.5
  %v1551 = vadd.f32 %v1544, %v1499
  %v1552 = vmul.f32 %v1551, 0.5
  %v1553 = vtanh.pop %v1552
  %v1554 = vadd.f32 %v1553, 1.0
  %v1555 = vmul.f32 %v1554, 0.5
  %v1556 = vadd.f32 %v1538, %v626
  %v1557 = vmul.f32 %v1550, %v1556
  %v1558 = vadd.f32 %v1545, %v1557
  %v1559 = vtanh.pop %v1558
  %v1560 = vsub.f32 %v1336, %v1559
  %v1561 = vmul.f32 %v1555, %v1560
  %v1562 = vadd.f32 %v1559, %v1561
  %v1563 = vsel %vm1460, 1, 0
  %1564 = vset.pattern.permute.xlu0 0
  %1565 = vperm.xlu0 %1564, %v1563
  %v1566 = vpop.permute.xlu0 %1565
  %vm1567 = vcmp.eq.s32.totalorder %v1566, 1
  %v1568 = vsel %vm1567, %v1562, 0.0
  %s1569 = scalar_lea.vmem %s64, 24
  %1570 = vst [vmem:[%s1569] sm:$0xff] %v1568
  %s1571 = scalar_lea.vmem %s1, 60
  %v1572 = vld [vmem:[%s1571] sm:$0xff]
  %v1573 = vld [vmem:[%s1571 + $0x8] sm:$0xf]
  %s1574 = sadd.s32 %s141, 5
  %v1575 = vstv %s1574
  %vm1576 = vcmp.gt.s32.totalorder %v74, %v1575
  %v1577 = vpack.c.bf16 %v1452, %v1452
  %1578 = vmatprep.subr.bf16.mxu0 %v253
  %1579 = vmatpush1.bf16.msra.mxu0 %v252
  %1580 = vmatprep.subr.bf16.mxu0 %v250
  %1581 = vmatpush1.bf16.msra.mxu0 %v249
  %1582 = vmatprep.subr.bf16.mxu0 %v247
  %1583 = vmatpush1.bf16.msra.mxu0 %v246
  %1584 = vmatprep.subr.bf16.mxu0 %v244
  %1585 = vmatpush1.bf16.msra.mxu0 %v243
  %1586 = vmatprep.subr.bf16.mxu0 %v241
  %1587 = vmatpush1.bf16.msra.mxu0 %v240
  %1588 = vmatprep.subr.bf16.mxu0 %v238
  %1589 = vmatpush1.bf16.msra.mxu0 %v237
  %1590 = vmatprep.subr.bf16.mxu0 %v235
  %1591 = vmatpush1.bf16.msra.mxu0 %v234
  %1592 = vmatprep.subr.bf16.mxu0 %v232
  %1593 = vmatpush1.bf16.msra.mxu0 %v231
  %1594 = vmatprep.subr.bf16.mxu0 0
  %1595 = vmatpush2.bf16.msra.mxu0 0
  %1596 = vmatprep.subr.bf16.mxu0 0
  %1597 = vmatpush2.bf16.msra.mxu0 0
  %1598 = vmatprep.subr.bf16.mxu0 0
  %1599 = vmatpush2.bf16.msra.mxu0 0
  %1600 = vmatprep.subr.bf16.mxu0 0
  %1601 = vmatpush2.bf16.msra.mxu0 0
  %1602 = vmatprep.subr.bf16.mxu0 0
  %1603 = vmatpush2.bf16.msra.mxu0 0
  %1604 = vmatprep.subr.bf16.mxu0 0
  %1605 = vmatpush2.bf16.msra.mxu0 0
  %1606 = vmatprep.subr.bf16.mxu0 0
  %1607 = vmatpush2.bf16.msra.mxu0 0
  %1608 = vmatprep.subr.bf16.mxu0 0
  %1609 = vmatpush2.bf16.msra.mxu0 0
  %1610 = vmatprep.mubr.bf16.mxu0 0
  %1611 = vmatmul.mubr.bf16.gmra.mxu0 %v1577
  %v1612 = vpop.f32.mrf.mxu0
  %v1613 = vadd.f32 0.0, %v1612
  %v1614 = vpop.f32.mrf.mxu0
  %v1615 = vadd.f32 0.0, %v1614
  %v1616 = vpop.f32.mrf.mxu0
  %v1617 = vpop.f32.mrf.mxu0
  %1618 = vdwg.mxu0
  %1619 = vmatprep.subr.bf16.mxu0 0
  %1620 = vmatpush1.bf16.msra.mxu0 %v254
  %1621 = vmatprep.subr.bf16.mxu0 0
  %1622 = vmatpush1.bf16.msra.mxu0 %v251
  %1623 = vmatprep.subr.bf16.mxu0 0
  %1624 = vmatpush1.bf16.msra.mxu0 %v248
  %1625 = vmatprep.subr.bf16.mxu0 0
  %1626 = vmatpush1.bf16.msra.mxu0 %v245
  %1627 = vmatprep.subr.bf16.mxu0 0
  %1628 = vmatpush1.bf16.msra.mxu0 %v242
  %1629 = vmatprep.subr.bf16.mxu0 0
  %1630 = vmatpush1.bf16.msra.mxu0 %v239
  %1631 = vmatprep.subr.bf16.mxu0 0
  %1632 = vmatpush1.bf16.msra.mxu0 %v236
  %1633 = vmatprep.subr.bf16.mxu0 0
  %1634 = vmatpush1.bf16.msra.mxu0 %v233
  %1635 = vmatprep.subr.bf16.mxu0 0
  %1636 = vmatpush2.bf16.msra.mxu0 0
  %1637 = vmatprep.subr.bf16.mxu0 0
  %1638 = vmatpush2.bf16.msra.mxu0 0
  %1639 = vmatprep.subr.bf16.mxu0 0
  %1640 = vmatpush2.bf16.msra.mxu0 0
  %1641 = vmatprep.subr.bf16.mxu0 0
  %1642 = vmatpush2.bf16.msra.mxu0 0
  %1643 = vmatprep.subr.bf16.mxu0 0
  %1644 = vmatpush2.bf16.msra.mxu0 0
  %1645 = vmatprep.subr.bf16.mxu0 0
  %1646 = vmatpush2.bf16.msra.mxu0 0
  %1647 = vmatprep.subr.bf16.mxu0 0
  %1648 = vmatpush2.bf16.msra.mxu0 0
  %1649 = vmatprep.subr.bf16.mxu0 0
  %1650 = vmatpush2.bf16.msra.mxu0 0
  %1651 = vmatprep.mubr.bf16.mxu0 0
  %1652 = vmatmul.mubr.bf16.gmra.mxu0 %v1577
  %v1653 = vpop.f32.mrf.mxu0
  %v1654 = vadd.f32 0.0, %v1653
  %v1655 = vpop.f32.mrf.mxu0
  %v1656 = vpop.f32.mrf.mxu0
  %v1657 = vpop.f32.mrf.mxu0
  %1658 = vdwg.mxu0
  %v1659 = vunpack.c.l.bf16 %v1572
  %v1660 = vunpack.c.h.bf16 %v1572
  %v1661 = vunpack.c.l.bf16 %v1573
  %v1662 = vadd.f32 %v1659, %v1613
  %v1663 = vmul.f32 %v1662, 0.5
  %v1664 = vtanh.pop %v1663
  %v1665 = vadd.f32 %v1664, 1.0
  %v1666 = vmul.f32 %v1665, 0.5
  %v1667 = vadd.f32 %v1660, %v1615
  %v1668 = vmul.f32 %v1667, 0.5
  %v1669 = vtanh.pop %v1668
  %v1670 = vadd.f32 %v1669, 1.0
  %v1671 = vmul.f32 %v1670, 0.5
  %v1672 = vadd.f32 %v1654, %v377
  %v1673 = vmul.f32 %v1666, %v1672
  %v1674 = vadd.f32 %v1661, %v1673
  %v1675 = vtanh.pop %v1674
  %v1676 = vsub.f32 %v1452, %v1675
  %v1677 = vmul.f32 %v1671, %v1676
  %v1678 = vadd.f32 %v1675, %v1677
  %v1679 = vsel %vm1576, 1, 0
  %1680 = vset.pattern.permute.xlu0 0
  %1681 = vperm.xlu0 %1680, %v1679
  %v1682 = vpop.permute.xlu0 %1681
  %vm1683 = vcmp.eq.s32.totalorder %v1682, 1
  %v1684 = vsel %vm1683, %v1678, 0.0
  %s1685 = scalar_lea.vmem %s7, 40
  %1686 = vst [vmem:[%s1685] sm:$0xff] %v1684
  %s1687 = scalar_lea.vmem %s56, 24
  %v1688 = vld [vmem:[%s1687] sm:$0xff]
  %v1689 = vld [vmem:[%s1687 + $0x8] sm:$0xf]
  %s1690 = sadd.s32 %s143, 2
  %v1691 = vstv %s1690
  %vm1692 = vcmp.gt.s32.totalorder %v74, %v1691
  %v1693 = vpack.c.bf16 %v1568, %v1568
  %1694 = vmatprep.subr.bf16.mxu0 %v502
  %1695 = vmatpush1.bf16.msra.mxu0 %v501
  %1696 = vmatprep.subr.bf16.mxu0 %v499
  %1697 = vmatpush1.bf16.msra.mxu0 %v498
  %1698 = vmatprep.subr.bf16.mxu0 %v496
  %1699 = vmatpush1.bf16.msra.mxu0 %v495
  %1700 = vmatprep.subr.bf16.mxu0 %v493
  %1701 = vmatpush1.bf16.msra.mxu0 %v492
  %1702 = vmatprep.subr.bf16.mxu0 %v490
  %1703 = vmatpush1.bf16.msra.mxu0 %v489
  %1704 = vmatprep.subr.bf16.mxu0 %v487
  %1705 = vmatpush1.bf16.msra.mxu0 %v486
  %1706 = vmatprep.subr.bf16.mxu0 %v484
  %1707 = vmatpush1.bf16.msra.mxu0 %v483
  %1708 = vmatprep.subr.bf16.mxu0 %v481
  %1709 = vmatpush1.bf16.msra.mxu0 %v480
  %1710 = vmatprep.subr.bf16.mxu0 0
  %1711 = vmatpush2.bf16.msra.mxu0 0
  %1712 = vmatprep.subr.bf16.mxu0 0
  %1713 = vmatpush2.bf16.msra.mxu0 0
  %1714 = vmatprep.subr.bf16.mxu0 0
  %1715 = vmatpush2.bf16.msra.mxu0 0
  %1716 = vmatprep.subr.bf16.mxu0 0
  %1717 = vmatpush2.bf16.msra.mxu0 0
  %1718 = vmatprep.subr.bf16.mxu0 0
  %1719 = vmatpush2.bf16.msra.mxu0 0
  %1720 = vmatprep.subr.bf16.mxu0 0
  %1721 = vmatpush2.bf16.msra.mxu0 0
  %1722 = vmatprep.subr.bf16.mxu0 0
  %1723 = vmatpush2.bf16.msra.mxu0 0
  %1724 = vmatprep.subr.bf16.mxu0 0
  %1725 = vmatpush2.bf16.msra.mxu0 0
  %1726 = vmatprep.mubr.bf16.mxu0 0
  %1727 = vmatmul.mubr.bf16.gmra.mxu0 %v1693
  %v1728 = vpop.f32.mrf.mxu0
  %v1729 = vadd.f32 0.0, %v1728
  %v1730 = vpop.f32.mrf.mxu0
  %v1731 = vadd.f32 0.0, %v1730
  %v1732 = vpop.f32.mrf.mxu0
  %v1733 = vpop.f32.mrf.mxu0
  %1734 = vdwg.mxu0
  %1735 = vmatprep.subr.bf16.mxu0 0
  %1736 = vmatpush1.bf16.msra.mxu0 %v503
  %1737 = vmatprep.subr.bf16.mxu0 0
  %1738 = vmatpush1.bf16.msra.mxu0 %v500
  %1739 = vmatprep.subr.bf16.mxu0 0
  %1740 = vmatpush1.bf16.msra.mxu0 %v497
  %1741 = vmatprep.subr.bf16.mxu0 0
  %1742 = vmatpush1.bf16.msra.mxu0 %v494
  %1743 = vmatprep.subr.bf16.mxu0 0
  %1744 = vmatpush1.bf16.msra.mxu0 %v491
  %1745 = vmatprep.subr.bf16.mxu0 0
  %1746 = vmatpush1.bf16.msra.mxu0 %v488
  %1747 = vmatprep.subr.bf16.mxu0 0
  %1748 = vmatpush1.bf16.msra.mxu0 %v485
  %1749 = vmatprep.subr.bf16.mxu0 0
  %1750 = vmatpush1.bf16.msra.mxu0 %v482
  %1751 = vmatprep.subr.bf16.mxu0 0
  %1752 = vmatpush2.bf16.msra.mxu0 0
  %1753 = vmatprep.subr.bf16.mxu0 0
  %1754 = vmatpush2.bf16.msra.mxu0 0
  %1755 = vmatprep.subr.bf16.mxu0 0
  %1756 = vmatpush2.bf16.msra.mxu0 0
  %1757 = vmatprep.subr.bf16.mxu0 0
  %1758 = vmatpush2.bf16.msra.mxu0 0
  %1759 = vmatprep.subr.bf16.mxu0 0
  %1760 = vmatpush2.bf16.msra.mxu0 0
  %1761 = vmatprep.subr.bf16.mxu0 0
  %1762 = vmatpush2.bf16.msra.mxu0 0
  %1763 = vmatprep.subr.bf16.mxu0 0
  %1764 = vmatpush2.bf16.msra.mxu0 0
  %1765 = vmatprep.subr.bf16.mxu0 0
  %1766 = vmatpush2.bf16.msra.mxu0 0
  %1767 = vmatprep.mubr.bf16.mxu0 0
  %1768 = vmatmul.mubr.bf16.gmra.mxu0 %v1693
  %v1769 = vpop.f32.mrf.mxu0
  %v1770 = vadd.f32 0.0, %v1769
  %v1771 = vpop.f32.mrf.mxu0
  %v1772 = vpop.f32.mrf.mxu0
  %v1773 = vpop.f32.mrf.mxu0
  %1774 = vdwg.mxu0
  %v1775 = vunpack.c.l.bf16 %v1688
  %v1776 = vunpack.c.h.bf16 %v1688
  %v1777 = vunpack.c.l.bf16 %v1689
  %v1778 = vadd.f32 %v1775, %v1729
  %v1779 = vmul.f32 %v1778, 0.5
  %v1780 = vtanh.pop %v1779
  %v1781 = vadd.f32 %v1780, 1.0
  %v1782 = vmul.f32 %v1781, 0.5
  %v1783 = vadd.f32 %v1776, %v1731
  %v1784 = vmul.f32 %v1783, 0.5
  %v1785 = vtanh.pop %v1784
  %v1786 = vadd.f32 %v1785, 1.0
  %v1787 = vmul.f32 %v1786, 0.5
  %v1788 = vadd.f32 %v1770, %v626
  %v1789 = vmul.f32 %v1782, %v1788
  %v1790 = vadd.f32 %v1777, %v1789
  %v1791 = vtanh.pop %v1790
  %v1792 = vsub.f32 %v1568, %v1791
  %v1793 = vmul.f32 %v1787, %v1792
  %v1794 = vadd.f32 %v1791, %v1793
  %v1795 = vsel %vm1692, 1, 0
  %1796 = vset.pattern.permute.xlu0 0
  %1797 = vperm.xlu0 %1796, %v1795
  %v1798 = vpop.permute.xlu0 %1797
  %vm1799 = vcmp.eq.s32.totalorder %v1798, 1
  %v1800 = vsel %vm1799, %v1794, 0.0
  %s1801 = scalar_lea.vmem %s64, 16
  %1802 = vst [vmem:[%s1801] sm:$0xff] %v1800
  %s1803 = scalar_lea.vmem %s1, 72
  %v1804 = vld [vmem:[%s1803] sm:$0xff]
  %v1805 = vld [vmem:[%s1803 + $0x8] sm:$0xf]
  %s1806 = sadd.s32 %s141, 6
  %v1807 = vstv %s1806
  %vm1808 = vcmp.gt.s32.totalorder %v74, %v1807
  %v1809 = vpack.c.bf16 %v1684, %v1684
  %1810 = vmatprep.subr.bf16.mxu0 %v253
  %1811 = vmatpush1.bf16.msra.mxu0 %v252
  %1812 = vmatprep.subr.bf16.mxu0 %v250
  %1813 = vmatpush1.bf16.msra.mxu0 %v249
  %1814 = vmatprep.subr.bf16.mxu0 %v247
  %1815 = vmatpush1.bf16.msra.mxu0 %v246
  %1816 = vmatprep.subr.bf16.mxu0 %v244
  %1817 = vmatpush1.bf16.msra.mxu0 %v243
  %1818 = vmatprep.subr.bf16.mxu0 %v241
  %1819 = vmatpush1.bf16.msra.mxu0 %v240
  %1820 = vmatprep.subr.bf16.mxu0 %v238
  %1821 = vmatpush1.bf16.msra.mxu0 %v237
  %1822 = vmatprep.subr.bf16.mxu0 %v235
  %1823 = vmatpush1.bf16.msra.mxu0 %v234
  %1824 = vmatprep.subr.bf16.mxu0 %v232
  %1825 = vmatpush1.bf16.msra.mxu0 %v231
  %1826 = vmatprep.subr.bf16.mxu0 0
  %1827 = vmatpush2.bf16.msra.mxu0 0
  %1828 = vmatprep.subr.bf16.mxu0 0
  %1829 = vmatpush2.bf16.msra.mxu0 0
  %1830 = vmatprep.subr.bf16.mxu0 0
  %1831 = vmatpush2.bf16.msra.mxu0 0
  %1832 = vmatprep.subr.bf16.mxu0 0
  %1833 = vmatpush2.bf16.msra.mxu0 0
  %1834 = vmatprep.subr.bf16.mxu0 0
  %1835 = vmatpush2.bf16.msra.mxu0 0
  %1836 = vmatprep.subr.bf16.mxu0 0
  %1837 = vmatpush2.bf16.msra.mxu0 0
  %1838 = vmatprep.subr.bf16.mxu0 0
  %1839 = vmatpush2.bf16.msra.mxu0 0
  %1840 = vmatprep.subr.bf16.mxu0 0
  %1841 = vmatpush2.bf16.msra.mxu0 0
  %1842 = vmatprep.mubr.bf16.mxu0 0
  %1843 = vmatmul.mubr.bf16.gmra.mxu0 %v1809
  %v1844 = vpop.f32.mrf.mxu0
  %v1845 = vadd.f32 0.0, %v1844
  %v1846 = vpop.f32.mrf.mxu0
  %v1847 = vadd.f32 0.0, %v1846
  %v1848 = vpop.f32.mrf.mxu0
  %v1849 = vpop.f32.mrf.mxu0
  %1850 = vdwg.mxu0
  %1851 = vmatprep.subr.bf16.mxu0 0
  %1852 = vmatpush1.bf16.msra.mxu0 %v254
  %1853 = vmatprep.subr.bf16.mxu0 0
  %1854 = vmatpush1.bf16.msra.mxu0 %v251
  %1855 = vmatprep.subr.bf16.mxu0 0
  %1856 = vmatpush1.bf16.msra.mxu0 %v248
  %1857 = vmatprep.subr.bf16.mxu0 0
  %1858 = vmatpush1.bf16.msra.mxu0 %v245
  %1859 = vmatprep.subr.bf16.mxu0 0
  %1860 = vmatpush1.bf16.msra.mxu0 %v242
  %1861 = vmatprep.subr.bf16.mxu0 0
  %1862 = vmatpush1.bf16.msra.mxu0 %v239
  %1863 = vmatprep.subr.bf16.mxu0 0
  %1864 = vmatpush1.bf16.msra.mxu0 %v236
  %1865 = vmatprep.subr.bf16.mxu0 0
  %1866 = vmatpush1.bf16.msra.mxu0 %v233
  %1867 = vmatprep.subr.bf16.mxu0 0
  %1868 = vmatpush2.bf16.msra.mxu0 0
  %1869 = vmatprep.subr.bf16.mxu0 0
  %1870 = vmatpush2.bf16.msra.mxu0 0
  %1871 = vmatprep.subr.bf16.mxu0 0
  %1872 = vmatpush2.bf16.msra.mxu0 0
  %1873 = vmatprep.subr.bf16.mxu0 0
  %1874 = vmatpush2.bf16.msra.mxu0 0
  %1875 = vmatprep.subr.bf16.mxu0 0
  %1876 = vmatpush2.bf16.msra.mxu0 0
  %1877 = vmatprep.subr.bf16.mxu0 0
  %1878 = vmatpush2.bf16.msra.mxu0 0
  %1879 = vmatprep.subr.bf16.mxu0 0
  %1880 = vmatpush2.bf16.msra.mxu0 0
  %1881 = vmatprep.subr.bf16.mxu0 0
  %1882 = vmatpush2.bf16.msra.mxu0 0
  %1883 = vmatprep.mubr.bf16.mxu0 0
  %1884 = vmatmul.mubr.bf16.gmra.mxu0 %v1809
  %v1885 = vpop.f32.mrf.mxu0
  %v1886 = vadd.f32 0.0, %v1885
  %v1887 = vpop.f32.mrf.mxu0
  %v1888 = vpop.f32.mrf.mxu0
  %v1889 = vpop.f32.mrf.mxu0
  %1890 = vdwg.mxu0
  %v1891 = vunpack.c.l.bf16 %v1804
  %v1892 = vunpack.c.h.bf16 %v1804
  %v1893 = vunpack.c.l.bf16 %v1805
  %v1894 = vadd.f32 %v1891, %v1845
  %v1895 = vmul.f32 %v1894, 0.5
  %v1896 = vtanh.pop %v1895
  %v1897 = vadd.f32 %v1896, 1.0
  %v1898 = vmul.f32 %v1897, 0.5
  %v1899 = vadd.f32 %v1892, %v1847
  %v1900 = vmul.f32 %v1899, 0.5
  %v1901 = vtanh.pop %v1900
  %v1902 = vadd.f32 %v1901, 1.0
  %v1903 = vmul.f32 %v1902, 0.5
  %v1904 = vadd.f32 %v1886, %v377
  %v1905 = vmul.f32 %v1898, %v1904
  %v1906 = vadd.f32 %v1893, %v1905
  %v1907 = vtanh.pop %v1906
  %v1908 = vsub.f32 %v1684, %v1907
  %v1909 = vmul.f32 %v1903, %v1908
  %v1910 = vadd.f32 %v1907, %v1909
  %v1911 = vsel %vm1808, 1, 0
  %1912 = vset.pattern.permute.xlu0 0
  %1913 = vperm.xlu0 %1912, %v1911
  %v1914 = vpop.permute.xlu0 %1913
  %vm1915 = vcmp.eq.s32.totalorder %v1914, 1
  %v1916 = vsel %vm1915, %v1910, 0.0
  %s1917 = scalar_lea.vmem %s7, 48
  %1918 = vst [vmem:[%s1917] sm:$0xff] %v1916
  %s1919 = scalar_lea.vmem %s56, 12
  %v1920 = vld [vmem:[%s1919] sm:$0xff]
  %v1921 = vld [vmem:[%s1919 + $0x8] sm:$0xf]
  %s1922 = sadd.s32 %s143, 1
  %v1923 = vstv %s1922
  %vm1924 = vcmp.gt.s32.totalorder %v74, %v1923
  %v1925 = vpack.c.bf16 %v1800, %v1800
  %1926 = vmatprep.subr.bf16.mxu0 %v502
  %1927 = vmatpush1.bf16.msra.mxu0 %v501
  %1928 = vmatprep.subr.bf16.mxu0 %v499
  %1929 = vmatpush1.bf16.msra.mxu0 %v498
  %1930 = vmatprep.subr.bf16.mxu0 %v496
  %1931 = vmatpush1.bf16.msra.mxu0 %v495
  %1932 = vmatprep.subr.bf16.mxu0 %v493
  %1933 = vmatpush1.bf16.msra.mxu0 %v492
  %1934 = vmatprep.subr.bf16.mxu0 %v490
  %1935 = vmatpush1.bf16.msra.mxu0 %v489
  %1936 = vmatprep.subr.bf16.mxu0 %v487
  %1937 = vmatpush1.bf16.msra.mxu0 %v486
  %1938 = vmatprep.subr.bf16.mxu0 %v484
  %1939 = vmatpush1.bf16.msra.mxu0 %v483
  %1940 = vmatprep.subr.bf16.mxu0 %v481
  %1941 = vmatpush1.bf16.msra.mxu0 %v480
  %1942 = vmatprep.subr.bf16.mxu0 0
  %1943 = vmatpush2.bf16.msra.mxu0 0
  %1944 = vmatprep.subr.bf16.mxu0 0
  %1945 = vmatpush2.bf16.msra.mxu0 0
  %1946 = vmatprep.subr.bf16.mxu0 0
  %1947 = vmatpush2.bf16.msra.mxu0 0
  %1948 = vmatprep.subr.bf16.mxu0 0
  %1949 = vmatpush2.bf16.msra.mxu0 0
  %1950 = vmatprep.subr.bf16.mxu0 0
  %1951 = vmatpush2.bf16.msra.mxu0 0
  %1952 = vmatprep.subr.bf16.mxu0 0
  %1953 = vmatpush2.bf16.msra.mxu0 0
  %1954 = vmatprep.subr.bf16.mxu0 0
  %1955 = vmatpush2.bf16.msra.mxu0 0
  %1956 = vmatprep.subr.bf16.mxu0 0
  %1957 = vmatpush2.bf16.msra.mxu0 0
  %1958 = vmatprep.mubr.bf16.mxu0 0
  %1959 = vmatmul.mubr.bf16.gmra.mxu0 %v1925
  %v1960 = vpop.f32.mrf.mxu0
  %v1961 = vadd.f32 0.0, %v1960
  %v1962 = vpop.f32.mrf.mxu0
  %v1963 = vadd.f32 0.0, %v1962
  %v1964 = vpop.f32.mrf.mxu0
  %v1965 = vpop.f32.mrf.mxu0
  %1966 = vdwg.mxu0
  %1967 = vmatprep.subr.bf16.mxu0 0
  %1968 = vmatpush1.bf16.msra.mxu0 %v503
  %1969 = vmatprep.subr.bf16.mxu0 0
  %1970 = vmatpush1.bf16.msra.mxu0 %v500
  %1971 = vmatprep.subr.bf16.mxu0 0
  %1972 = vmatpush1.bf16.msra.mxu0 %v497
  %1973 = vmatprep.subr.bf16.mxu0 0
  %1974 = vmatpush1.bf16.msra.mxu0 %v494
  %1975 = vmatprep.subr.bf16.mxu0 0
  %1976 = vmatpush1.bf16.msra.mxu0 %v491
  %1977 = vmatprep.subr.bf16.mxu0 0
  %1978 = vmatpush1.bf16.msra.mxu0 %v488
  %1979 = vmatprep.subr.bf16.mxu0 0
  %1980 = vmatpush1.bf16.msra.mxu0 %v485
  %1981 = vmatprep.subr.bf16.mxu0 0
  %1982 = vmatpush1.bf16.msra.mxu0 %v482
  %1983 = vmatprep.subr.bf16.mxu0 0
  %1984 = vmatpush2.bf16.msra.mxu0 0
  %1985 = vmatprep.subr.bf16.mxu0 0
  %1986 = vmatpush2.bf16.msra.mxu0 0
  %1987 = vmatprep.subr.bf16.mxu0 0
  %1988 = vmatpush2.bf16.msra.mxu0 0
  %1989 = vmatprep.subr.bf16.mxu0 0
  %1990 = vmatpush2.bf16.msra.mxu0 0
  %1991 = vmatprep.subr.bf16.mxu0 0
  %1992 = vmatpush2.bf16.msra.mxu0 0
  %1993 = vmatprep.subr.bf16.mxu0 0
  %1994 = vmatpush2.bf16.msra.mxu0 0
  %1995 = vmatprep.subr.bf16.mxu0 0
  %1996 = vmatpush2.bf16.msra.mxu0 0
  %1997 = vmatprep.subr.bf16.mxu0 0
  %1998 = vmatpush2.bf16.msra.mxu0 0
  %1999 = vmatprep.mubr.bf16.mxu0 0
  %2000 = vmatmul.mubr.bf16.gmra.mxu0 %v1925
  %v2001 = vpop.f32.mrf.mxu0
  %v2002 = vadd.f32 0.0, %v2001
  %v2003 = vpop.f32.mrf.mxu0
  %v2004 = vpop.f32.mrf.mxu0
  %v2005 = vpop.f32.mrf.mxu0
  %2006 = vdwg.mxu0
  %v2007 = vunpack.c.l.bf16 %v1920
  %v2008 = vunpack.c.h.bf16 %v1920
  %v2009 = vunpack.c.l.bf16 %v1921
  %v2010 = vadd.f32 %v2007, %v1961
  %v2011 = vmul.f32 %v2010, 0.5
  %v2012 = vtanh.pop %v2011
  %v2013 = vadd.f32 %v2012, 1.0
  %v2014 = vmul.f32 %v2013, 0.5
  %v2015 = vadd.f32 %v2008, %v1963
  %v2016 = vmul.f32 %v2015, 0.5
  %v2017 = vtanh.pop %v2016
  %v2018 = vadd.f32 %v2017, 1.0
  %v2019 = vmul.f32 %v2018, 0.5
  %v2020 = vadd.f32 %v2002, %v626
  %v2021 = vmul.f32 %v2014, %v2020
  %v2022 = vadd.f32 %v2009, %v2021
  %v2023 = vtanh.pop %v2022
  %v2024 = vsub.f32 %v1800, %v2023
  %v2025 = vmul.f32 %v2019, %v2024
  %v2026 = vadd.f32 %v2023, %v2025
  %v2027 = vsel %vm1924, 1, 0
  %2028 = vset.pattern.permute.xlu0 0
  %2029 = vperm.xlu0 %2028, %v2027
  %v2030 = vpop.permute.xlu0 %2029
  %vm2031 = vcmp.eq.s32.totalorder %v2030, 1
  %v2032 = vsel %vm2031, %v2026, 0.0
  %s2033 = scalar_lea.vmem %s64, 8
  %2034 = vst [vmem:[%s2033] sm:$0xff] %v2032
  %s2035 = scalar_lea.vmem %s1, 84
  %v2036 = vld [vmem:[%s2035] sm:$0xff]
  %v2037 = vld [vmem:[%s2035 + $0x8] sm:$0xf]
  %s2038 = sadd.s32 %s141, 7
  %v2039 = vstv %s2038
  %vm2040 = vcmp.gt.s32.totalorder %v74, %v2039
  %v2041 = vpack.c.bf16 %v1916, %v1916
  %2042 = vmatprep.subr.bf16.mxu0 %v253
  %2043 = vmatpush1.bf16.msra.mxu0 %v252
  %2044 = vmatprep.subr.bf16.mxu0 %v250
  %2045 = vmatpush1.bf16.msra.mxu0 %v249
  %2046 = vmatprep.subr.bf16.mxu0 %v247
  %2047 = vmatpush1.bf16.msra.mxu0 %v246
  %2048 = vmatprep.subr.bf16.mxu0 %v244
  %2049 = vmatpush1.bf16.msra.mxu0 %v243
  %2050 = vmatprep.subr.bf16.mxu0 %v241
  %2051 = vmatpush1.bf16.msra.mxu0 %v240
  %2052 = vmatprep.subr.bf16.mxu0 %v238
  %2053 = vmatpush1.bf16.msra.mxu0 %v237
  %2054 = vmatprep.subr.bf16.mxu0 %v235
  %2055 = vmatpush1.bf16.msra.mxu0 %v234
  %2056 = vmatprep.subr.bf16.mxu0 %v232
  %2057 = vmatpush1.bf16.msra.mxu0 %v231
  %2058 = vmatprep.subr.bf16.mxu0 0
  %2059 = vmatpush2.bf16.msra.mxu0 0
  %2060 = vmatprep.subr.bf16.mxu0 0
  %2061 = vmatpush2.bf16.msra.mxu0 0
  %2062 = vmatprep.subr.bf16.mxu0 0
  %2063 = vmatpush2.bf16.msra.mxu0 0
  %2064 = vmatprep.subr.bf16.mxu0 0
  %2065 = vmatpush2.bf16.msra.mxu0 0
  %2066 = vmatprep.subr.bf16.mxu0 0
  %2067 = vmatpush2.bf16.msra.mxu0 0
  %2068 = vmatprep.subr.bf16.mxu0 0
  %2069 = vmatpush2.bf16.msra.mxu0 0
  %2070 = vmatprep.subr.bf16.mxu0 0
  %2071 = vmatpush2.bf16.msra.mxu0 0
  %2072 = vmatprep.subr.bf16.mxu0 0
  %2073 = vmatpush2.bf16.msra.mxu0 0
  %2074 = vmatprep.mubr.bf16.mxu0 0
  %2075 = vmatmul.mubr.bf16.gmra.mxu0 %v2041
  %v2076 = vpop.f32.mrf.mxu0
  %v2077 = vadd.f32 0.0, %v2076
  %v2078 = vpop.f32.mrf.mxu0
  %v2079 = vadd.f32 0.0, %v2078
  %v2080 = vpop.f32.mrf.mxu0
  %v2081 = vpop.f32.mrf.mxu0
  %2082 = vdwg.mxu0
  %2083 = vmatprep.subr.bf16.mxu0 0
  %2084 = vmatpush1.bf16.msra.mxu0 %v254
  %2085 = vmatprep.subr.bf16.mxu0 0
  %2086 = vmatpush1.bf16.msra.mxu0 %v251
  %2087 = vmatprep.subr.bf16.mxu0 0
  %2088 = vmatpush1.bf16.msra.mxu0 %v248
  %2089 = vmatprep.subr.bf16.mxu0 0
  %2090 = vmatpush1.bf16.msra.mxu0 %v245
  %2091 = vmatprep.subr.bf16.mxu0 0
  %2092 = vmatpush1.bf16.msra.mxu0 %v242
  %2093 = vmatprep.subr.bf16.mxu0 0
  %2094 = vmatpush1.bf16.msra.mxu0 %v239
  %2095 = vmatprep.subr.bf16.mxu0 0
  %2096 = vmatpush1.bf16.msra.mxu0 %v236
  %2097 = vmatprep.subr.bf16.mxu0 0
  %2098 = vmatpush1.bf16.msra.mxu0 %v233
  %2099 = vmatprep.subr.bf16.mxu0 0
  %2100 = vmatpush2.bf16.msra.mxu0 0
  %2101 = vmatprep.subr.bf16.mxu0 0
  %2102 = vmatpush2.bf16.msra.mxu0 0
  %2103 = vmatprep.subr.bf16.mxu0 0
  %2104 = vmatpush2.bf16.msra.mxu0 0
  %2105 = vmatprep.subr.bf16.mxu0 0
  %2106 = vmatpush2.bf16.msra.mxu0 0
  %2107 = vmatprep.subr.bf16.mxu0 0
  %2108 = vmatpush2.bf16.msra.mxu0 0
  %2109 = vmatprep.subr.bf16.mxu0 0
  %2110 = vmatpush2.bf16.msra.mxu0 0
  %2111 = vmatprep.subr.bf16.mxu0 0
  %2112 = vmatpush2.bf16.msra.mxu0 0
  %2113 = vmatprep.subr.bf16.mxu0 0
  %2114 = vmatpush2.bf16.msra.mxu0 0
  %2115 = vmatprep.mubr.bf16.mxu0 0
  %2116 = vmatmul.mubr.bf16.gmra.mxu0 %v2041
  %v2117 = vpop.f32.mrf.mxu0
  %v2118 = vadd.f32 0.0, %v2117
  %v2119 = vpop.f32.mrf.mxu0
  %v2120 = vpop.f32.mrf.mxu0
  %v2121 = vpop.f32.mrf.mxu0
  %2122 = vdwg.mxu0
  %v2123 = vunpack.c.l.bf16 %v2036
  %v2124 = vunpack.c.h.bf16 %v2036
  %v2125 = vunpack.c.l.bf16 %v2037
  %v2126 = vadd.f32 %v2123, %v2077
  %v2127 = vmul.f32 %v2126, 0.5
  %v2128 = vtanh.pop %v2127
  %v2129 = vadd.f32 %v2128, 1.0
  %v2130 = vmul.f32 %v2129, 0.5
  %v2131 = vadd.f32 %v2124, %v2079
  %v2132 = vmul.f32 %v2131, 0.5
  %v2133 = vtanh.pop %v2132
  %v2134 = vadd.f32 %v2133, 1.0
  %v2135 = vmul.f32 %v2134, 0.5
  %v2136 = vadd.f32 %v2118, %v377
  %v2137 = vmul.f32 %v2130, %v2136
  %v2138 = vadd.f32 %v2125, %v2137
  %v2139 = vtanh.pop %v2138
  %v2140 = vsub.f32 %v1916, %v2139
  %v2141 = vmul.f32 %v2135, %v2140
  %v2142 = vadd.f32 %v2139, %v2141
  %v2143 = vsel %vm2040, 1, 0
  %2144 = vset.pattern.permute.xlu0 0
  %2145 = vperm.xlu0 %2144, %v2143
  %v2146 = vpop.permute.xlu0 %2145
  %vm2147 = vcmp.eq.s32.totalorder %v2146, 1
  %v2148 = vsel %vm2147, %v2142, 0.0
  %s2149 = scalar_lea.vmem %s7, 56
  %2150 = vst [vmem:[%s2149] sm:$0xff] %v2148
  %v2151 = vld [vmem:[%s56] sm:$0xff]
  %v2152 = vld [vmem:[%s56 + $0x8] sm:$0xf]
  %v2153 = vstv %s143
  %vm2154 = vcmp.gt.s32.totalorder %v74, %v2153
  %v2155 = vpack.c.bf16 %v2032, %v2032
  %2156 = vmatprep.subr.bf16.mxu0 %v502
  %2157 = vmatpush1.bf16.msra.mxu0 %v501
  %2158 = vmatprep.subr.bf16.mxu0 %v499
  %2159 = vmatpush1.bf16.msra.mxu0 %v498
  %2160 = vmatprep.subr.bf16.mxu0 %v496
  %2161 = vmatpush1.bf16.msra.mxu0 %v495
  %2162 = vmatprep.subr.bf16.mxu0 %v493
  %2163 = vmatpush1.bf16.msra.mxu0 %v492
  %2164 = vmatprep.subr.bf16.mxu0 %v490
  %2165 = vmatpush1.bf16.msra.mxu0 %v489
  %2166 = vmatprep.subr.bf16.mxu0 %v487
  %2167 = vmatpush1.bf16.msra.mxu0 %v486
  %2168 = vmatprep.subr.bf16.mxu0 %v484
  %2169 = vmatpush1.bf16.msra.mxu0 %v483
  %2170 = vmatprep.subr.bf16.mxu0 %v481
  %2171 = vmatpush1.bf16.msra.mxu0 %v480
  %2172 = vmatprep.subr.bf16.mxu0 0
  %2173 = vmatpush2.bf16.msra.mxu0 0
  %2174 = vmatprep.subr.bf16.mxu0 0
  %2175 = vmatpush2.bf16.msra.mxu0 0
  %2176 = vmatprep.subr.bf16.mxu0 0
  %2177 = vmatpush2.bf16.msra.mxu0 0
  %2178 = vmatprep.subr.bf16.mxu0 0
  %2179 = vmatpush2.bf16.msra.mxu0 0
  %2180 = vmatprep.subr.bf16.mxu0 0
  %2181 = vmatpush2.bf16.msra.mxu0 0
  %2182 = vmatprep.subr.bf16.mxu0 0
  %2183 = vmatpush2.bf16.msra.mxu0 0
  %2184 = vmatprep.subr.bf16.mxu0 0
  %2185 = vmatpush2.bf16.msra.mxu0 0
  %2186 = vmatprep.subr.bf16.mxu0 0
  %2187 = vmatpush2.bf16.msra.mxu0 0
  %2188 = vmatprep.mubr.bf16.mxu0 0
  %2189 = vmatmul.mubr.bf16.gmra.mxu0 %v2155
  %v2190 = vpop.f32.mrf.mxu0
  %v2191 = vadd.f32 0.0, %v2190
  %v2192 = vpop.f32.mrf.mxu0
  %v2193 = vadd.f32 0.0, %v2192
  %v2194 = vpop.f32.mrf.mxu0
  %v2195 = vpop.f32.mrf.mxu0
  %2196 = vdwg.mxu0
  %2197 = vmatprep.subr.bf16.mxu0 0
  %2198 = vmatpush1.bf16.msra.mxu0 %v503
  %2199 = vmatprep.subr.bf16.mxu0 0
  %2200 = vmatpush1.bf16.msra.mxu0 %v500
  %2201 = vmatprep.subr.bf16.mxu0 0
  %2202 = vmatpush1.bf16.msra.mxu0 %v497
  %2203 = vmatprep.subr.bf16.mxu0 0
  %2204 = vmatpush1.bf16.msra.mxu0 %v494
  %2205 = vmatprep.subr.bf16.mxu0 0
  %2206 = vmatpush1.bf16.msra.mxu0 %v491
  %2207 = vmatprep.subr.bf16.mxu0 0
  %2208 = vmatpush1.bf16.msra.mxu0 %v488
  %2209 = vmatprep.subr.bf16.mxu0 0
  %2210 = vmatpush1.bf16.msra.mxu0 %v485
  %2211 = vmatprep.subr.bf16.mxu0 0
  %2212 = vmatpush1.bf16.msra.mxu0 %v482
  %2213 = vmatprep.subr.bf16.mxu0 0
  %2214 = vmatpush2.bf16.msra.mxu0 0
  %2215 = vmatprep.subr.bf16.mxu0 0
  %2216 = vmatpush2.bf16.msra.mxu0 0
  %2217 = vmatprep.subr.bf16.mxu0 0
  %2218 = vmatpush2.bf16.msra.mxu0 0
  %2219 = vmatprep.subr.bf16.mxu0 0
  %2220 = vmatpush2.bf16.msra.mxu0 0
  %2221 = vmatprep.subr.bf16.mxu0 0
  %2222 = vmatpush2.bf16.msra.mxu0 0
  %2223 = vmatprep.subr.bf16.mxu0 0
  %2224 = vmatpush2.bf16.msra.mxu0 0
  %2225 = vmatprep.subr.bf16.mxu0 0
  %2226 = vmatpush2.bf16.msra.mxu0 0
  %2227 = vmatprep.subr.bf16.mxu0 0
  %2228 = vmatpush2.bf16.msra.mxu0 0
  %2229 = vmatprep.mubr.bf16.mxu0 0
  %2230 = vmatmul.mubr.bf16.gmra.mxu0 %v2155
  %v2231 = vpop.f32.mrf.mxu0
  %v2232 = vadd.f32 0.0, %v2231
  %v2233 = vpop.f32.mrf.mxu0
  %v2234 = vpop.f32.mrf.mxu0
  %v2235 = vpop.f32.mrf.mxu0
  %2236 = vdwg.mxu0
  %v2237 = vunpack.c.l.bf16 %v2151
  %v2238 = vunpack.c.h.bf16 %v2151
  %v2239 = vunpack.c.l.bf16 %v2152
  %v2240 = vadd.f32 %v2237, %v2191
  %v2241 = vmul.f32 %v2240, 0.5
  %v2242 = vtanh.pop %v2241
  %v2243 = vadd.f32 %v2242, 1.0
  %v2244 = vmul.f32 %v2243, 0.5
  %v2245 = vadd.f32 %v2238, %v2193
  %v2246 = vmul.f32 %v2245, 0.5
  %v2247 = vtanh.pop %v2246
  %v2248 = vadd.f32 %v2247, 1.0
  %v2249 = vmul.f32 %v2248, 0.5
  %v2250 = vadd.f32 %v2232, %v626
  %v2251 = vmul.f32 %v2244, %v2250
  %v2252 = vadd.f32 %v2239, %v2251
  %v2253 = vtanh.pop %v2252
  %v2254 = vsub.f32 %v2032, %v2253
  %v2255 = vmul.f32 %v2249, %v2254
  %v2256 = vadd.f32 %v2253, %v2255
  %v2257 = vsel %vm2154, 1, 0
  %2258 = vset.pattern.permute.xlu0 0
  %2259 = vperm.xlu0 %2258, %v2257
  %v2260 = vpop.permute.xlu0 %2259
  %vm2261 = vcmp.eq.s32.totalorder %v2260, 1
  %v2262 = vsel %vm2261, %v2256, 0.0
  %2263 = vst [vmem:[%s64] sm:$0xff] %v2262
  %2264 = vst [vmem:[#allocation2] sm:$0xff] %v2148
  %2265 = vst [vmem:[#allocation3] sm:$0xff] %v2262
  %s2266 = ssub.s32 0, 0
  %s2267 = smul.u32 8, %s2266
  %p2268 = scmp.lt.s32.totalorder %s2267, 7
  %s2269 = scalar_select %p2268, %s2267, 7
  %s2270 = smul.addr %s2269, 8
  %s2271 = scalar_lea.vmem %s8, %s2270
  // Predicated region
  $region34: #{encoder_text_forward.3} parent=0 // pred_check
    _
  $region35: #{encoder_text_forward.3} parent=0 // pred_check_branch
    %2273 = sbr.rel (0) target = $region37
  $region36: #{encoder_text_forward.3} parent=0 // pred_region
    _
  $region37: #{encoder_text_forward.3} parent=0 // pred_fallthru
    _
  // Predicated region
  $region38: #{encoder_text_forward.3} parent=0 // pred_check
    _
  $region39: #{encoder_text_forward.3} parent=0 // pred_check_branch
    %2275 = sbr.rel (0) target = $region41
  $region40: #{encoder_text_forward.3} parent=0 // pred_region
    %s2276 = ssub.s32 0, 0
    %s2277 = smul.u32 8, %s2276
  $region41: #{encoder_text_forward.3} parent=0 // pred_fallthru
    _
  // Predicated region
  $region42: #{encoder_text_forward.3} parent=0 // pred_check
    _
  $region43: #{encoder_text_forward.3} parent=0 // pred_check_branch
    %2279 = sbr.rel (0) target = $region45
  $region44: #{encoder_text_forward.3} parent=0 // pred_region
    _
  $region45: #{encoder_text_forward.3} parent=0 // pred_fallthru
    _
  // Predicated region
  $region46: #{encoder_text_forward.3} parent=0 // pred_check
    _
  $region47: #{encoder_text_forward.3} parent=0 // pred_check_branch
    %2281 = sbr.rel (0) target = $region49
  $region48: #{encoder_text_forward.3} parent=0 // pred_region
    %s2282 = ssub.s32 0, 0
    %s2283 = smul.u32 8, %s2282
    %p2284 = scmp.lt.s32.totalorder %s2283, 7
    %s2285 = scalar_select %p2284, %s2283, 7
    %s2286 = smul.addr %s2285, 8
    %s2287 = scalar_lea.vmem %s8, %s2286
  $region49: #{encoder_text_forward.3} parent=0 // pred_fallthru
    _

</llo_original>
